<compile_context>
chip_gen: v5e
topology: v5e:2x2
jax: 0.10.0
libtpu: 0.0.40
codegen_flags: <defaults>
</compile_context>

<pallas_src>
import math

import jax
import jax.numpy as jnp
from jax.experimental import pallas as pl
from jax.experimental.pallas import tpu as pltpu

D_MODEL = 32          # input_size / d_model
DIM_FF = 2048         # nn.TransformerEncoderLayer default dim_feedforward
NUM_LAYERS = 2
NUM_CLASSES = 1
LN_EPS = 1e-5         # nn.LayerNorm default eps
PARAMS_PER_LAYER = 12


# ---------------------------------------------------------------------------
# Generation-aware budgets (v7x: 64 MiB VMEM / 2 TCs; v5e/v6e: 128 MiB / 1 TC).
# ---------------------------------------------------------------------------
def _vmem_capacity_bytes():
    try:
        return int(pltpu.get_tpu_info().vmem_capacity_bytes)
    except Exception:
        return 64 * 1024 * 1024            # conservative (v7x-sized) default

_VMEM_CAP = _vmem_capacity_bytes()
_BIG_VMEM = _VMEM_CAP >= 100 * 1024 * 1024           # v5e / v6e
_VMEM_LIMIT = (96 if _BIG_VMEM else 40) * 1024 * 1024
_MAX_ROWS = 4096 if _BIG_VMEM else 2048              # activation rows per grid step
_FFN_CHUNK_ROWS = 1024 if _BIG_VMEM else 512         # rows per FFN matmul pass
_PREFER_SPLIT = not _BIG_VMEM                        # v7x proxy: feed both TensorCores


def _probe_buffered_one():
    """Return pl.Buffered(1) if single-buffered constant inputs are supported here."""
    try:
        mode = pl.Buffered(1)

        def k(x_ref, o_ref):
            o_ref[...] = x_ref[...] + 1.0

        f = pl.pallas_call(
            k,
            out_shape=jax.ShapeDtypeStruct((16, 128), jnp.float32),
            grid=(2,),
            in_specs=[pl.BlockSpec((8, 128), lambda i: (0, 0), pipeline_mode=mode)],
            out_specs=pl.BlockSpec((8, 128), lambda i: (i, 0)),
        )
        jax.block_until_ready(f(jnp.zeros((8, 128), jnp.float32)))
        return mode
    except Exception:
        return None

_WEIGHT_PIPE = _probe_buffered_one()


def _wspec(shape):
    """Constant-index (VMEM-resident) weight BlockSpec, single-buffered if possible."""
    idx = lambda i: (0,) * len(shape)
    if _WEIGHT_PIPE is not None:
        return pl.BlockSpec(shape, idx, pipeline_mode=_WEIGHT_PIPE)
    return pl.BlockSpec(shape, idx)


# ---------------------------------------------------------------------------
# Kernel body
# ---------------------------------------------------------------------------
def _layer_norm(x, gamma, beta):
    mean = jnp.mean(x, axis=-1, keepdims=True)
    var = jnp.mean(jnp.square(x - mean), axis=-1, keepdims=True)
    return (x - mean) * jax.lax.rsqrt(var + LN_EPS) * gamma + beta


def _ffn_chunk_rows(m):
    """Largest multiple-of-8 divisor of m that is <= _FFN_CHUNK_ROWS (None => one pass)."""
    if m <= _FFN_CHUNK_ROWS:
        return None
    for c in range((min(m, _FFN_CHUNK_ROWS) // 8) * 8, 0, -8):
        if m % c == 0:
            return c
    return None


def _ffn_block(x_rows, w1_t, b1, w2_t, b2, g2, be2, rows_sc):
    """x = LayerNorm(x + relu(x@W1+b1)@W2+b2), row-chunked to bound the fp32 hidden."""
    m, _ = x_rows.shape

    def one(xs):
        h = jnp.maximum(
            jnp.dot(xs.astype(jnp.bfloat16), w1_t,
                    preferred_element_type=jnp.float32) + b1, 0.0)
        ff = jnp.dot(h.astype(jnp.bfloat16), w2_t,
                     preferred_element_type=jnp.float32) + b2
        return _layer_norm(xs + ff, g2, be2)

    chunk = _ffn_chunk_rows(m)
    if chunk is None:
        # Either m is small, or (rare) m has no multiple-of-8 divisor <= chunk cap.
        # TODO(synk): no aligned row-chunking possible for this m; single (m, 2048) pass.
        return one(x_rows)

    rows_sc[...] = x_rows

    @pl.loop(0, m // chunk)
    def _(ci):
        off = pl.multiple_of(ci * chunk, chunk)
        xs = rows_sc[pl.ds(off, chunk), :]
        rows_sc[pl.ds(off, chunk), :] = one(xs)

    return rows_sc[...]


def _encoder_layer(x_rows, tb, s, wq, wk, wv, bq, bk, bv, wo_t, bo, g1, be1,
                   w1_t, b1, w2_t, b2, g2, be2, rows_sc):
    """Post-norm TransformerEncoderLayer (nhead=1, ReLU).  x_rows: (TB*S, D) f32."""
    d = x_rows.shape[-1]
    scale = 1.0 / math.sqrt(d)
    bf16 = jnp.bfloat16

    # Three separate (M,32)@(32,32) projections: q/k/v land at lane offset 0
    # (no lane-offset slicing of a fused 96-wide result -> no relayout copies).
    xb = x_rows.astype(bf16)
    q = (jnp.dot(xb, wq, preferred_element_type=jnp.float32) + bq).reshape(tb, s, d)
    k = (jnp.dot(xb, wk, preferred_element_type=jnp.float32) + bk).reshape(tb, s, d)
    v = (jnp.dot(xb, wv, preferred_element_type=jnp.float32) + bv).reshape(tb, s, d)

    # Single-head self-attention, batched over the TB sequences in this tile.
    # MXU inputs bf16, accumulate f32; softmax math kept in f32.
    scores = jnp.einsum('bqd,bkd->bqk', q.astype(bf16), k.astype(bf16),
                        preferred_element_type=jnp.float32) * scale
    scores = scores - jnp.max(scores, axis=-1, keepdims=True)
    e = jnp.exp(scores)
    attn = e * pl.reciprocal(jnp.sum(e, axis=-1, keepdims=True), approx=True)
    ctx = jnp.einsum('bqk,bkd->bqd', attn.astype(bf16), v.astype(bf16),
                     preferred_element_type=jnp.float32)

    attn_out = jnp.dot(ctx.reshape(tb * s, d).astype(bf16), wo_t,
                       preferred_element_type=jnp.float32) + bo
    # TODO(synk): dropout (p=0.1 default) treated as identity (inference mode).
    x_rows = _layer_norm(x_rows + attn_out, g1, be1)

    # Feed-forward (row-chunked): (rows,32)@(32,2048) -> ReLU -> (rows,2048)@(2048,32).
    return _ffn_block(x_rows, w1_t, b1, w2_t, b2, g2, be2, rows_sc)


def _model_kernel(x_ref, wqkv_ref, wo_ref, w1_ref, w2_ref, bqkv_ref, b1_ref,
                  vec_ref, scal_ref, o_ref, rows_sc):
    tb, s, d = x_ref.shape
    x = x_ref[...].reshape(tb * s, d)              # (TB*S, D) f32 rows
    vecs = vec_ref[...]                            # (6*L + 1, D) small vectors
    bqkv = bqkv_ref[...]                           # (L, 3, D)
    b1 = b1_ref[...]                               # (L, F)

    for l in range(NUM_LAYERS):
        bo, g1, be1, b2, g2, be2 = [vecs[6 * l + j] for j in range(6)]
        x = _encoder_layer(
            x, tb, s,
            wqkv_ref[l, 0], wqkv_ref[l, 1], wqkv_ref[l, 2],
            bqkv[l, 0], bqkv[l, 1], bqkv[l, 2],
            wo_ref[l], bo, g1, be1,
            w1_ref[l], b1[l], w2_ref[l], b2, g2, be2, rows_sc)

    fc_w = vecs[6 * NUM_LAYERS]                    # (D,)
    fc_b = scal_ref[0]
    a = scal_ref[1]
    b = scal_ref[2]
    # Classifier as VPU broadcast-mul + lane reduction (no 1-wide MXU pass).
    logits = jnp.sum(x.reshape(tb, s, d) * fc_w, axis=-1) + fc_b   # (TB, S)
    o_ref[...] = jax.nn.sigmoid(b * logits - a)                    # lane-dense store


# ---------------------------------------------------------------------------
# Parameters (PyTorch-module shapes) and packing
# ---------------------------------------------------------------------------
def init_params(key):
    """Deterministic synthetic parameters (PyTorch-module shapes)."""
    k = key

    def nxt():
        nonlocal k
        k, sub = jax.random.split(k)
        return sub

    params = []
    for _ in range(NUM_LAYERS):
        params += [
            jax.random.normal(nxt(), (3 * D_MODEL, D_MODEL), jnp.float32) * 0.05,  # in_proj_weight
            jax.random.normal(nxt(), (3 * D_MODEL,), jnp.float32) * 0.05,          # in_proj_bias
            jax.random.normal(nxt(), (D_MODEL, D_MODEL), jnp.float32) * 0.05,      # out_proj.weight
            jnp.zeros((D_MODEL,), jnp.float32),                                    # out_proj.bias
            jnp.ones((D_MODEL,), jnp.float32),                                     # norm1.weight
            jnp.zeros((D_MODEL,), jnp.float32),                                    # norm1.bias
            jax.random.normal(nxt(), (DIM_FF, D_MODEL), jnp.float32) * 0.02,       # linear1.weight
            jnp.zeros((DIM_FF,), jnp.float32),                                     # linear1.bias
            jax.random.normal(nxt(), (D_MODEL, DIM_FF), jnp.float32) * 0.02,       # linear2.weight
            jnp.zeros((D_MODEL,), jnp.float32),                                    # linear2.bias
            jnp.ones((D_MODEL,), jnp.float32),                                     # norm2.weight
            jnp.zeros((D_MODEL,), jnp.float32),                                    # norm2.bias
        ]
    params += [
        jax.random.normal(nxt(), (NUM_CLASSES, D_MODEL), jnp.float32) * 0.05,      # fc.weight
        jnp.zeros((NUM_CLASSES,), jnp.float32),                                    # fc.bias
        jnp.array([0.001], jnp.float32),                                           # a
        jnp.array([0.999], jnp.float32),                                           # b
    ]
    return params


def pack_params(params):
    """Pre-transpose / pack PyTorch-layout params into kernel-friendly arrays.

    Matmul weights are stored bf16 (MXU inputs); biases / LN vectors stay f32.
    """
    wqkv_l, wo_l, w1_l, w2_l, bqkv_l, b1_l, vec_rows = [], [], [], [], [], [], []
    d = D_MODEL
    for l in range(NUM_LAYERS):
        (wqkv, bqkv, wo, bo, g1, be1, w1, b1, w2, b2, g2, be2) = \
            params[l * PARAMS_PER_LAYER:(l + 1) * PARAMS_PER_LAYER]
        # (3, D, D): pre-transposed q/k/v weights so q = x @ Wq (each at lane offset 0)
        wqkv_l.append(jnp.stack([wqkv[0:d].T, wqkv[d:2 * d].T, wqkv[2 * d:3 * d].T]))
        bqkv_l.append(bqkv.reshape(3, d))   # (3, D)
        wo_l.append(wo.T)                   # (D, D)
        w1_l.append(w1.T)                   # (D, F)
        w2_l.append(w2.T)                   # (F, D)
        b1_l.append(b1.reshape(-1))         # (F,)
        vec_rows += [bo, g1, be1, b2, g2, be2]
    fc_w, fc_b, a, b = params[NUM_LAYERS * PARAMS_PER_LAYER:]
    vec_rows.append(fc_w.reshape(-1))       # (D,)
    bf16 = jnp.bfloat16
    return dict(
        wqkv=jnp.stack(wqkv_l).astype(bf16),            # (L, 3, D, D) bf16
        wo=jnp.stack(wo_l).astype(bf16),                # (L, D, D)    bf16
        w1=jnp.stack(w1_l).astype(bf16),                # (L, D, F)    bf16
        w2=jnp.stack(w2_l).astype(bf16),                # (L, F, D)    bf16
        bqkv=jnp.stack(bqkv_l),                         # (L, 3, D)    f32
        b1=jnp.stack(b1_l),                             # (L, F)       f32
        vecs=jnp.stack([v.reshape(-1) for v in vec_rows]),            # (6L+1, D) f32
        scal=jnp.concatenate([fc_b.reshape(-1), a.reshape(-1),
                              b.reshape(-1)]).astype(jnp.float32),    # (3,)
    )


def _pick_tile_b(S, B):
    """Batches per grid step.

    Caps rows/step so the f32 attention-score block and activations fit the
    generation's VMEM budget; on v7x prefers >=2 grid steps so the 'parallel'
    axis can shard across both TensorCores.  FFN peak VMEM is bounded separately
    by the in-kernel row-chunking.
    """
    max_rows = max(S, min(_MAX_ROWS, _VMEM_LIMIT // (16 * max(S, 1))))
    cands = [t for t in range(8, B + 1, 8) if B % t == 0]   # tileable batch sizes
    fit = [t for t in cands if t * S <= max_rows]
    if fit:
        if _PREFER_SPLIT:                 # v7x: keep both TensorCores busy
            split = [t for t in fit if B // t >= 2]
            if split:
                return max(split)
        return max(fit)
    if cands:
        return min(cands)                 # bound the tile; FFN chunking does the rest
    return B                              # B < 8 or no multiple-of-8 divisor


# ---------------------------------------------------------------------------
# Wrapper
# ---------------------------------------------------------------------------
@jax.jit
def transformer_model_forward(x_sbd, packed):
    """x_sbd: (S, B, D) as in PyTorch (batch_first=False).  Returns (S, B, 1)."""
    S, B, D = x_sbd.shape
    x_bsd = jnp.transpose(x_sbd, (1, 0, 2))            # batch-major for blocking
    tile_b = _pick_tile_b(S, B)
    grid = (B // tile_b,)

    out_bs = pl.pallas_call(
        _model_kernel,
        out_shape=jax.ShapeDtypeStruct((B, S), jnp.float32),
        grid=grid,
        in_specs=[
            pl.BlockSpec((tile_b, S, D), lambda i: (i, 0, 0)),      # activation tile
            _wspec(packed['wqkv'].shape),                           # VMEM-resident weights
            _wspec(packed['wo'].shape),
            _wspec(packed['w1'].shape),
            _wspec(packed['w2'].shape),
            _wspec(packed['bqkv'].shape),
            _wspec(packed['b1'].shape),
            _wspec(packed['vecs'].shape),
            pl.BlockSpec(memory_space=pltpu.MemorySpace.SMEM),      # [fc_b, a, b]
        ],
        out_specs=pl.BlockSpec((tile_b, S), lambda i: (i, 0)),      # lane-dense (B, S)
        scratch_shapes=[pltpu.VMEM((tile_b * S, D), jnp.float32)],  # FFN row-chunk buffer
        compiler_params=pltpu.CompilerParams(
            dimension_semantics=("parallel",),
            vmem_limit_bytes=_VMEM_LIMIT,
        ),
    )(x_bsd, packed['wqkv'], packed['wo'], packed['w1'], packed['w2'],
      packed['bqkv'], packed['b1'], packed['vecs'], packed['scal'])

    return jnp.transpose(out_bs)[..., None]             # (S, B, 1), PyTorch layout


if __name__ == "__main__":
    key = jax.random.PRNGKey(0)
    pkey, xkey = jax.random.split(key)
    params = init_params(pkey)
    packed = pack_params(params)

    S, B = 8, 2
    x = jax.random.normal(xkey, (S, B, D_MODEL), jnp.float32)

    out = transformer_model_forward(x, packed)
    jax.block_until_ready(out)

    assert out.shape == (S, B, NUM_CLASSES), out.shape
    assert bool(jnp.all(jnp.isfinite(out)))
    assert bool(jnp.all((out > 0.0) & (out < 1.0)))      # sigmoid output range
    print("KERNEL_OK")
</pallas_src>

<mosaic_0001>
module attributes {stable_mosaic.version = 11 : i64} {
  func.func @k(%arg0: i32, %arg1: memref<8x128xf32, #tpu.memory_space<vmem>>, %arg2: memref<8x128xf32, #tpu.memory_space<vmem>>) attributes {dimension_semantics = [#tpu.dimension_semantics<arbitrary>], iteration_bounds = array<i64: 2>, scalar_prefetch = 0 : i64, scratch_operands = 0 : i64, tpu.core_type = #tpu.core_type<tc>, window_params = [{pipeline_mode = #tpu.pipeline_mode<synchronous>, transform_indices = @transform_0, window_bounds = array<i64: 8, 128>}, {transform_indices = @transform_1, window_bounds = array<i64: 8, 128>}]} {
    %c0 = arith.constant 0 : index
    %c0_0 = arith.constant 0 : index
    %0 = vector.load %arg1[%c0, %c0_0] : memref<8x128xf32, #tpu.memory_space<vmem>>, vector<8x128xf32>
    %cst = arith.constant 1.000000e+00 : f32
    %1 = vector.broadcast %cst : f32 to vector<8x128xf32>
    %2 = arith.addf %0, %1 : vector<8x128xf32>
    %c0_1 = arith.constant 0 : index
    %c0_2 = arith.constant 0 : index
    %3 = vector.load %arg2[%c0_1, %c0_2] : memref<8x128xf32, #tpu.memory_space<vmem>>, vector<8x128xf32>
    tpu.vector_store %arg2[%c0_1, %c0_2], %2 {strides = array<i32>} : memref<8x128xf32, #tpu.memory_space<vmem>>, vector<8x128xf32>,
    return
  }
  func.func @transform_0(%arg0: i32) -> (i32, i32) {
    %c0_i32 = arith.constant 0 : i32
    %c0_i32_0 = arith.constant 0 : i32
    %c0_i32_1 = arith.constant 0 : i32
    return %c0_i32, %c0_i32_0 : i32, i32
  }
  func.func @transform_1(%arg0: i32) -> (i32, i32) {
    %c0_i32 = arith.constant 0 : i32
    %c0_i32_0 = arith.constant 0 : i32
    return %arg0, %c0_i32 : i32, i32
  }
}

module attributes {stable_mosaic.version = 11 : i64} {
  func.func @_model_kernel(%arg0: i32, %arg1: memref<2x8x32xf32, #tpu.memory_space<vmem>>, %arg2: memref<2x3x32x32xbf16, #tpu.memory_space<vmem>>, %arg3: memref<2x32x32xbf16, #tpu.memory_space<vmem>>, %arg4: memref<2x32x2048xbf16, #tpu.memory_space<vmem>>, %arg5: memref<2x2048x32xbf16, #tpu.memory_space<vmem>>, %arg6: memref<2x3x32xf32, #tpu.memory_space<vmem>>, %arg7: memref<2x2048xf32, #tpu.memory_space<vmem>>, %arg8: memref<13x32xf32, #tpu.memory_space<vmem>>, %arg9: memref<3xf32, #tpu.memory_space<smem>>, %arg10: memref<2x8xf32, #tpu.memory_space<vmem>>, %arg11: memref<16x32xf32, #tpu.memory_space<vmem>>) attributes {dimension_semantics = [#tpu.dimension_semantics<parallel>], iteration_bounds = array<i64: 1>, scalar_prefetch = 0 : i64, scratch_operands = 1 : i64, tpu.core_type = #tpu.core_type<tc>, window_params = [{transform_indices = @transform_0, window_bounds = array<i64: 2, 8, 32>}, {pipeline_mode = #tpu.pipeline_mode<synchronous>, transform_indices = @transform_1, window_bounds = array<i64: 2, 3, 32, 32>}, {pipeline_mode = #tpu.pipeline_mode<synchronous>, transform_indices = @transform_2, window_bounds = array<i64: 2, 32, 32>}, {pipeline_mode = #tpu.pipeline_mode<synchronous>, transform_indices = @transform_3, window_bounds = array<i64: 2, 32, 2048>}, {pipeline_mode = #tpu.pipeline_mode<synchronous>, transform_indices = @transform_4, window_bounds = array<i64: 2, 2048, 32>}, {pipeline_mode = #tpu.pipeline_mode<synchronous>, transform_indices = @transform_5, window_bounds = array<i64: 2, 3, 32>}, {pipeline_mode = #tpu.pipeline_mode<synchronous>, transform_indices = @transform_6, window_bounds = array<i64: 2, 2048>}, {pipeline_mode = #tpu.pipeline_mode<synchronous>, transform_indices = @transform_7, window_bounds = array<i64: 13, 32>}, {transform_indices = @transform_8, window_bounds = array<i64: 3>}, {transform_indices = @transform_9, window_bounds = array<i64: 2, 8>}]} {
    %c0 = arith.constant 0 : index
    %c0_0 = arith.constant 0 : index
    %c0_1 = arith.constant 0 : index
    %0 = vector.load %arg1[%c0, %c0_0, %c0_1] : memref<2x8x32xf32, #tpu.memory_space<vmem>>, vector<2x8x32xf32>
    %1 = vector.shape_cast %0 : vector<2x8x32xf32> to vector<16x32xf32>
    %c0_2 = arith.constant 0 : index
    %c0_3 = arith.constant 0 : index
    %2 = vector.load %arg8[%c0_2, %c0_3] : memref<13x32xf32, #tpu.memory_space<vmem>>, vector<13x32xf32>
    %c0_4 = arith.constant 0 : index
    %c0_5 = arith.constant 0 : index
    %c0_6 = arith.constant 0 : index
    %3 = vector.load %arg6[%c0_4, %c0_5, %c0_6] : memref<2x3x32xf32, #tpu.memory_space<vmem>>, vector<2x3x32xf32>
    %c0_7 = arith.constant 0 : index
    %c0_8 = arith.constant 0 : index
    %4 = vector.load %arg7[%c0_7, %c0_8] : memref<2x2048xf32, #tpu.memory_space<vmem>>, vector<2x2048xf32>
    %5 = vector.extract_strided_slice %2 {offsets = [0, 0], sizes = [1, 32], strides = [1, 1]} : vector<13x32xf32> to vector<1x32xf32>
    %6 = vector.shape_cast %5 : vector<1x32xf32> to vector<32xf32>
    %7 = vector.extract_strided_slice %2 {offsets = [1, 0], sizes = [1, 32], strides = [1, 1]} : vector<13x32xf32> to vector<1x32xf32>
    %8 = vector.shape_cast %7 : vector<1x32xf32> to vector<32xf32>
    %9 = vector.extract_strided_slice %2 {offsets = [2, 0], sizes = [1, 32], strides = [1, 1]} : vector<13x32xf32> to vector<1x32xf32>
    %10 = vector.shape_cast %9 : vector<1x32xf32> to vector<32xf32>
    %11 = vector.extract_strided_slice %2 {offsets = [3, 0], sizes = [1, 32], strides = [1, 1]} : vector<13x32xf32> to vector<1x32xf32>
    %12 = vector.shape_cast %11 : vector<1x32xf32> to vector<32xf32>
    %13 = vector.extract_strided_slice %2 {offsets = [4, 0], sizes = [1, 32], strides = [1, 1]} : vector<13x32xf32> to vector<1x32xf32>
    %14 = vector.shape_cast %13 : vector<1x32xf32> to vector<32xf32>
    %15 = vector.extract_strided_slice %2 {offsets = [5, 0], sizes = [1, 32], strides = [1, 1]} : vector<13x32xf32> to vector<1x32xf32>
    %16 = vector.shape_cast %15 : vector<1x32xf32> to vector<32xf32>
    %c0_9 = arith.constant 0 : index
    %c0_10 = arith.constant 0 : index
    %c0_11 = arith.constant 0 : index
    %c0_12 = arith.constant 0 : index
    %17 = vector.load %arg2[%c0_9, %c0_10, %c0_11, %c0_12] : memref<2x3x32x32xbf16, #tpu.memory_space<vmem>>, vector<1x1x32x32xbf16>
    %18 = vector.shape_cast %17 : vector<1x1x32x32xbf16> to vector<32x32xbf16>
    %c0_13 = arith.constant 0 : index
    %c1 = arith.constant 1 : index
    %c0_14 = arith.constant 0 : index
    %c0_15 = arith.constant 0 : index
    %19 = vector.load %arg2[%c0_13, %c1, %c0_14, %c0_15] : memref<2x3x32x32xbf16, #tpu.memory_space<vmem>>, vector<1x1x32x32xbf16>
    %20 = vector.shape_cast %19 : vector<1x1x32x32xbf16> to vector<32x32xbf16>
    %c0_16 = arith.constant 0 : index
    %c2 = arith.constant 2 : index
    %c0_17 = arith.constant 0 : index
    %c0_18 = arith.constant 0 : index
    %21 = vector.load %arg2[%c0_16, %c2, %c0_17, %c0_18] : memref<2x3x32x32xbf16, #tpu.memory_space<vmem>>, vector<1x1x32x32xbf16>
    %22 = vector.shape_cast %21 : vector<1x1x32x32xbf16> to vector<32x32xbf16>
    %23 = vector.extract_strided_slice %3 {offsets = [0, 0, 0], sizes = [1, 1, 32], strides = [1, 1, 1]} : vector<2x3x32xf32> to vector<1x1x32xf32>
    %24 = vector.shape_cast %23 : vector<1x1x32xf32> to vector<32xf32>
    %25 = vector.extract_strided_slice %3 {offsets = [0, 1, 0], sizes = [1, 1, 32], strides = [1, 1, 1]} : vector<2x3x32xf32> to vector<1x1x32xf32>
    %26 = vector.shape_cast %25 : vector<1x1x32xf32> to vector<32xf32>
    %27 = vector.extract_strided_slice %3 {offsets = [0, 2, 0], sizes = [1, 1, 32], strides = [1, 1, 1]} : vector<2x3x32xf32> to vector<1x1x32xf32>
    %28 = vector.shape_cast %27 : vector<1x1x32xf32> to vector<32xf32>
    %c0_19 = arith.constant 0 : index
    %c0_20 = arith.constant 0 : index
    %c0_21 = arith.constant 0 : index
    %29 = vector.load %arg3[%c0_19, %c0_20, %c0_21] : memref<2x32x32xbf16, #tpu.memory_space<vmem>>, vector<1x32x32xbf16>
    %30 = vector.shape_cast %29 : vector<1x32x32xbf16> to vector<32x32xbf16>
    %c0_22 = arith.constant 0 : index
    %c0_23 = arith.constant 0 : index
    %c0_24 = arith.constant 0 : index
    %31 = vector.load %arg4[%c0_22, %c0_23, %c0_24] : memref<2x32x2048xbf16, #tpu.memory_space<vmem>>, vector<1x32x2048xbf16>
    %32 = vector.shape_cast %31 : vector<1x32x2048xbf16> to vector<32x2048xbf16>
    %33 = vector.extract_strided_slice %4 {offsets = [0, 0], sizes = [1, 2048], strides = [1, 1]} : vector<2x2048xf32> to vector<1x2048xf32>
    %34 = vector.shape_cast %33 : vector<1x2048xf32> to vector<2048xf32>
    %c0_25 = arith.constant 0 : index
    %c0_26 = arith.constant 0 : index
    %c0_27 = arith.constant 0 : index
    %35 = vector.load %arg5[%c0_25, %c0_26, %c0_27] : memref<2x2048x32xbf16, #tpu.memory_space<vmem>>, vector<1x2048x32xbf16>
    %36 = vector.shape_cast %35 : vector<1x2048x32xbf16> to vector<2048x32xbf16>
    %37 = arith.truncf %1 : vector<16x32xf32> to vector<16x32xbf16>
    %cst = arith.constant dense<0.000000e+00> : vector<16x32xf32>
    %38 = tpu.matmul %37, %18, %cst {dimension_numbers = #tpu.dot_dimension_numbers<[1], [0], [0], [1], [0, 0, 1, 1], [], []>} : vector<16x32xbf16>, vector<32x32xbf16>, vector<16x32xf32> -> vector<16x32xf32>
    %39 = vector.shape_cast %24 : vector<32xf32> to vector<1x32xf32>
    %40 = vector.broadcast %39 : vector<1x32xf32> to vector<16x32xf32>
    %41 = arith.addf %38, %40 : vector<16x32xf32>
    %42 = vector.shape_cast %41 : vector<16x32xf32> to vector<2x8x32xf32>
    %cst_28 = arith.constant dense<0.000000e+00> : vector<16x32xf32>
    %43 = tpu.matmul %37, %20, %cst_28 {dimension_numbers = #tpu.dot_dimension_numbers<[1], [0], [0], [1], [0, 0, 1, 1], [], []>} : vector<16x32xbf16>, vector<32x32xbf16>, vector<16x32xf32> -> vector<16x32xf32>
    %44 = vector.shape_cast %26 : vector<32xf32> to vector<1x32xf32>
    %45 = vector.broadcast %44 : vector<1x32xf32> to vector<16x32xf32>
    %46 = arith.addf %43, %45 : vector<16x32xf32>
    %47 = vector.shape_cast %46 : vector<16x32xf32> to vector<2x8x32xf32>
    %cst_29 = arith.constant dense<0.000000e+00> : vector<16x32xf32>
    %48 = tpu.matmul %37, %22, %cst_29 {dimension_numbers = #tpu.dot_dimension_numbers<[1], [0], [0], [1], [0, 0, 1, 1], [], []>} : vector<16x32xbf16>, vector<32x32xbf16>, vector<16x32xf32> -> vector<16x32xf32>
    %49 = vector.shape_cast %28 : vector<32xf32> to vector<1x32xf32>
    %50 = vector.broadcast %49 : vector<1x32xf32> to vector<16x32xf32>
    %51 = arith.addf %48, %50 : vector<16x32xf32>
    %52 = vector.shape_cast %51 : vector<16x32xf32> to vector<2x8x32xf32>
    %53 = arith.truncf %42 : vector<2x8x32xf32> to vector<2x8x32xbf16>
    %54 = arith.truncf %47 : vector<2x8x32xf32> to vector<2x8x32xbf16>
    "tpu.trace_start"() <{level = 10 : i32, message = "bqd,bkd->bqk"}> : () -> ()
    %cst_30 = arith.constant dense<0.000000e+00> : vector<2x8x8xf32>
    %55 = tpu.matmul %53, %54, %cst_30 {dimension_numbers = #tpu.dot_dimension_numbers<[2], [2], [1], [1], [0, 0, 0, 1, 1, 1], [0], [0]>} : vector<2x8x32xbf16>, vector<2x8x32xbf16>, vector<2x8x8xf32> -> vector<2x8x8xf32>
    "tpu.trace_stop"() : () -> ()
    %cst_31 = arith.constant 0.176776692 : f32
    %56 = vector.broadcast %cst_31 : f32 to vector<2x8x8xf32>
    %57 = arith.mulf %55, %56 : vector<2x8x8xf32>
    %cst_32 = arith.constant dense<0xFF800000> : vector<2x8xf32>
    %58 = vector.multi_reduction <maximumf>, %57, %cst_32 [2] : vector<2x8x8xf32> to vector<2x8xf32>
    %59 = vector.shape_cast %58 : vector<2x8xf32> to vector<2x8x1xf32>
    %60 = vector.broadcast %59 : vector<2x8x1xf32> to vector<2x8x8xf32>
    %61 = arith.subf %57, %60 : vector<2x8x8xf32>
    %62 = math.exp %61 : vector<2x8x8xf32>
    %cst_33 = arith.constant dense<0.000000e+00> : vector<2x8xf32>
    %63 = vector.multi_reduction <add>, %62, %cst_33 [2] : vector<2x8x8xf32> to vector<2x8xf32>
    %64 = vector.shape_cast %63 : vector<2x8xf32> to vector<2x8x1xf32>
    %65 = tpu.reciprocal %64 {approx = true} : vector<2x8x1xf32> -> vector<2x8x1xf32>
    %66 = vector.broadcast %65 : vector<2x8x1xf32> to vector<2x8x8xf32>
    %67 = arith.mulf %62, %66 : vector<2x8x8xf32>
    %68 = arith.truncf %67 : vector<2x8x8xf32> to vector<2x8x8xbf16>
    %69 = arith.truncf %52 : vector<2x8x32xf32> to vector<2x8x32xbf16>
    "tpu.trace_start"() <{level = 10 : i32, message = "bqk,bkd->bqd"}> : () -> ()
    %cst_34 = arith.constant dense<0.000000e+00> : vector<2x8x32xf32>
    %70 = tpu.matmul %68, %69, %cst_34 {dimension_numbers = #tpu.dot_dimension_numbers<[2], [1], [1], [2], [0, 0, 0, 1, 1, 2], [0], [0]>} : vector<2x8x8xbf16>, vector<2x8x32xbf16>, vector<2x8x32xf32> -> vector<2x8x32xf32>
    "tpu.trace_stop"() : () -> ()
    %71 = vector.shape_cast %70 : vector<2x8x32xf32> to vector<16x32xf32>
    %72 = arith.truncf %71 : vector<16x32xf32> to vector<16x32xbf16>
    %cst_35 = arith.constant dense<0.000000e+00> : vector<16x32xf32>
    %73 = tpu.matmul %72, %30, %cst_35 {dimension_numbers = #tpu.dot_dimension_numbers<[1], [0], [0], [1], [0, 0, 1, 1], [], []>} : vector<16x32xbf16>, vector<32x32xbf16>, vector<16x32xf32> -> vector<16x32xf32>
    %74 = vector.shape_cast %6 : vector<32xf32> to vector<1x32xf32>
    %75 = vector.broadcast %74 : vector<1x32xf32> to vector<16x32xf32>
    %76 = arith.addf %73, %75 : vector<16x32xf32>
    %77 = arith.addf %1, %76 : vector<16x32xf32>
    %cst_36 = arith.constant dense<0.000000e+00> : vector<16xf32>
    %78 = vector.multi_reduction <add>, %77, %cst_36 [1] : vector<16x32xf32> to vector<16xf32>
    %79 = vector.shape_cast %78 : vector<16xf32> to vector<16x1xf32>
    %cst_37 = arith.constant 3.200000e+01 : f32
    %80 = vector.broadcast %cst_37 : f32 to vector<16x1xf32>
    %81 = arith.divf %79, %80 : vector<16x1xf32>
    %82 = vector.broadcast %81 : vector<16x1xf32> to vector<16x32xf32>
    %83 = arith.subf %77, %82 : vector<16x32xf32>
    %84 = arith.mulf %83, %83 : vector<16x32xf32>
    %cst_38 = arith.constant dense<0.000000e+00> : vector<16xf32>
    %85 = vector.multi_reduction <add>, %84, %cst_38 [1] : vector<16x32xf32> to vector<16xf32>
    %86 = vector.shape_cast %85 : vector<16xf32> to vector<16x1xf32>
    %cst_39 = arith.constant 3.200000e+01 : f32
    %87 = vector.broadcast %cst_39 : f32 to vector<16x1xf32>
    %88 = arith.divf %86, %87 : vector<16x1xf32>
    %89 = vector.broadcast %81 : vector<16x1xf32> to vector<16x32xf32>
    %90 = arith.subf %77, %89 : vector<16x32xf32>
    %cst_40 = arith.constant 9.99999974E-6 : f32
    %91 = vector.broadcast %cst_40 : f32 to vector<16x1xf32>
    %92 = arith.addf %88, %91 : vector<16x1xf32>
    %93 = math.rsqrt %92 : vector<16x1xf32>
    %94 = vector.broadcast %93 : vector<16x1xf32> to vector<16x32xf32>
    %95 = arith.mulf %90, %94 : vector<16x32xf32>
    %96 = vector.shape_cast %8 : vector<32xf32> to vector<1x32xf32>
    %97 = vector.broadcast %96 : vector<1x32xf32> to vector<16x32xf32>
    %98 = arith.mulf %95, %97 : vector<16x32xf32>
    %99 = vector.shape_cast %10 : vector<32xf32> to vector<1x32xf32>
    %100 = vector.broadcast %99 : vector<1x32xf32> to vector<16x32xf32>
    %101 = arith.addf %98, %100 : vector<16x32xf32>
    %102 = arith.truncf %101 : vector<16x32xf32> to vector<16x32xbf16>
    %cst_41 = arith.constant dense<0.000000e+00> : vector<16x2048xf32>
    %103 = tpu.matmul %102, %32, %cst_41 {dimension_numbers = #tpu.dot_dimension_numbers<[1], [0], [0], [1], [0, 0, 1, 1], [], []>} : vector<16x32xbf16>, vector<32x2048xbf16>, vector<16x2048xf32> -> vector<16x2048xf32>
    %104 = vector.shape_cast %34 : vector<2048xf32> to vector<1x2048xf32>
    %105 = vector.broadcast %104 : vector<1x2048xf32> to vector<16x2048xf32>
    %106 = arith.addf %103, %105 : vector<16x2048xf32>
    %cst_42 = arith.constant 0.000000e+00 : f32
    %107 = vector.broadcast %cst_42 : f32 to vector<16x2048xf32>
    %108 = arith.maximumf %106, %107 : vector<16x2048xf32>
    %109 = arith.truncf %108 : vector<16x2048xf32> to vector<16x2048xbf16>
    %cst_43 = arith.constant dense<0.000000e+00> : vector<16x32xf32>
    %110 = tpu.matmul %109, %36, %cst_43 {dimension_numbers = #tpu.dot_dimension_numbers<[1], [0], [0], [1], [0, 0, 1, 1], [], []>} : vector<16x2048xbf16>, vector<2048x32xbf16>, vector<16x32xf32> -> vector<16x32xf32>
    %111 = vector.shape_cast %12 : vector<32xf32> to vector<1x32xf32>
    %112 = vector.broadcast %111 : vector<1x32xf32> to vector<16x32xf32>
    %113 = arith.addf %110, %112 : vector<16x32xf32>
    %114 = arith.addf %101, %113 : vector<16x32xf32>
    %cst_44 = arith.constant dense<0.000000e+00> : vector<16xf32>
    %115 = vector.multi_reduction <add>, %114, %cst_44 [1] : vector<16x32xf32> to vector<16xf32>
    %116 = vector.shape_cast %115 : vector<16xf32> to vector<16x1xf32>
    %cst_45 = arith.constant 3.200000e+01 : f32
    %117 = vector.broadcast %cst_45 : f32 to vector<16x1xf32>
    %118 = arith.divf %116, %117 : vector<16x1xf32>
    %119 = vector.broadcast %118 : vector<16x1xf32> to vector<16x32xf32>
    %120 = arith.subf %114, %119 : vector<16x32xf32>
    %121 = arith.mulf %120, %120 : vector<16x32xf32>
    %cst_46 = arith.constant dense<0.000000e+00> : vector<16xf32>
    %122 = vector.multi_reduction <add>, %121, %cst_46 [1] : vector<16x32xf32> to vector<16xf32>
    %123 = vector.shape_cast %122 : vector<16xf32> to vector<16x1xf32>
    %cst_47 = arith.constant 3.200000e+01 : f32
    %124 = vector.broadcast %cst_47 : f32 to vector<16x1xf32>
    %125 = arith.divf %123, %124 : vector<16x1xf32>
    %126 = vector.broadcast %118 : vector<16x1xf32> to vector<16x32xf32>
    %127 = arith.subf %114, %126 : vector<16x32xf32>
    %cst_48 = arith.constant 9.99999974E-6 : f32
    %128 = vector.broadcast %cst_48 : f32 to vector<16x1xf32>
    %129 = arith.addf %125, %128 : vector<16x1xf32>
    %130 = math.rsqrt %129 : vector<16x1xf32>
    %131 = vector.broadcast %130 : vector<16x1xf32> to vector<16x32xf32>
    %132 = arith.mulf %127, %131 : vector<16x32xf32>
    %133 = vector.shape_cast %14 : vector<32xf32> to vector<1x32xf32>
    %134 = vector.broadcast %133 : vector<1x32xf32> to vector<16x32xf32>
    %135 = arith.mulf %132, %134 : vector<16x32xf32>
    %136 = vector.shape_cast %16 : vector<32xf32> to vector<1x32xf32>
    %137 = vector.broadcast %136 : vector<1x32xf32> to vector<16x32xf32>
    %138 = arith.addf %135, %137 : vector<16x32xf32>
    %139 = vector.extract_strided_slice %2 {offsets = [6, 0], sizes = [1, 32], strides = [1, 1]} : vector<13x32xf32> to vector<1x32xf32>
    %140 = vector.shape_cast %139 : vector<1x32xf32> to vector<32xf32>
    %141 = vector.extract_strided_slice %2 {offsets = [7, 0], sizes = [1, 32], strides = [1, 1]} : vector<13x32xf32> to vector<1x32xf32>
    %142 = vector.shape_cast %141 : vector<1x32xf32> to vector<32xf32>
    %143 = vector.extract_strided_slice %2 {offsets = [8, 0], sizes = [1, 32], strides = [1, 1]} : vector<13x32xf32> to vector<1x32xf32>
    %144 = vector.shape_cast %143 : vector<1x32xf32> to vector<32xf32>
    %145 = vector.extract_strided_slice %2 {offsets = [9, 0], sizes = [1, 32], strides = [1, 1]} : vector<13x32xf32> to vector<1x32xf32>
    %146 = vector.shape_cast %145 : vector<1x32xf32> to vector<32xf32>
    %147 = vector.extract_strided_slice %2 {offsets = [10, 0], sizes = [1, 32], strides = [1, 1]} : vector<13x32xf32> to vector<1x32xf32>
    %148 = vector.shape_cast %147 : vector<1x32xf32> to vector<32xf32>
    %149 = vector.extract_strided_slice %2 {offsets = [11, 0], sizes = [1, 32], strides = [1, 1]} : vector<13x32xf32> to vector<1x32xf32>
    %150 = vector.shape_cast %149 : vector<1x32xf32> to vector<32xf32>
    %c1_49 = arith.constant 1 : index
    %c0_50 = arith.constant 0 : index
    %c0_51 = arith.constant 0 : index
    %c0_52 = arith.constant 0 : index
    %151 = vector.load %arg2[%c1_49, %c0_50, %c0_51, %c0_52] : memref<2x3x32x32xbf16, #tpu.memory_space<vmem>>, vector<1x1x32x32xbf16>
    %152 = vector.shape_cast %151 : vector<1x1x32x32xbf16> to vector<32x32xbf16>
    %c1_53 = arith.constant 1 : index
    %c1_54 = arith.constant 1 : index
    %c0_55 = arith.constant 0 : index
    %c0_56 = arith.constant 0 : index
    %153 = vector.load %arg2[%c1_53, %c1_54, %c0_55, %c0_56] : memref<2x3x32x32xbf16, #tpu.memory_space<vmem>>, vector<1x1x32x32xbf16>
    %154 = vector.shape_cast %153 : vector<1x1x32x32xbf16> to vector<32x32xbf16>
    %c1_57 = arith.constant 1 : index
    %c2_58 = arith.constant 2 : index
    %c0_59 = arith.constant 0 : index
    %c0_60 = arith.constant 0 : index
    %155 = vector.load %arg2[%c1_57, %c2_58, %c0_59, %c0_60] : memref<2x3x32x32xbf16, #tpu.memory_space<vmem>>, vector<1x1x32x32xbf16>
    %156 = vector.shape_cast %155 : vector<1x1x32x32xbf16> to vector<32x32xbf16>
    %157 = vector.extract_strided_slice %3 {offsets = [1, 0, 0], sizes = [1, 1, 32], strides = [1, 1, 1]} : vector<2x3x32xf32> to vector<1x1x32xf32>
    %158 = vector.shape_cast %157 : vector<1x1x32xf32> to vector<32xf32>
    %159 = vector.extract_strided_slice %3 {offsets = [1, 1, 0], sizes = [1, 1, 32], strides = [1, 1, 1]} : vector<2x3x32xf32> to vector<1x1x32xf32>
    %160 = vector.shape_cast %159 : vector<1x1x32xf32> to vector<32xf32>
    %161 = vector.extract_strided_slice %3 {offsets = [1, 2, 0], sizes = [1, 1, 32], strides = [1, 1, 1]} : vector<2x3x32xf32> to vector<1x1x32xf32>
    %162 = vector.shape_cast %161 : vector<1x1x32xf32> to vector<32xf32>
    %c1_61 = arith.constant 1 : index
    %c0_62 = arith.constant 0 : index
    %c0_63 = arith.constant 0 : index
    %163 = vector.load %arg3[%c1_61, %c0_62, %c0_63] : memref<2x32x32xbf16, #tpu.memory_space<vmem>>, vector<1x32x32xbf16>
    %164 = vector.shape_cast %163 : vector<1x32x32xbf16> to vector<32x32xbf16>
    %c1_64 = arith.constant 1 : index
    %c0_65 = arith.constant 0 : index
    %c0_66 = arith.constant 0 : index
    %165 = vector.load %arg4[%c1_64, %c0_65, %c0_66] : memref<2x32x2048xbf16, #tpu.memory_space<vmem>>, vector<1x32x2048xbf16>
    %166 = vector.shape_cast %165 : vector<1x32x2048xbf16> to vector<32x2048xbf16>
    %167 = vector.extract_strided_slice %4 {offsets = [1, 0], sizes = [1, 2048], strides = [1, 1]} : vector<2x2048xf32> to vector<1x2048xf32>
    %168 = vector.shape_cast %167 : vector<1x2048xf32> to vector<2048xf32>
    %c1_67 = arith.constant 1 : index
    %c0_68 = arith.constant 0 : index
    %c0_69 = arith.constant 0 : index
    %169 = vector.load %arg5[%c1_67, %c0_68, %c0_69] : memref<2x2048x32xbf16, #tpu.memory_space<vmem>>, vector<1x2048x32xbf16>
    %170 = vector.shape_cast %169 : vector<1x2048x32xbf16> to vector<2048x32xbf16>
    %171 = arith.truncf %138 : vector<16x32xf32> to vector<16x32xbf16>
    %cst_70 = arith.constant dense<0.000000e+00> : vector<16x32xf32>
    %172 = tpu.matmul %171, %152, %cst_70 {dimension_numbers = #tpu.dot_dimension_numbers<[1], [0], [0], [1], [0, 0, 1, 1], [], []>} : vector<16x32xbf16>, vector<32x32xbf16>, vector<16x32xf32> -> vector<16x32xf32>
    %173 = vector.shape_cast %158 : vector<32xf32> to vector<1x32xf32>
    %174 = vector.broadcast %173 : vector<1x32xf32> to vector<16x32xf32>
    %175 = arith.addf %172, %174 : vector<16x32xf32>
    %176 = vector.shape_cast %175 : vector<16x32xf32> to vector<2x8x32xf32>
    %cst_71 = arith.constant dense<0.000000e+00> : vector<16x32xf32>
    %177 = tpu.matmul %171, %154, %cst_71 {dimension_numbers = #tpu.dot_dimension_numbers<[1], [0], [0], [1], [0, 0, 1, 1], [], []>} : vector<16x32xbf16>, vector<32x32xbf16>, vector<16x32xf32> -> vector<16x32xf32>
    %178 = vector.shape_cast %160 : vector<32xf32> to vector<1x32xf32>
    %179 = vector.broadcast %178 : vector<1x32xf32> to vector<16x32xf32>
    %180 = arith.addf %177, %179 : vector<16x32xf32>
    %181 = vector.shape_cast %180 : vector<16x32xf32> to vector<2x8x32xf32>
    %cst_72 = arith.constant dense<0.000000e+00> : vector<16x32xf32>
    %182 = tpu.matmul %171, %156, %cst_72 {dimension_numbers = #tpu.dot_dimension_numbers<[1], [0], [0], [1], [0, 0, 1, 1], [], []>} : vector<16x32xbf16>, vector<32x32xbf16>, vector<16x32xf32> -> vector<16x32xf32>
    %183 = vector.shape_cast %162 : vector<32xf32> to vector<1x32xf32>
    %184 = vector.broadcast %183 : vector<1x32xf32> to vector<16x32xf32>
    %185 = arith.addf %182, %184 : vector<16x32xf32>
    %186 = vector.shape_cast %185 : vector<16x32xf32> to vector<2x8x32xf32>
    %187 = arith.truncf %176 : vector<2x8x32xf32> to vector<2x8x32xbf16>
    %188 = arith.truncf %181 : vector<2x8x32xf32> to vector<2x8x32xbf16>
    "tpu.trace_start"() <{level = 10 : i32, message = "bqd,bkd->bqk"}> : () -> ()
    %cst_73 = arith.constant dense<0.000000e+00> : vector<2x8x8xf32>
    %189 = tpu.matmul %187, %188, %cst_73 {dimension_numbers = #tpu.dot_dimension_numbers<[2], [2], [1], [1], [0, 0, 0, 1, 1, 1], [0], [0]>} : vector<2x8x32xbf16>, vector<2x8x32xbf16>, vector<2x8x8xf32> -> vector<2x8x8xf32>
    "tpu.trace_stop"() : () -> ()
    %cst_74 = arith.constant 0.176776692 : f32
    %190 = vector.broadcast %cst_74 : f32 to vector<2x8x8xf32>
    %191 = arith.mulf %189, %190 : vector<2x8x8xf32>
    %cst_75 = arith.constant dense<0xFF800000> : vector<2x8xf32>
    %192 = vector.multi_reduction <maximumf>, %191, %cst_75 [2] : vector<2x8x8xf32> to vector<2x8xf32>
    %193 = vector.shape_cast %192 : vector<2x8xf32> to vector<2x8x1xf32>
    %194 = vector.broadcast %193 : vector<2x8x1xf32> to vector<2x8x8xf32>
    %195 = arith.subf %191, %194 : vector<2x8x8xf32>
    %196 = math.exp %195 : vector<2x8x8xf32>
    %cst_76 = arith.constant dense<0.000000e+00> : vector<2x8xf32>
    %197 = vector.multi_reduction <add>, %196, %cst_76 [2] : vector<2x8x8xf32> to vector<2x8xf32>
    %198 = vector.shape_cast %197 : vector<2x8xf32> to vector<2x8x1xf32>
    %199 = tpu.reciprocal %198 {approx = true} : vector<2x8x1xf32> -> vector<2x8x1xf32>
    %200 = vector.broadcast %199 : vector<2x8x1xf32> to vector<2x8x8xf32>
    %201 = arith.mulf %196, %200 : vector<2x8x8xf32>
    %202 = arith.truncf %201 : vector<2x8x8xf32> to vector<2x8x8xbf16>
    %203 = arith.truncf %186 : vector<2x8x32xf32> to vector<2x8x32xbf16>
    "tpu.trace_start"() <{level = 10 : i32, message = "bqk,bkd->bqd"}> : () -> ()
    %cst_77 = arith.constant dense<0.000000e+00> : vector<2x8x32xf32>
    %204 = tpu.matmul %202, %203, %cst_77 {dimension_numbers = #tpu.dot_dimension_numbers<[2], [1], [1], [2], [0, 0, 0, 1, 1, 2], [0], [0]>} : vector<2x8x8xbf16>, vector<2x8x32xbf16>, vector<2x8x32xf32> -> vector<2x8x32xf32>
    "tpu.trace_stop"() : () -> ()
    %205 = vector.shape_cast %204 : vector<2x8x32xf32> to vector<16x32xf32>
    %206 = arith.truncf %205 : vector<16x32xf32> to vector<16x32xbf16>
    %cst_78 = arith.constant dense<0.000000e+00> : vector<16x32xf32>
    %207 = tpu.matmul %206, %164, %cst_78 {dimension_numbers = #tpu.dot_dimension_numbers<[1], [0], [0], [1], [0, 0, 1, 1], [], []>} : vector<16x32xbf16>, vector<32x32xbf16>, vector<16x32xf32> -> vector<16x32xf32>
    %208 = vector.shape_cast %140 : vector<32xf32> to vector<1x32xf32>
    %209 = vector.broadcast %208 : vector<1x32xf32> to vector<16x32xf32>
    %210 = arith.addf %207, %209 : vector<16x32xf32>
    %211 = arith.addf %138, %210 : vector<16x32xf32>
    %cst_79 = arith.constant dense<0.000000e+00> : vector<16xf32>
    %212 = vector.multi_reduction <add>, %211, %cst_79 [1] : vector<16x32xf32> to vector<16xf32>
    %213 = vector.shape_cast %212 : vector<16xf32> to vector<16x1xf32>
    %cst_80 = arith.constant 3.200000e+01 : f32
    %214 = vector.broadcast %cst_80 : f32 to vector<16x1xf32>
    %215 = arith.divf %213, %214 : vector<16x1xf32>
    %216 = vector.broadcast %215 : vector<16x1xf32> to vector<16x32xf32>
    %217 = arith.subf %211, %216 : vector<16x32xf32>
    %218 = arith.mulf %217, %217 : vector<16x32xf32>
    %cst_81 = arith.constant dense<0.000000e+00> : vector<16xf32>
    %219 = vector.multi_reduction <add>, %218, %cst_81 [1] : vector<16x32xf32> to vector<16xf32>
    %220 = vector.shape_cast %219 : vector<16xf32> to vector<16x1xf32>
    %cst_82 = arith.constant 3.200000e+01 : f32
    %221 = vector.broadcast %cst_82 : f32 to vector<16x1xf32>
    %222 = arith.divf %220, %221 : vector<16x1xf32>
    %223 = vector.broadcast %215 : vector<16x1xf32> to vector<16x32xf32>
    %224 = arith.subf %211, %223 : vector<16x32xf32>
    %cst_83 = arith.constant 9.99999974E-6 : f32
    %225 = vector.broadcast %cst_83 : f32 to vector<16x1xf32>
    %226 = arith.addf %222, %225 : vector<16x1xf32>
    %227 = math.rsqrt %226 : vector<16x1xf32>
    %228 = vector.broadcast %227 : vector<16x1xf32> to vector<16x32xf32>
    %229 = arith.mulf %224, %228 : vector<16x32xf32>
    %230 = vector.shape_cast %142 : vector<32xf32> to vector<1x32xf32>
    %231 = vector.broadcast %230 : vector<1x32xf32> to vector<16x32xf32>
    %232 = arith.mulf %229, %231 : vector<16x32xf32>
    %233 = vector.shape_cast %144 : vector<32xf32> to vector<1x32xf32>
    %234 = vector.broadcast %233 : vector<1x32xf32> to vector<16x32xf32>
    %235 = arith.addf %232, %234 : vector<16x32xf32>
    %236 = arith.truncf %235 : vector<16x32xf32> to vector<16x32xbf16>
    %cst_84 = arith.constant dense<0.000000e+00> : vector<16x2048xf32>
    %237 = tpu.matmul %236, %166, %cst_84 {dimension_numbers = #tpu.dot_dimension_numbers<[1], [0], [0], [1], [0, 0, 1, 1], [], []>} : vector<16x32xbf16>, vector<32x2048xbf16>, vector<16x2048xf32> -> vector<16x2048xf32>
    %238 = vector.shape_cast %168 : vector<2048xf32> to vector<1x2048xf32>
    %239 = vector.broadcast %238 : vector<1x2048xf32> to vector<16x2048xf32>
    %240 = arith.addf %237, %239 : vector<16x2048xf32>
    %cst_85 = arith.constant 0.000000e+00 : f32
    %241 = vector.broadcast %cst_85 : f32 to vector<16x2048xf32>
    %242 = arith.maximumf %240, %241 : vector<16x2048xf32>
    %243 = arith.truncf %242 : vector<16x2048xf32> to vector<16x2048xbf16>
    %cst_86 = arith.constant dense<0.000000e+00> : vector<16x32xf32>
    %244 = tpu.matmul %243, %170, %cst_86 {dimension_numbers = #tpu.dot_dimension_numbers<[1], [0], [0], [1], [0, 0, 1, 1], [], []>} : vector<16x2048xbf16>, vector<2048x32xbf16>, vector<16x32xf32> -> vector<16x32xf32>
    %245 = vector.shape_cast %146 : vector<32xf32> to vector<1x32xf32>
    %246 = vector.broadcast %245 : vector<1x32xf32> to vector<16x32xf32>
    %247 = arith.addf %244, %246 : vector<16x32xf32>
    %248 = arith.addf %235, %247 : vector<16x32xf32>
    %cst_87 = arith.constant dense<0.000000e+00> : vector<16xf32>
    %249 = vector.multi_reduction <add>, %248, %cst_87 [1] : vector<16x32xf32> to vector<16xf32>
    %250 = vector.shape_cast %249 : vector<16xf32> to vector<16x1xf32>
    %cst_88 = arith.constant 3.200000e+01 : f32
    %251 = vector.broadcast %cst_88 : f32 to vector<16x1xf32>
    %252 = arith.divf %250, %251 : vector<16x1xf32>
    %253 = vector.broadcast %252 : vector<16x1xf32> to vector<16x32xf32>
    %254 = arith.subf %248, %253 : vector<16x32xf32>
    %255 = arith.mulf %254, %254 : vector<16x32xf32>
    %cst_89 = arith.constant dense<0.000000e+00> : vector<16xf32>
    %256 = vector.multi_reduction <add>, %255, %cst_89 [1] : vector<16x32xf32> to vector<16xf32>
    %257 = vector.shape_cast %256 : vector<16xf32> to vector<16x1xf32>
    %cst_90 = arith.constant 3.200000e+01 : f32
    %258 = vector.broadcast %cst_90 : f32 to vector<16x1xf32>
    %259 = arith.divf %257, %258 : vector<16x1xf32>
    %260 = vector.broadcast %252 : vector<16x1xf32> to vector<16x32xf32>
    %261 = arith.subf %248, %260 : vector<16x32xf32>
    %cst_91 = arith.constant 9.99999974E-6 : f32
    %262 = vector.broadcast %cst_91 : f32 to vector<16x1xf32>
    %263 = arith.addf %259, %262 : vector<16x1xf32>
    %264 = math.rsqrt %263 : vector<16x1xf32>
    %265 = vector.broadcast %264 : vector<16x1xf32> to vector<16x32xf32>
    %266 = arith.mulf %261, %265 : vector<16x32xf32>
    %267 = vector.shape_cast %148 : vector<32xf32> to vector<1x32xf32>
    %268 = vector.broadcast %267 : vector<1x32xf32> to vector<16x32xf32>
    %269 = arith.mulf %266, %268 : vector<16x32xf32>
    %270 = vector.shape_cast %150 : vector<32xf32> to vector<1x32xf32>
    %271 = vector.broadcast %270 : vector<1x32xf32> to vector<16x32xf32>
    %272 = arith.addf %269, %271 : vector<16x32xf32>
    %273 = vector.extract_strided_slice %2 {offsets = [12, 0], sizes = [1, 32], strides = [1, 1]} : vector<13x32xf32> to vector<1x32xf32>
    %274 = vector.shape_cast %273 : vector<1x32xf32> to vector<32xf32>
    %c0_92 = arith.constant 0 : index
    %275 = memref.load %arg9[%c0_92] : memref<3xf32, #tpu.memory_space<smem>>
    %c1_93 = arith.constant 1 : index
    %276 = memref.load %arg9[%c1_93] : memref<3xf32, #tpu.memory_space<smem>>
    %c2_94 = arith.constant 2 : index
    %277 = memref.load %arg9[%c2_94] : memref<3xf32, #tpu.memory_space<smem>>
    %278 = vector.shape_cast %272 : vector<16x32xf32> to vector<2x8x32xf32>
    %279 = vector.shape_cast %274 : vector<32xf32> to vector<1x1x32xf32>
    %280 = vector.broadcast %279 : vector<1x1x32xf32> to vector<2x8x32xf32>
    %281 = arith.mulf %278, %280 : vector<2x8x32xf32>
    %cst_95 = arith.constant dense<0.000000e+00> : vector<2x8xf32>
    %282 = vector.multi_reduction <add>, %281, %cst_95 [2] : vector<2x8x32xf32> to vector<2x8xf32>
    %283 = vector.broadcast %275 : f32 to vector<2x8xf32>
    %284 = arith.addf %282, %283 : vector<2x8xf32>
    %285 = vector.broadcast %277 : f32 to vector<2x8xf32>
    %286 = arith.mulf %285, %284 : vector<2x8xf32>
    %287 = vector.broadcast %276 : f32 to vector<2x8xf32>
    %288 = arith.subf %286, %287 : vector<2x8xf32>
    %289 = arith.negf %288 : vector<2x8xf32>
    %290 = math.exp %289 : vector<2x8xf32>
    %cst_96 = arith.constant 1.000000e+00 : f32
    %291 = vector.broadcast %cst_96 : f32 to vector<2x8xf32>
    %292 = arith.addf %291, %290 : vector<2x8xf32>
    %293 = arith.divf %291, %292 : vector<2x8xf32>
    %c0_97 = arith.constant 0 : index
    %c0_98 = arith.constant 0 : index
    %294 = vector.load %arg10[%c0_97, %c0_98] : memref<2x8xf32, #tpu.memory_space<vmem>>, vector<2x8xf32>
    tpu.vector_store %arg10[%c0_97, %c0_98], %293 {strides = array<i32>} : memref<2x8xf32, #tpu.memory_space<vmem>>, vector<2x8xf32>,
    return
  }
  func.func @transform_0(%arg0: i32) -> (i32, i32, i32) {
    %c0_i32 = arith.constant 0 : i32
    %c0_i32_0 = arith.constant 0 : i32
    %c0_i32_1 = arith.constant 0 : i32
    return %arg0, %c0_i32, %c0_i32_0 : i32, i32, i32
  }
  func.func @transform_1(%arg0: i32) -> (i32, i32, i32, i32) {
    %c0_i32 = arith.constant 0 : i32
    %c0_i32_0 = arith.constant 0 : i32
    %c0_i32_1 = arith.constant 0 : i32
    %c0_i32_2 = arith.constant 0 : i32
    %c0_i32_3 = arith.constant 0 : i32
    return %c0_i32, %c0_i32_0, %c0_i32_1, %c0_i32_2 : i32, i32, i32, i32
  }
  func.func @transform_2(%arg0: i32) -> (i32, i32, i32) {
    %c0_i32 = arith.constant 0 : i32
    %c0_i32_0 = arith.constant 0 : i32
    %c0_i32_1 = arith.constant 0 : i32
    %c0_i32_2 = arith.constant 0 : i32
    return %c0_i32, %c0_i32_0, %c0_i32_1 : i32, i32, i32
  }
  func.func @transform_3(%arg0: i32) -> (i32, i32, i32) {
    %c0_i32 = arith.constant 0 : i32
    %c0_i32_0 = arith.constant 0 : i32
    %c0_i32_1 = arith.constant 0 : i32
    %c0_i32_2 = arith.constant 0 : i32
    return %c0_i32, %c0_i32_0, %c0_i32_1 : i32, i32, i32
  }
  func.func @transform_4(%arg0: i32) -> (i32, i32, i32) {
    %c0_i32 = arith.constant 0 : i32
    %c0_i32_0 = arith.constant 0 : i32
    %c0_i32_1 = arith.constant 0 : i32
    %c0_i32_2 = arith.constant 0 : i32
    return %c0_i32, %c0_i32_0, %c0_i32_1 : i32, i32, i32
  }
  func.func @transform_5(%arg0: i32) -> (i32, i32, i32) {
    %c0_i32 = arith.constant 0 : i32
    %c0_i32_0 = arith.constant 0 : i32
    %c0_i32_1 = arith.constant 0 : i32
    %c0_i32_2 = arith.constant 0 : i32
    return %c0_i32, %c0_i32_0, %c0_i32_1 : i32, i32, i32
  }
  func.func @transform_6(%arg0: i32) -> (i32, i32) {
    %c0_i32 = arith.constant 0 : i32
    %c0_i32_0 = arith.constant 0 : i32
    %c0_i32_1 = arith.constant 0 : i32
    return %c0_i32, %c0_i32_0 : i32, i32
  }
  func.func @transform_7(%arg0: i32) -> (i32, i32) {
    %c0_i32 = arith.constant 0 : i32
    %c0_i32_0 = arith.constant 0 : i32
    %c0_i32_1 = arith.constant 0 : i32
    return %c0_i32, %c0_i32_0 : i32, i32
  }
  func.func @transform_8(%arg0: i32) -> i32 {
    %c0_i32 = arith.constant 0 : i32
    %c0_i32_0 = arith.constant 0 : i32
    return %c0_i32 : i32
  }
  func.func @transform_9(%arg0: i32) -> (i32, i32) {
    %c0_i32 = arith.constant 0 : i32
    %c0_i32_0 = arith.constant 0 : i32
    return %arg0, %c0_i32 : i32, i32
  }
}

</mosaic_0001>

<llo_original>
// kernel: tpu_custom_call.1
$region0: #{tpu_custom_call.1}
  #allocation0 [shape = 'u32[]', space=smem, size = 0x4, offset = 0x4, fixed_abs, tag = 'smem constant byte address 0x4 - core index']
  #allocation1 [shape = 'u32[72,128]{1,0:T(1,128)}', space=vmem, size = 0x9000, scoped, tag = 'internal scratch']
  %s0 = inlined_call_operand.hbm [shape: f32[8,128], index: 0, kind: input, shape index: {}]
  %s1 = inlined_call_operand.hbm [shape: f32[16,128], index: 1, kind: output, shape index: {}]
  %s2 = sld [smem:[#allocation0]]
  $region41: #{tpu_custom_call.1} parent=0
    _
  %s4 = ssub.s32 1, %s2
  %s5 = scalar_select 0, %s4, %s2
  $region1: #{tpu_custom_call.1} parent=0
    #allocation2 [shape = 'u8[4096]{0}', space=vmem, size = 0x1000, scoped, tag = 'input window, operand 0, single buffered']
    #allocation3 [shape = 's32[2]{0}', space=sflag, size = 0x8, scoped, tag = 'scoped memory for tpu_custom_call.1']
    #allocation4 [shape = 's32[2]{0}', space=sflag, size = 0x8, scoped, tag = 'scoped memory for tpu_custom_call.1']
    #allocation5 [shape = 'u8[8192]{0}', space=vmem, size = 0x2000, scoped, tag = 'output window, operand 0']
    %6 = vsyncpa [#allocation3], 0
    %7 = vsyncpa [#allocation4], 0
    %s8 = scalar_lea.sflag [#allocation4], 1
    %9 = vsyncpa %s8, 0
    loop: start=0, step=1, limit=4
    $region2: #{tpu_custom_call.1} parent=1 // loop_pre_header
      _
    $region3: #{tpu_custom_call.1} parent=1 // loop_header
      %s11 = sphi 0, %s15
      %p12 = scmp.ge.s32.totalorder %s11, 4
      %s19 = sphi 0, %s19
      %s21 = sphi 0, %s19
      %s22 = sphi 0, %s21
      %s36 = sphi 0, %s22
      %s42 = sphi 0, %s44
      %s45 = sphi 0, %s42
      %s46 = sphi 0, %s45
      %s62 = sphi 0, %s46
    $region4: #{tpu_custom_call.1} parent=1 // loop_header_branch
      %14 = sbr.rel (%p12) target = $region8
    $region5: #{tpu_custom_call.1} parent=1 // loop_body
      %s16 = ssub.s32 %s11, 1
      %s17 = ssub.s32 %s11, 2
      %s18 = sadd.s32 %s11, 1
      %s20 = sadd.s32 %s19, 1
      %p23 = scmp.eq.s32.totalorder %s11, 1
      %p24 = scmp.ne.s32.totalorder %s19, %s21
      %p25 = scmp.eq.s32.totalorder %s11, 0
      %p26 = por %p24, %p25
      %p27 = scmp.ne.s32.totalorder %s19, %s21
      %p28 = scmp.eq.s32.totalorder %s16, 1
      %p29 = por %p27, %p28
      %p30 = scmp.ne.s32.totalorder %s21, %s22
      %p31 = scmp.eq.s32.totalorder %s16, 0
      %p32 = por %p30, %p31
      %p33 = scmp.ne.s32.totalorder %s21, %s22
      %p34 = scmp.eq.s32.totalorder %s17, 1
      %p35 = por %p33, %p34
      %p37 = scmp.ne.s32.totalorder %s22, %s36
      %p38 = scmp.eq.s32.totalorder %s17, 0
      %p39 = por %p37, %p38
      %s40 = ssub.s32 %s11, %s18
      %p41 = scmp.eq.s32.totalorder %s40, 0
      %s43 = sadd.s32 %s42, 1
      %s44 = scalar_select %p41, %s42, %s43
      %p47 = pneg %p41
      %p48 = scmp.eq.s32.totalorder %s11, 1
      %p49 = por %p47, %p48
      %p50 = scmp.ne.s32.totalorder %s42, %s45
      %p51 = scmp.eq.s32.totalorder %s11, 0
      %p52 = por %p50, %p51
      %p53 = scmp.ne.s32.totalorder %s42, %s45
      %p54 = scmp.eq.s32.totalorder %s16, 1
      %p55 = por %p53, %p54
      %p56 = scmp.ne.s32.totalorder %s45, %s46
      %p57 = scmp.eq.s32.totalorder %s16, 0
      %p58 = por %p56, %p57
      %p59 = scmp.ne.s32.totalorder %s45, %s46
      %p60 = scmp.eq.s32.totalorder %s17, 1
      %p61 = por %p59, %p60
      %p63 = scmp.ne.s32.totalorder %s46, %s62
      %p64 = scmp.eq.s32.totalorder %s17, 0
      %p65 = por %p63, %p64
      %p66 = scmp.le.s32.totalorder 1, %s11
      %p67 = scmp.lt.s32.totalorder %s11, 3
      %p68 = pnand %p66, %p67
      %p69 = pneg %p68
      // Predicated region
      $region9: #{tpu_custom_call.1} parent=5 // pred_check
        _
      $region10: #{tpu_custom_call.1} parent=5 // pred_check_branch
        %71 = sbr.rel (%p68) target = $region12
      $region11: #{tpu_custom_call.1} parent=5 // pred_region
        %s72 = ssub.s32 %s11, 1
        // Predicated region
        $region13: #{tpu_custom_call.1} parent=11 // pred_check
          %p73 = pneg %p32
        $region14: #{tpu_custom_call.1} parent=11 // pred_check_branch
          %75 = sbr.rel (%p73) target = $region16
        $region15: #{tpu_custom_call.1} parent=11 // pred_region
          %77 = vsyncadd [#allocation3], 0
          %s79 = sshll.u32 %s0, 4
          %s80 = int_to_ptr.hbm [resolvable:$true] %s79
          %s81 = sshll.u32 [#allocation2], 4
          %s82 = int_to_ptr.vmem [resolvable:$true] %s81
          %84 = dma.hbm_to_vmem [thread:$0]  %s80, 128, %s82, [#allocation3]
        $region16: #{tpu_custom_call.1} parent=11 // pred_fallthru
          _
      $region12: #{tpu_custom_call.1} parent=5 // pred_fallthru
        _
      %p85 = scmp.lt.s32.totalorder %s11, 2
      // Predicated region
      $region17: #{tpu_custom_call.1} parent=5 // pred_check
        %p86 = pneg %p85
      $region18: #{tpu_custom_call.1} parent=5 // pred_check_branch
        %88 = sbr.rel (%p86) target = $region20
      $region19: #{tpu_custom_call.1} parent=5 // pred_region
        _
      $region20: #{tpu_custom_call.1} parent=5 // pred_fallthru
        _
      %p89 = scmp.le.s32.totalorder 1, %s11
      %p90 = scmp.lt.s32.totalorder %s11, 3
      %p91 = pnand %p89, %p90
      %p92 = pneg %p91
      // Predicated region
      $region21: #{tpu_custom_call.1} parent=5 // pred_check
        _
      $region22: #{tpu_custom_call.1} parent=5 // pred_check_branch
        %94 = sbr.rel (%p91) target = $region24
      $region23: #{tpu_custom_call.1} parent=5 // pred_region
        %s95 = ssub.s32 %s11, 1
        // Predicated region
        $region25: #{tpu_custom_call.1} parent=23 // pred_check
          %p96 = pneg %p32
        $region26: #{tpu_custom_call.1} parent=23 // pred_check_branch
          %98 = sbr.rel (%p96) target = $region28
        $region27: #{tpu_custom_call.1} parent=23 // pred_region
          %100 = dma.done [#allocation3], 128
        $region28: #{tpu_custom_call.1} parent=23 // pred_fallthru
          _
        %p101 = pneg %p32
        %p102 = pneg %p29
        %p103 = pneg %p58
        %p104 = pneg %p55
        %s105 = sand.u32 %s45, 1
        %s106 = scalar_lea.sflag [#allocation4], %s105
        %s107 = sand.u32 %s45, 1
        %s108 = smul.addr %s107, 8
        %s109 = scalar_lea.vmem [#allocation5], %s108
        %v110 = vld [vmem:[#allocation2] sm:$0xff]
        %v111 = vadd.f32 %v110, 1.0
        %112 = vst [vmem:[%s109] sm:$0xff] %v111
        %s113 = sand.u32 %s45, 1
        %s114 = scalar_lea.sflag [#allocation4], %s113
        %s115 = sand.u32 %s45, 1
        %s116 = smul.addr %s115, 8
        %s117 = scalar_lea.vmem [#allocation5], %s116
        // Predicated region
        $region29: #{tpu_custom_call.1} parent=23 // pred_check
          %p118 = pneg %p55
        $region30: #{tpu_custom_call.1} parent=23 // pred_check_branch
          %120 = sbr.rel (%p118) target = $region32
        $region31: #{tpu_custom_call.1} parent=23 // pred_region
          %122 = vsyncadd %s114, 0
          %s123 = smul.addr %s16, 8
          %s124 = scalar_lea.hbm %s1, %s123
          %s126 = sshll.u32 %s117, 4
          %s127 = int_to_ptr.vmem [resolvable:$true] %s126
          %s128 = sshll.u32 %s124, 4
          %s129 = int_to_ptr.hbm [resolvable:$true] %s128
          %131 = dma.vmem_to_hbm [thread:$0]  %s127, 128, %s129, %s114
        $region32: #{tpu_custom_call.1} parent=23 // pred_fallthru
          _
      $region24: #{tpu_custom_call.1} parent=5 // pred_fallthru
        _
      %p132 = scmp.le.s32.totalorder 2, %s11
      // Predicated region
      $region33: #{tpu_custom_call.1} parent=5 // pred_check
        %p133 = pneg %p132
      $region34: #{tpu_custom_call.1} parent=5 // pred_check_branch
        %135 = sbr.rel (%p133) target = $region36
      $region35: #{tpu_custom_call.1} parent=5 // pred_region
        %s136 = ssub.s32 %s11, 2
        // Predicated region
        $region37: #{tpu_custom_call.1} parent=35 // pred_check
          %p137 = pneg %p61
        $region38: #{tpu_custom_call.1} parent=35 // pred_check_branch
          %139 = sbr.rel (%p137) target = $region40
        $region39: #{tpu_custom_call.1} parent=35 // pred_region
          %s140 = sand.u32 %s46, 1
          %s141 = scalar_lea.sflag [#allocation4], %s140
          %s142 = sand.u32 %s46, 1
          %s143 = smul.addr %s142, 8
          %s144 = scalar_lea.vmem [#allocation5], %s143
          %146 = dma.done %s141, 128
        $region40: #{tpu_custom_call.1} parent=35 // pred_fallthru
          _
      $region36: #{tpu_custom_call.1} parent=5 // pred_fallthru
        _
    $region6: #{tpu_custom_call.1} parent=1 // loop_footer
      %s15 = sadd.s32 1, %s11
    $region7: #{tpu_custom_call.1} parent=1 // loop_footer_branch
      %10 = sbr.rel target = $region3
    $region8: #{tpu_custom_call.1} parent=1 // loop_exit
      _
    %147 = vsyncpa [#allocation3], 1
    %s148 = scalar_lea.sflag [#allocation3], 1
    %149 = vsyncpa %s148, 1
    %150 = vsyncpa [#allocation4], 1
    %s151 = scalar_lea.sflag [#allocation4], 1
    %152 = vsyncpa %s151, 1

// kernel: transformer_model_forward.1
$region0: #{transformer_model_forward.1}
  #allocation0 [shape = 'u32[]', space=smem, size = 0x4, offset = 0x4, fixed_abs, tag = 'smem constant byte address 0x4 - core index']
  #allocation1 [shape = 'u32[72,128]{1,0:T(1,128)}', space=vmem, size = 0x9000, scoped, tag = 'internal scratch']
  #allocation2 [shape = 'f32[16,32]{1,0:T(8,128)}', space=vmem, size = 0x2000, scoped, tag = 'scratch operand']
  %s0 = inlined_call_operand.vmem [shape: f32[2,8,32], index: 0, kind: input, shape index: {}]
  %s1 = inlined_call_operand.vmem [shape: bf16[2,3,32,32], index: 1, kind: input, shape index: {}]
  %s2 = inlined_call_operand.vmem [shape: bf16[2,32,32], index: 2, kind: input, shape index: {}]
  %s3 = inlined_call_operand.vmem [shape: bf16[2,32,2048], index: 3, kind: input, shape index: {}]
  %s4 = inlined_call_operand.vmem [shape: bf16[2,2048,32], index: 4, kind: input, shape index: {}]
  %s5 = inlined_call_operand.vmem [shape: f32[2,3,32], index: 5, kind: input, shape index: {}]
  %s6 = inlined_call_operand.vmem [shape: f32[2,2048], index: 6, kind: input, shape index: {}]
  %s7 = inlined_call_operand.vmem [shape: f32[13,32], index: 7, kind: input, shape index: {}]
  %s8 = inlined_call_operand.vmem [shape: f32[3], index: 8, kind: input, shape index: {}]
  %s9 = inlined_call_operand.hbm [shape: f32[2,8], index: 9, kind: output, shape index: {}]
  %s10 = sld [smem:[#allocation0]]
  $region50: #{transformer_model_forward.1} parent=0
    _
  %s12 = ssub.s32 1, %s10
  %s13 = scalar_select 0, %s12, %s10
  $region1: #{transformer_model_forward.1} parent=0
    #allocation3 [shape = 'u8[512]{0}', space=smem, size = 0x200, scoped, tag = 'input window, operand 8, single buffered']
    #allocation4 [shape = 's32[1]{0}', space=sflag, size = 0x4, scoped, tag = 'scoped memory for transformer_model_forward.1']
    #allocation5 [shape = 's32[1]{0}', space=sflag, size = 0x4, scoped, tag = 'scoped memory for transformer_model_forward.1']
    #allocation6 [shape = 'u8[1024]{0}', space=vmem, size = 0x400, scoped, tag = 'output window, operand 0, single buffered']
    %14 = vsyncpa [#allocation5], 0
    %15 = vsyncpa [#allocation4], 0
    // Predicated region
    $region2: #{transformer_model_forward.1} parent=1 // pred_check
      _
    $region3: #{transformer_model_forward.1} parent=1 // pred_check_branch
      %17 = sbr.rel (0) target = $region5
    $region4: #{transformer_model_forward.1} parent=1 // pred_region
      _
    $region5: #{transformer_model_forward.1} parent=1 // pred_fallthru
      _
    // Predicated region
    $region6: #{transformer_model_forward.1} parent=1 // pred_check
      _
    $region7: #{transformer_model_forward.1} parent=1 // pred_check_branch
      %19 = sbr.rel (0) target = $region9
    $region8: #{transformer_model_forward.1} parent=1 // pred_region
      _
    $region9: #{transformer_model_forward.1} parent=1 // pred_fallthru
      _
    // Predicated region
    $region10: #{transformer_model_forward.1} parent=1 // pred_check
      _
    $region11: #{transformer_model_forward.1} parent=1 // pred_check_branch
      %21 = sbr.rel (0) target = $region13
    $region12: #{transformer_model_forward.1} parent=1 // pred_region
      _
    $region13: #{transformer_model_forward.1} parent=1 // pred_fallthru
      _
    // Predicated region
    $region14: #{transformer_model_forward.1} parent=1 // pred_check
      _
    $region15: #{transformer_model_forward.1} parent=1 // pred_check_branch
      %23 = sbr.rel (0) target = $region17
    $region16: #{transformer_model_forward.1} parent=1 // pred_region
      _
    $region17: #{transformer_model_forward.1} parent=1 // pred_fallthru
      _
    // Predicated region
    $region18: #{transformer_model_forward.1} parent=1 // pred_check
      _
    $region19: #{transformer_model_forward.1} parent=1 // pred_check_branch
      %25 = sbr.rel (0) target = $region21
    $region20: #{transformer_model_forward.1} parent=1 // pred_region
      _
    $region21: #{transformer_model_forward.1} parent=1 // pred_fallthru
      _
    // Predicated region
    $region22: #{transformer_model_forward.1} parent=1 // pred_check
      _
    $region23: #{transformer_model_forward.1} parent=1 // pred_check_branch
      %27 = sbr.rel (0) target = $region25
    $region24: #{transformer_model_forward.1} parent=1 // pred_region
      _
    $region25: #{transformer_model_forward.1} parent=1 // pred_fallthru
      _
    // Predicated region
    $region26: #{transformer_model_forward.1} parent=1 // pred_check
      _
    $region27: #{transformer_model_forward.1} parent=1 // pred_check_branch
      %29 = sbr.rel (0) target = $region29
    $region28: #{transformer_model_forward.1} parent=1 // pred_region
      _
    $region29: #{transformer_model_forward.1} parent=1 // pred_fallthru
      _
    // Predicated region
    $region30: #{transformer_model_forward.1} parent=1 // pred_check
      _
    $region31: #{transformer_model_forward.1} parent=1 // pred_check_branch
      %31 = sbr.rel (0) target = $region33
    $region32: #{transformer_model_forward.1} parent=1 // pred_region
      _
    $region33: #{transformer_model_forward.1} parent=1 // pred_fallthru
      _
    // Predicated region
    $region34: #{transformer_model_forward.1} parent=1 // pred_check
      _
    $region35: #{transformer_model_forward.1} parent=1 // pred_check_branch
      %33 = sbr.rel (0) target = $region37
    $region36: #{transformer_model_forward.1} parent=1 // pred_region
      %35 = vsyncadd [#allocation5], 0
      %s37 = sshll.u32 %s8, 4
      %s38 = int_to_ptr.vmem [resolvable:$true] %s37
      %40 = dma.vmem_to_smem %s38, 16, [#allocation3], [#allocation5]
    $region37: #{transformer_model_forward.1} parent=1 // pred_fallthru
      _
    // Predicated region
    $region38: #{transformer_model_forward.1} parent=1 // pred_check
      _
    $region39: #{transformer_model_forward.1} parent=1 // pred_check_branch
      %42 = sbr.rel (0) target = $region41
    $region40: #{transformer_model_forward.1} parent=1 // pred_region
      %44 = dma.done [#allocation5], 16
    $region41: #{transformer_model_forward.1} parent=1 // pred_fallthru
      _
    %45 = sfence
    %v47 = vld [vmem:[%s0] sm:$0xff]
    %v48 = vld [vmem:[%s0 + $0x8] sm:$0xff]
    %v49 = vld [vmem:[%s7] sm:$0xff]
    %v50 = vld [vmem:[%s7 + $0x8] sm:$0x1f]
    %v51 = vld [vmem:[%s5] sm:$0x7]
    %v52 = vld [vmem:[%s5 + $0x4] sm:$0x7]
    %v53 = vld [vmem:[%s6] sm:$0xff]
    %v54 = vld [vmem:[%s6 + $0x8] sm:$0xff]
    %v55 = vld [vmem:[%s6 + $0x10] sm:$0xff]
    %v56 = vld [vmem:[%s6 + $0x18] sm:$0xff]
    %v57 = vld [vmem:[%s1] sm:$0xf]
    %v58 = vld [vmem:[%s1 + $0x4] sm:$0xf]
    %v59 = vld [vmem:[%s1 + $0x8] sm:$0xf]
    %v60 = vld [vmem:[%s1 + $0xc] sm:$0xf]
    %s61 = scalar_lea.vmem %s1, 16
    %v62 = vld [vmem:[%s61] sm:$0xf]
    %v63 = vld [vmem:[%s61 + $0x4] sm:$0xf]
    %v64 = vld [vmem:[%s61 + $0x8] sm:$0xf]
    %v65 = vld [vmem:[%s61 + $0xc] sm:$0xf]
    %s66 = scalar_lea.vmem %s1, 32
    %v67 = vld [vmem:[%s66] sm:$0xf]
    %v68 = vld [vmem:[%s66 + $0x4] sm:$0xf]
    %v69 = vld [vmem:[%s66 + $0x8] sm:$0xf]
    %v70 = vld [vmem:[%s66 + $0xc] sm:$0xf]
    %v71 = vld [vmem:[%s2] sm:$0xf]
    %v72 = vld [vmem:[%s2 + $0x4] sm:$0xf]
    %v73 = vld [vmem:[%s2 + $0x8] sm:$0xf]
    %v74 = vld [vmem:[%s2 + $0xc] sm:$0xf]
    %v75 = vld [vmem:[%s3] sm:$0xff]
    %v76 = vld [vmem:[%s3 + $0x8] sm:$0xff]
    %v77 = vld [vmem:[%s3 + $0x10] sm:$0xff]
    %v78 = vld [vmem:[%s3 + $0x18] sm:$0xff]
    %v79 = vld [vmem:[%s3 + $0x20] sm:$0xff]
    %v80 = vld [vmem:[%s3 + $0x28] sm:$0xff]
    %v81 = vld [vmem:[%s3 + $0x30] sm:$0xff]
    %v82 = vld [vmem:[%s3 + $0x38] sm:$0xff]
    %v83 = vld [vmem:[%s3 + $0x40] sm:$0xff]
    %v84 = vld [vmem:[%s3 + $0x48] sm:$0xff]
    %v85 = vld [vmem:[%s3 + $0x50] sm:$0xff]
    %v86 = vld [vmem:[%s3 + $0x58] sm:$0xff]
    %v87 = vld [vmem:[%s3 + $0x60] sm:$0xff]
    %v88 = vld [vmem:[%s3 + $0x68] sm:$0xff]
    %v89 = vld [vmem:[%s3 + $0x70] sm:$0xff]
    %v90 = vld [vmem:[%s3 + $0x78] sm:$0xff]
    %v91 = vld [vmem:[%s3 + $0x80] sm:$0xff]
    %v92 = vld [vmem:[%s3 + $0x88] sm:$0xff]
    %v93 = vld [vmem:[%s3 + $0x90] sm:$0xff]
    %v94 = vld [vmem:[%s3 + $0x98] sm:$0xff]
    %v95 = vld [vmem:[%s3 + $0xa0] sm:$0xff]
    %v96 = vld [vmem:[%s3 + $0xa8] sm:$0xff]
    %v97 = vld [vmem:[%s3 + $0xb0] sm:$0xff]
    %v98 = vld [vmem:[%s3 + $0xb8] sm:$0xff]
    %v99 = vld [vmem:[%s3 + $0xc0] sm:$0xff]
    %v100 = vld [vmem:[%s3 + $0xc8] sm:$0xff]
    %v101 = vld [vmem:[%s3 + $0xd0] sm:$0xff]
    %v102 = vld [vmem:[%s3 + $0xd8] sm:$0xff]
    %v103 = vld [vmem:[%s3 + $0xe0] sm:$0xff]
    %v104 = vld [vmem:[%s3 + $0xe8] sm:$0xff]
    %v105 = vld [vmem:[%s3 + $0xf0] sm:$0xff]
    %v106 = vld [vmem:[%s3 + $0xf8] sm:$0xff]
    %v107 = vld [vmem:[%s4] sm:$0xf]
    %v108 = vld [vmem:[%s4 + $0x4] sm:$0xf]
    %v109 = vld [vmem:[%s4 + $0x8] sm:$0xf]
    %v110 = vld [vmem:[%s4 + $0xc] sm:$0xf]
    %v111 = vld [vmem:[%s4 + $0x10] sm:$0xf]
    %v112 = vld [vmem:[%s4 + $0x14] sm:$0xf]
    %v113 = vld [vmem:[%s4 + $0x18] sm:$0xf]
    %v114 = vld [vmem:[%s4 + $0x1c] sm:$0xf]
    %v115 = vld [vmem:[%s4 + $0x20] sm:$0xf]
    %v116 = vld [vmem:[%s4 + $0x24] sm:$0xf]
    %v117 = vld [vmem:[%s4 + $0x28] sm:$0xf]
    %v118 = vld [vmem:[%s4 + $0x2c] sm:$0xf]
    %v119 = vld [vmem:[%s4 + $0x30] sm:$0xf]
    %v120 = vld [vmem:[%s4 + $0x34] sm:$0xf]
    %v121 = vld [vmem:[%s4 + $0x38] sm:$0xf]
    %v122 = vld [vmem:[%s4 + $0x3c] sm:$0xf]
    %v123 = vld [vmem:[%s4 + $0x40] sm:$0xf]
    %v124 = vld [vmem:[%s4 + $0x44] sm:$0xf]
    %v125 = vld [vmem:[%s4 + $0x48] sm:$0xf]
    %v126 = vld [vmem:[%s4 + $0x4c] sm:$0xf]
    %v127 = vld [vmem:[%s4 + $0x50] sm:$0xf]
    %v128 = vld [vmem:[%s4 + $0x54] sm:$0xf]
    %v129 = vld [vmem:[%s4 + $0x58] sm:$0xf]
    %v130 = vld [vmem:[%s4 + $0x5c] sm:$0xf]
    %v131 = vld [vmem:[%s4 + $0x60] sm:$0xf]
    %v132 = vld [vmem:[%s4 + $0x64] sm:$0xf]
    %v133 = vld [vmem:[%s4 + $0x68] sm:$0xf]
    %v134 = vld [vmem:[%s4 + $0x6c] sm:$0xf]
    %v135 = vld [vmem:[%s4 + $0x70] sm:$0xf]
    %v136 = vld [vmem:[%s4 + $0x74] sm:$0xf]
    %v137 = vld [vmem:[%s4 + $0x78] sm:$0xf]
    %v138 = vld [vmem:[%s4 + $0x7c] sm:$0xf]
    %v139 = vld [vmem:[%s4 + $0x80] sm:$0xf]
    %v140 = vld [vmem:[%s4 + $0x84] sm:$0xf]
    %v141 = vld [vmem:[%s4 + $0x88] sm:$0xf]
    %v142 = vld [vmem:[%s4 + $0x8c] sm:$0xf]
    %v143 = vld [vmem:[%s4 + $0x90] sm:$0xf]
    %v144 = vld [vmem:[%s4 + $0x94] sm:$0xf]
    %v145 = vld [vmem:[%s4 + $0x98] sm:$0xf]
    %v146 = vld [vmem:[%s4 + $0x9c] sm:$0xf]
    %v147 = vld [vmem:[%s4 + $0xa0] sm:$0xf]
    %v148 = vld [vmem:[%s4 + $0xa4] sm:$0xf]
    %v149 = vld [vmem:[%s4 + $0xa8] sm:$0xf]
    %v150 = vld [vmem:[%s4 + $0xac] sm:$0xf]
    %v151 = vld [vmem:[%s4 + $0xb0] sm:$0xf]
    %v152 = vld [vmem:[%s4 + $0xb4] sm:$0xf]
    %v153 = vld [vmem:[%s4 + $0xb8] sm:$0xf]
    %v154 = vld [vmem:[%s4 + $0xbc] sm:$0xf]
    %v155 = vld [vmem:[%s4 + $0xc0] sm:$0xf]
    %v156 = vld [vmem:[%s4 + $0xc4] sm:$0xf]
    %v157 = vld [vmem:[%s4 + $0xc8] sm:$0xf]
    %v158 = vld [vmem:[%s4 + $0xcc] sm:$0xf]
    %v159 = vld [vmem:[%s4 + $0xd0] sm:$0xf]
    %v160 = vld [vmem:[%s4 + $0xd4] sm:$0xf]
    %v161 = vld [vmem:[%s4 + $0xd8] sm:$0xf]
    %v162 = vld [vmem:[%s4 + $0xdc] sm:$0xf]
    %v163 = vld [vmem:[%s4 + $0xe0] sm:$0xf]
    %v164 = vld [vmem:[%s4 + $0xe4] sm:$0xf]
    %v165 = vld [vmem:[%s4 + $0xe8] sm:$0xf]
    %v166 = vld [vmem:[%s4 + $0xec] sm:$0xf]
    %v167 = vld [vmem:[%s4 + $0xf0] sm:$0xf]
    %v168 = vld [vmem:[%s4 + $0xf4] sm:$0xf]
    %v169 = vld [vmem:[%s4 + $0xf8] sm:$0xf]
    %v170 = vld [vmem:[%s4 + $0xfc] sm:$0xf]
    %v171 = vld [vmem:[%s4 + $0x100] sm:$0xf]
    %v172 = vld [vmem:[%s4 + $0x104] sm:$0xf]
    %v173 = vld [vmem:[%s4 + $0x108] sm:$0xf]
    %v174 = vld [vmem:[%s4 + $0x10c] sm:$0xf]
    %v175 = vld [vmem:[%s4 + $0x110] sm:$0xf]
    %v176 = vld [vmem:[%s4 + $0x114] sm:$0xf]
    %v177 = vld [vmem:[%s4 + $0x118] sm:$0xf]
    %v178 = vld [vmem:[%s4 + $0x11c] sm:$0xf]
    %v179 = vld [vmem:[%s4 + $0x120] sm:$0xf]
    %v180 = vld [vmem:[%s4 + $0x124] sm:$0xf]
    %v181 = vld [vmem:[%s4 + $0x128] sm:$0xf]
    %v182 = vld [vmem:[%s4 + $0x12c] sm:$0xf]
    %v183 = vld [vmem:[%s4 + $0x130] sm:$0xf]
    %v184 = vld [vmem:[%s4 + $0x134] sm:$0xf]
    %v185 = vld [vmem:[%s4 + $0x138] sm:$0xf]
    %v186 = vld [vmem:[%s4 + $0x13c] sm:$0xf]
    %v187 = vld [vmem:[%s4 + $0x140] sm:$0xf]
    %v188 = vld [vmem:[%s4 + $0x144] sm:$0xf]
    %v189 = vld [vmem:[%s4 + $0x148] sm:$0xf]
    %v190 = vld [vmem:[%s4 + $0x14c] sm:$0xf]
    %v191 = vld [vmem:[%s4 + $0x150] sm:$0xf]
    %v192 = vld [vmem:[%s4 + $0x154] sm:$0xf]
    %v193 = vld [vmem:[%s4 + $0x158] sm:$0xf]
    %v194 = vld [vmem:[%s4 + $0x15c] sm:$0xf]
    %v195 = vld [vmem:[%s4 + $0x160] sm:$0xf]
    %v196 = vld [vmem:[%s4 + $0x164] sm:$0xf]
    %v197 = vld [vmem:[%s4 + $0x168] sm:$0xf]
    %v198 = vld [vmem:[%s4 + $0x16c] sm:$0xf]
    %v199 = vld [vmem:[%s4 + $0x170] sm:$0xf]
    %v200 = vld [vmem:[%s4 + $0x174] sm:$0xf]
    %v201 = vld [vmem:[%s4 + $0x178] sm:$0xf]
    %v202 = vld [vmem:[%s4 + $0x17c] sm:$0xf]
    %v203 = vld [vmem:[%s4 + $0x180] sm:$0xf]
    %v204 = vld [vmem:[%s4 + $0x184] sm:$0xf]
    %v205 = vld [vmem:[%s4 + $0x188] sm:$0xf]
    %v206 = vld [vmem:[%s4 + $0x18c] sm:$0xf]
    %v207 = vld [vmem:[%s4 + $0x190] sm:$0xf]
    %v208 = vld [vmem:[%s4 + $0x194] sm:$0xf]
    %v209 = vld [vmem:[%s4 + $0x198] sm:$0xf]
    %v210 = vld [vmem:[%s4 + $0x19c] sm:$0xf]
    %v211 = vld [vmem:[%s4 + $0x1a0] sm:$0xf]
    %v212 = vld [vmem:[%s4 + $0x1a4] sm:$0xf]
    %v213 = vld [vmem:[%s4 + $0x1a8] sm:$0xf]
    %v214 = vld [vmem:[%s4 + $0x1ac] sm:$0xf]
    %v215 = vld [vmem:[%s4 + $0x1b0] sm:$0xf]
    %v216 = vld [vmem:[%s4 + $0x1b4] sm:$0xf]
    %v217 = vld [vmem:[%s4 + $0x1b8] sm:$0xf]
    %v218 = vld [vmem:[%s4 + $0x1bc] sm:$0xf]
    %v219 = vld [vmem:[%s4 + $0x1c0] sm:$0xf]
    %v220 = vld [vmem:[%s4 + $0x1c4] sm:$0xf]
    %v221 = vld [vmem:[%s4 + $0x1c8] sm:$0xf]
    %v222 = vld [vmem:[%s4 + $0x1cc] sm:$0xf]
    %v223 = vld [vmem:[%s4 + $0x1d0] sm:$0xf]
    %v224 = vld [vmem:[%s4 + $0x1d4] sm:$0xf]
    %v225 = vld [vmem:[%s4 + $0x1d8] sm:$0xf]
    %v226 = vld [vmem:[%s4 + $0x1dc] sm:$0xf]
    %v227 = vld [vmem:[%s4 + $0x1e0] sm:$0xf]
    %v228 = vld [vmem:[%s4 + $0x1e4] sm:$0xf]
    %v229 = vld [vmem:[%s4 + $0x1e8] sm:$0xf]
    %v230 = vld [vmem:[%s4 + $0x1ec] sm:$0xf]
    %v231 = vld [vmem:[%s4 + $0x1f0] sm:$0xf]
    %v232 = vld [vmem:[%s4 + $0x1f4] sm:$0xf]
    %v233 = vld [vmem:[%s4 + $0x1f8] sm:$0xf]
    %v234 = vld [vmem:[%s4 + $0x1fc] sm:$0xf]
    %v235 = vld [vmem:[%s4 + $0x200] sm:$0xf]
    %v236 = vld [vmem:[%s4 + $0x204] sm:$0xf]
    %v237 = vld [vmem:[%s4 + $0x208] sm:$0xf]
    %v238 = vld [vmem:[%s4 + $0x20c] sm:$0xf]
    %v239 = vld [vmem:[%s4 + $0x210] sm:$0xf]
    %v240 = vld [vmem:[%s4 + $0x214] sm:$0xf]
    %v241 = vld [vmem:[%s4 + $0x218] sm:$0xf]
    %v242 = vld [vmem:[%s4 + $0x21c] sm:$0xf]
    %v243 = vld [vmem:[%s4 + $0x220] sm:$0xf]
    %v244 = vld [vmem:[%s4 + $0x224] sm:$0xf]
    %v245 = vld [vmem:[%s4 + $0x228] sm:$0xf]
    %v246 = vld [vmem:[%s4 + $0x22c] sm:$0xf]
    %v247 = vld [vmem:[%s4 + $0x230] sm:$0xf]
    %v248 = vld [vmem:[%s4 + $0x234] sm:$0xf]
    %v249 = vld [vmem:[%s4 + $0x238] sm:$0xf]
    %v250 = vld [vmem:[%s4 + $0x23c] sm:$0xf]
    %v251 = vld [vmem:[%s4 + $0x240] sm:$0xf]
    %v252 = vld [vmem:[%s4 + $0x244] sm:$0xf]
    %v253 = vld [vmem:[%s4 + $0x248] sm:$0xf]
    %v254 = vld [vmem:[%s4 + $0x24c] sm:$0xf]
    %v255 = vld [vmem:[%s4 + $0x250] sm:$0xf]
    %v256 = vld [vmem:[%s4 + $0x254] sm:$0xf]
    %v257 = vld [vmem:[%s4 + $0x258] sm:$0xf]
    %v258 = vld [vmem:[%s4 + $0x25c] sm:$0xf]
    %v259 = vld [vmem:[%s4 + $0x260] sm:$0xf]
    %v260 = vld [vmem:[%s4 + $0x264] sm:$0xf]
    %v261 = vld [vmem:[%s4 + $0x268] sm:$0xf]
    %v262 = vld [vmem:[%s4 + $0x26c] sm:$0xf]
    %v263 = vld [vmem:[%s4 + $0x270] sm:$0xf]
    %v264 = vld [vmem:[%s4 + $0x274] sm:$0xf]
    %v265 = vld [vmem:[%s4 + $0x278] sm:$0xf]
    %v266 = vld [vmem:[%s4 + $0x27c] sm:$0xf]
    %v267 = vld [vmem:[%s4 + $0x280] sm:$0xf]
    %v268 = vld [vmem:[%s4 + $0x284] sm:$0xf]
    %v269 = vld [vmem:[%s4 + $0x288] sm:$0xf]
    %v270 = vld [vmem:[%s4 + $0x28c] sm:$0xf]
    %v271 = vld [vmem:[%s4 + $0x290] sm:$0xf]
    %v272 = vld [vmem:[%s4 + $0x294] sm:$0xf]
    %v273 = vld [vmem:[%s4 + $0x298] sm:$0xf]
    %v274 = vld [vmem:[%s4 + $0x29c] sm:$0xf]
    %v275 = vld [vmem:[%s4 + $0x2a0] sm:$0xf]
    %v276 = vld [vmem:[%s4 + $0x2a4] sm:$0xf]
    %v277 = vld [vmem:[%s4 + $0x2a8] sm:$0xf]
    %v278 = vld [vmem:[%s4 + $0x2ac] sm:$0xf]
    %v279 = vld [vmem:[%s4 + $0x2b0] sm:$0xf]
    %v280 = vld [vmem:[%s4 + $0x2b4] sm:$0xf]
    %v281 = vld [vmem:[%s4 + $0x2b8] sm:$0xf]
    %v282 = vld [vmem:[%s4 + $0x2bc] sm:$0xf]
    %v283 = vld [vmem:[%s4 + $0x2c0] sm:$0xf]
    %v284 = vld [vmem:[%s4 + $0x2c4] sm:$0xf]
    %v285 = vld [vmem:[%s4 + $0x2c8] sm:$0xf]
    %v286 = vld [vmem:[%s4 + $0x2cc] sm:$0xf]
    %v287 = vld [vmem:[%s4 + $0x2d0] sm:$0xf]
    %v288 = vld [vmem:[%s4 + $0x2d4] sm:$0xf]
    %v289 = vld [vmem:[%s4 + $0x2d8] sm:$0xf]
    %v290 = vld [vmem:[%s4 + $0x2dc] sm:$0xf]
    %v291 = vld [vmem:[%s4 + $0x2e0] sm:$0xf]
    %v292 = vld [vmem:[%s4 + $0x2e4] sm:$0xf]
    %v293 = vld [vmem:[%s4 + $0x2e8] sm:$0xf]
    %v294 = vld [vmem:[%s4 + $0x2ec] sm:$0xf]
    %v295 = vld [vmem:[%s4 + $0x2f0] sm:$0xf]
    %v296 = vld [vmem:[%s4 + $0x2f4] sm:$0xf]
    %v297 = vld [vmem:[%s4 + $0x2f8] sm:$0xf]
    %v298 = vld [vmem:[%s4 + $0x2fc] sm:$0xf]
    %v299 = vld [vmem:[%s4 + $0x300] sm:$0xf]
    %v300 = vld [vmem:[%s4 + $0x304] sm:$0xf]
    %v301 = vld [vmem:[%s4 + $0x308] sm:$0xf]
    %v302 = vld [vmem:[%s4 + $0x30c] sm:$0xf]
    %v303 = vld [vmem:[%s4 + $0x310] sm:$0xf]
    %v304 = vld [vmem:[%s4 + $0x314] sm:$0xf]
    %v305 = vld [vmem:[%s4 + $0x318] sm:$0xf]
    %v306 = vld [vmem:[%s4 + $0x31c] sm:$0xf]
    %v307 = vld [vmem:[%s4 + $0x320] sm:$0xf]
    %v308 = vld [vmem:[%s4 + $0x324] sm:$0xf]
    %v309 = vld [vmem:[%s4 + $0x328] sm:$0xf]
    %v310 = vld [vmem:[%s4 + $0x32c] sm:$0xf]
    %v311 = vld [vmem:[%s4 + $0x330] sm:$0xf]
    %v312 = vld [vmem:[%s4 + $0x334] sm:$0xf]
    %v313 = vld [vmem:[%s4 + $0x338] sm:$0xf]
    %v314 = vld [vmem:[%s4 + $0x33c] sm:$0xf]
    %v315 = vld [vmem:[%s4 + $0x340] sm:$0xf]
    %v316 = vld [vmem:[%s4 + $0x344] sm:$0xf]
    %v317 = vld [vmem:[%s4 + $0x348] sm:$0xf]
    %v318 = vld [vmem:[%s4 + $0x34c] sm:$0xf]
    %v319 = vld [vmem:[%s4 + $0x350] sm:$0xf]
    %v320 = vld [vmem:[%s4 + $0x354] sm:$0xf]
    %v321 = vld [vmem:[%s4 + $0x358] sm:$0xf]
    %v322 = vld [vmem:[%s4 + $0x35c] sm:$0xf]
    %v323 = vld [vmem:[%s4 + $0x360] sm:$0xf]
    %v324 = vld [vmem:[%s4 + $0x364] sm:$0xf]
    %v325 = vld [vmem:[%s4 + $0x368] sm:$0xf]
    %v326 = vld [vmem:[%s4 + $0x36c] sm:$0xf]
    %v327 = vld [vmem:[%s4 + $0x370] sm:$0xf]
    %v328 = vld [vmem:[%s4 + $0x374] sm:$0xf]
    %v329 = vld [vmem:[%s4 + $0x378] sm:$0xf]
    %v330 = vld [vmem:[%s4 + $0x37c] sm:$0xf]
    %v331 = vld [vmem:[%s4 + $0x380] sm:$0xf]
    %v332 = vld [vmem:[%s4 + $0x384] sm:$0xf]
    %v333 = vld [vmem:[%s4 + $0x388] sm:$0xf]
    %v334 = vld [vmem:[%s4 + $0x38c] sm:$0xf]
    %v335 = vld [vmem:[%s4 + $0x390] sm:$0xf]
    %v336 = vld [vmem:[%s4 + $0x394] sm:$0xf]
    %v337 = vld [vmem:[%s4 + $0x398] sm:$0xf]
    %v338 = vld [vmem:[%s4 + $0x39c] sm:$0xf]
    %v339 = vld [vmem:[%s4 + $0x3a0] sm:$0xf]
    %v340 = vld [vmem:[%s4 + $0x3a4] sm:$0xf]
    %v341 = vld [vmem:[%s4 + $0x3a8] sm:$0xf]
    %v342 = vld [vmem:[%s4 + $0x3ac] sm:$0xf]
    %v343 = vld [vmem:[%s4 + $0x3b0] sm:$0xf]
    %v344 = vld [vmem:[%s4 + $0x3b4] sm:$0xf]
    %v345 = vld [vmem:[%s4 + $0x3b8] sm:$0xf]
    %v346 = vld [vmem:[%s4 + $0x3bc] sm:$0xf]
    %v347 = vld [vmem:[%s4 + $0x3c0] sm:$0xf]
    %v348 = vld [vmem:[%s4 + $0x3c4] sm:$0xf]
    %v349 = vld [vmem:[%s4 + $0x3c8] sm:$0xf]
    %v350 = vld [vmem:[%s4 + $0x3cc] sm:$0xf]
    %v351 = vld [vmem:[%s4 + $0x3d0] sm:$0xf]
    %v352 = vld [vmem:[%s4 + $0x3d4] sm:$0xf]
    %v353 = vld [vmem:[%s4 + $0x3d8] sm:$0xf]
    %v354 = vld [vmem:[%s4 + $0x3dc] sm:$0xf]
    %v355 = vld [vmem:[%s4 + $0x3e0] sm:$0xf]
    %v356 = vld [vmem:[%s4 + $0x3e4] sm:$0xf]
    %v357 = vld [vmem:[%s4 + $0x3e8] sm:$0xf]
    %v358 = vld [vmem:[%s4 + $0x3ec] sm:$0xf]
    %v359 = vld [vmem:[%s4 + $0x3f0] sm:$0xf]
    %v360 = vld [vmem:[%s4 + $0x3f4] sm:$0xf]
    %v361 = vld [vmem:[%s4 + $0x3f8] sm:$0xf]
    %v362 = vld [vmem:[%s4 + $0x3fc] sm:$0xf]
    %v363 = vpack.c.bf16 %v48, %v47
    %v364 = vperm.slane %v51, 0
    %v369 = vunpack.c.l.b16 %v57
    %v370 = vunpack.c.l.b16 %v58
    %v371 = vunpack.c.l.b16 %v59
    %v372 = vunpack.c.l.b16 %v60
    %v373 = vpack.c.b16 %v370, %v369
    %v374 = vpack.c.b16 %v372, %v371
    %vm377 = vcmask 261120
    %v379 = vsel %vm377, %v363, 0
    %381 = vmatpush.bf16.msra.mxu0 0
    %382 = vmatpush.bf16.msra.mxu0 0
    %383 = vmatpush.bf16.msra.mxu0 0
    %384 = vmatpush.bf16.msra.mxu0 0
    %385 = vmatpush.bf16.msra.mxu0 0
    %386 = vmatpush.bf16.msra.mxu0 0
    %387 = vmatpush.bf16.msra.mxu0 %v374
    %388 = vmatpush.bf16.msra.mxu0 %v373
    %389 = vmatmul.bf16.gmra.mxu0 %v379
    %v390 = vpop.f32.mrf.mxu0
    %v391 = vadd.f32 %v364, %v390
    %v392 = vpop.f32.mrf.mxu0
    %v393 = vadd.f32 %v364, %v392
    %394 = vdwg.mxu0
    %v395 = vperm.slane %v51, 1
    %v400 = vunpack.c.l.b16 %v62
    %v401 = vunpack.c.l.b16 %v63
    %v402 = vunpack.c.l.b16 %v64
    %v403 = vunpack.c.l.b16 %v65
    %v404 = vpack.c.b16 %v401, %v400
    %v405 = vpack.c.b16 %v403, %v402
    %408 = vmatpush.bf16.msra.mxu0 0
    %409 = vmatpush.bf16.msra.mxu0 0
    %410 = vmatpush.bf16.msra.mxu0 0
    %411 = vmatpush.bf16.msra.mxu0 0
    %412 = vmatpush.bf16.msra.mxu0 0
    %413 = vmatpush.bf16.msra.mxu0 0
    %414 = vmatpush.bf16.msra.mxu0 %v405
    %415 = vmatpush.bf16.msra.mxu0 %v404
    %416 = vmatmul.bf16.gmra.mxu0 %v379
    %v417 = vpop.f32.mrf.mxu0
    %v418 = vadd.f32 %v395, %v417
    %v419 = vpop.f32.mrf.mxu0
    %v420 = vadd.f32 %v395, %v419
    %421 = vdwg.mxu0
    %v422 = vperm.slane %v51, 2
    %v427 = vunpack.c.l.b16 %v67
    %v428 = vunpack.c.l.b16 %v68
    %v429 = vunpack.c.l.b16 %v69
    %v430 = vunpack.c.l.b16 %v70
    %v431 = vpack.c.b16 %v428, %v427
    %v432 = vpack.c.b16 %v430, %v429
    %435 = vmatpush.bf16.msra.mxu0 0
    %436 = vmatpush.bf16.msra.mxu0 0
    %437 = vmatpush.bf16.msra.mxu0 0
    %438 = vmatpush.bf16.msra.mxu0 0
    %439 = vmatpush.bf16.msra.mxu0 0
    %440 = vmatpush.bf16.msra.mxu0 0
    %441 = vmatpush.bf16.msra.mxu0 %v432
    %442 = vmatpush.bf16.msra.mxu0 %v431
    %443 = vmatmul.bf16.gmra.mxu0 %v379
    %v444 = vpop.f32.mrf.mxu0
    %v445 = vadd.f32 %v422, %v444
    %v446 = vpop.f32.mrf.mxu0
    %v447 = vadd.f32 %v422, %v446
    %448 = vdwg.mxu0
    %v449 = vpack.c.bf16 %v391, %v391
    %v450 = vpack.c.bf16 %v393, %v393
    %v451 = vpack.c.bf16 %v418, %v418
    %v452 = vpack.c.bf16 %v420, %v420
    %v454 = vsel %vm377, %v449, 0
    %v457 = vsel %vm377, %v451, 0
    %459 = vmatpush.bf16.xpose.msra.mxu0 0
    %460 = vmatpush.bf16.xpose.msra.mxu0 0
    %461 = vmatpush.bf16.xpose.msra.mxu0 0
    %462 = vmatpush.bf16.xpose.msra.mxu0 0
    %463 = vmatpush.bf16.xpose.msra.mxu0 0
    %464 = vmatpush.bf16.xpose.msra.mxu0 0
    %465 = vmatpush.bf16.xpose.msra.mxu0 0
    %466 = vmatpush.bf16.xpose.msra.mxu0 %v457
    %467 = vmatmul.bf16.gmra.mxu0 %v454
    %v468 = vpop.f32.mrf.mxu0
    %v469 = vadd.f32 0.0, %v468
    %v470 = vpop.f32.mrf.mxu0
    %471 = vdwg.mxu0
    %v473 = vsel %vm377, %v450, 0
    %v476 = vsel %vm377, %v452, 0
    %478 = vmatpush.bf16.xpose.msra.mxu0 0
    %479 = vmatpush.bf16.xpose.msra.mxu0 0
    %480 = vmatpush.bf16.xpose.msra.mxu0 0
    %481 = vmatpush.bf16.xpose.msra.mxu0 0
    %482 = vmatpush.bf16.xpose.msra.mxu0 0
    %483 = vmatpush.bf16.xpose.msra.mxu0 0
    %484 = vmatpush.bf16.xpose.msra.mxu0 0
    %485 = vmatpush.bf16.xpose.msra.mxu0 %v476
    %486 = vmatmul.bf16.gmra.mxu0 %v473
    %v487 = vpop.f32.mrf.mxu0
    %v488 = vadd.f32 0.0, %v487
    %v489 = vpop.f32.mrf.mxu0
    %490 = vdwg.mxu0
    %v491 = vmul.f32 %v469, 0.17677669
    %v492 = vmul.f32 %v488, 0.17677669
    %vm493 = vcmask 64512
    %v494 = vsel %vm493, %v491, -inf
    %495 = vmax.xlane.f32.xlu0 %v494
    %v496 = vpop.xlane.xlu0 %495
    %v497 = vsel %vm493, %v492, -inf
    %498 = vmax.xlane.f32.xlu0 %v497
    %v499 = vpop.xlane.xlu0 %498
    %v500 = vsub.f32 %v491, %v496
    %v501 = vsub.f32 %v492, %v499
    %v502 = vmul.f32 %v500, 1.442695
    %v503 = vpow.pop %v502
    %v504 = vmul.f32 %v501, 1.442695
    %v505 = vpow.pop %v504
    %v506 = vsel %vm493, %v503, 0.0
    %507 = vadd.xlane.f32.xlu0 %v506
    %v508 = vpop.xlane.xlu0 %507
    %v509 = vsel %vm493, %v505, 0.0
    %510 = vadd.xlane.f32.xlu0 %v509
    %v511 = vpop.xlane.xlu0 %510
    %v512 = vrcp.pop %v508
    %v513 = vrcp.pop %v511
    %v514 = vmul.f32 %v503, %v512
    %v515 = vmul.f32 %v505, %v513
    %v516 = vpack.c.bf16 %v514, %v514
    %v517 = vpack.c.bf16 %v515, %v515
    %v518 = vpack.c.bf16 %v445, %v445
    %v519 = vpack.c.bf16 %v447, %v447
    %v521 = vsel %vm493, %v516, 0
    %vm523 = vcmask 1043456
    %v525 = vsel %vm523, %v518, 0
    %527 = vmatpush.bf16.msra.mxu0 0
    %528 = vmatpush.bf16.msra.mxu0 0
    %529 = vmatpush.bf16.msra.mxu0 0
    %530 = vmatpush.bf16.msra.mxu0 0
    %531 = vmatpush.bf16.msra.mxu0 0
    %532 = vmatpush.bf16.msra.mxu0 0
    %533 = vmatpush.bf16.msra.mxu0 0
    %534 = vmatpush.bf16.msra.mxu0 %v525
    %535 = vmatmul.bf16.gmra.mxu0 %v521
    %v536 = vpop.f32.mrf.mxu0
    %v537 = vadd.f32 0.0, %v536
    %v538 = vpop.f32.mrf.mxu0
    %539 = vdwg.mxu0
    %v541 = vsel %vm493, %v517, 0
    %v544 = vsel %vm523, %v519, 0
    %546 = vmatpush.bf16.msra.mxu0 0
    %547 = vmatpush.bf16.msra.mxu0 0
    %548 = vmatpush.bf16.msra.mxu0 0
    %549 = vmatpush.bf16.msra.mxu0 0
    %550 = vmatpush.bf16.msra.mxu0 0
    %551 = vmatpush.bf16.msra.mxu0 0
    %552 = vmatpush.bf16.msra.mxu0 0
    %553 = vmatpush.bf16.msra.mxu0 %v544
    %554 = vmatmul.bf16.gmra.mxu0 %v541
    %v555 = vpop.f32.mrf.mxu0
    %v556 = vadd.f32 0.0, %v555
    %v557 = vpop.f32.mrf.mxu0
    %558 = vdwg.mxu0
    %v559 = vpack.c.bf16 %v556, %v537
    %v560 = vperm.slane %v49, 0
    %v565 = vunpack.c.l.b16 %v71
    %v566 = vunpack.c.l.b16 %v72
    %v567 = vunpack.c.l.b16 %v73
    %v568 = vunpack.c.l.b16 %v74
    %v569 = vpack.c.b16 %v566, %v565
    %v570 = vpack.c.b16 %v568, %v567
    %v574 = vsel %vm377, %v559, 0
    %576 = vmatpush.bf16.msra.mxu0 0
    %577 = vmatpush.bf16.msra.mxu0 0
    %578 = vmatpush.bf16.msra.mxu0 0
    %579 = vmatpush.bf16.msra.mxu0 0
    %580 = vmatpush.bf16.msra.mxu0 0
    %581 = vmatpush.bf16.msra.mxu0 0
    %582 = vmatpush.bf16.msra.mxu0 %v570
    %583 = vmatpush.bf16.msra.mxu0 %v569
    %584 = vmatmul.bf16.gmra.mxu0 %v574
    %v585 = vpop.f32.mrf.mxu0
    %v586 = vadd.f32 %v560, %v585
    %v587 = vpop.f32.mrf.mxu0
    %v588 = vadd.f32 %v560, %v587
    %589 = vdwg.mxu0
    %v590 = vadd.f32 %v47, %v586
    %v591 = vadd.f32 %v48, %v588
    %v592 = vsel %vm377, %v590, 0.0
    %593 = vadd.xlane.f32.xlu0 %v592
    %v594 = vpop.xlane.xlu0 %593
    %v595 = vsel %vm377, %v591, 0.0
    %596 = vadd.xlane.f32.xlu0 %v595
    %v597 = vpop.xlane.xlu0 %596
    %v598 = vrcp.pop 32.0
    %v599 = vmul.f32 32.0, %v598
    %v600 = vsub.f32 1.0, %v599
    %v601 = vmul.f32 %v598, %v600
    %v602 = vadd.f32 %v598, %v601
    %vm603 = vweird.f32 %v598
    %v604 = vsel %vm603, %v598, %v602
    %v605 = vmul.f32 %v594, %v604
    %v606 = vmul.f32 %v597, %v604
    %v607 = vsub.f32 %v590, %v605
    %v608 = vsub.f32 %v591, %v606
    %v609 = vmul.f32 %v607, %v607
    %v610 = vmul.f32 %v608, %v608
    %v611 = vsel %vm377, %v609, 0.0
    %612 = vadd.xlane.f32.xlu0 %v611
    %v613 = vpop.xlane.xlu0 %612
    %v614 = vsel %vm377, %v610, 0.0
    %615 = vadd.xlane.f32.xlu0 %v614
    %v616 = vpop.xlane.xlu0 %615
    %v617 = vmul.f32 %v613, %v604
    %v618 = vmul.f32 %v616, %v604
    %v619 = vadd.f32 %v617, 1e-05
    %v620 = vadd.f32 %v618, 1e-05
    %v621 = vrsqrt.pop %v619
    %v622 = vmul.f32 %v621, %v619
    %v623 = vmul.f32 %v622, %v621
    %v624 = vmul.f32 0.5, %v623
    %v625 = vsub.f32 1.5, %v624
    %v626 = vmul.f32 %v621, %v625
    %vm627 = vweird.f32 %v619
    %vm628 = vweird.f32 %v621
    %vm629 = vmor %vm627, %vm628
    %v630 = vsel %vm629, %v621, %v626
    %v631 = vrsqrt.pop %v620
    %v632 = vmul.f32 %v631, %v620
    %v633 = vmul.f32 %v632, %v631
    %v634 = vmul.f32 0.5, %v633
    %v635 = vsub.f32 1.5, %v634
    %v636 = vmul.f32 %v631, %v635
    %vm637 = vweird.f32 %v620
    %vm638 = vweird.f32 %v631
    %vm639 = vmor %vm637, %vm638
    %v640 = vsel %vm639, %v631, %v636
    %v641 = vmul.f32 %v607, %v630
    %v642 = vmul.f32 %v608, %v640
    %v643 = vperm.slane %v49, 1
    %v644 = vmul.f32 %v641, %v643
    %v645 = vmul.f32 %v642, %v643
    %v646 = vperm.slane %v49, 2
    %v647 = vadd.f32 %v644, %v646
    %v648 = vadd.f32 %v645, %v646
    %v649 = vpack.c.bf16 %v648, %v647
    %v654 = vperm.slane %v53, 0
    %v655 = vperm.slane %v53, 2
    %v656 = vperm.slane %v53, 4
    %v657 = vperm.slane %v53, 6
    %v658 = vperm.slane %v54, 0
    %v659 = vperm.slane %v54, 2
    %v660 = vperm.slane %v54, 4
    %v661 = vperm.slane %v54, 6
    %v662 = vperm.slane %v55, 0
    %v663 = vperm.slane %v55, 2
    %v664 = vperm.slane %v55, 4
    %v665 = vperm.slane %v55, 6
    %v666 = vperm.slane %v56, 0
    %v667 = vperm.slane %v56, 2
    %v668 = vperm.slane %v56, 4
    %v669 = vperm.slane %v56, 6
    %v686 = vperm.slane %v654, 0
    %v687 = vperm.slane %v655, 0
    %v688 = vperm.slane %v656, 0
    %v689 = vperm.slane %v657, 0
    %v690 = vperm.slane %v658, 0
    %v691 = vperm.slane %v659, 0
    %v692 = vperm.slane %v660, 0
    %v693 = vperm.slane %v661, 0
    %v694 = vperm.slane %v662, 0
    %v695 = vperm.slane %v663, 0
    %v696 = vperm.slane %v664, 0
    %v697 = vperm.slane %v665, 0
    %v698 = vperm.slane %v666, 0
    %v699 = vperm.slane %v667, 0
    %v700 = vperm.slane %v668, 0
    %v701 = vperm.slane %v669, 0
    %v734 = vunpack.c.l.b16 %v75
    %v735 = vunpack.c.h.b16 %v75
    %v736 = vunpack.c.l.b16 %v76
    %v737 = vunpack.c.h.b16 %v76
    %v738 = vunpack.c.l.b16 %v77
    %v739 = vunpack.c.h.b16 %v77
    %v740 = vunpack.c.l.b16 %v78
    %v741 = vunpack.c.h.b16 %v78
    %v742 = vunpack.c.l.b16 %v79
    %v743 = vunpack.c.h.b16 %v79
    %v744 = vunpack.c.l.b16 %v80
    %v745 = vunpack.c.h.b16 %v80
    %v746 = vunpack.c.l.b16 %v81
    %v747 = vunpack.c.h.b16 %v81
    %v748 = vunpack.c.l.b16 %v82
    %v749 = vunpack.c.h.b16 %v82
    %v750 = vunpack.c.l.b16 %v83
    %v751 = vunpack.c.h.b16 %v83
    %v752 = vunpack.c.l.b16 %v84
    %v753 = vunpack.c.h.b16 %v84
    %v754 = vunpack.c.l.b16 %v85
    %v755 = vunpack.c.h.b16 %v85
    %v756 = vunpack.c.l.b16 %v86
    %v757 = vunpack.c.h.b16 %v86
    %v758 = vunpack.c.l.b16 %v87
    %v759 = vunpack.c.h.b16 %v87
    %v760 = vunpack.c.l.b16 %v88
    %v761 = vunpack.c.h.b16 %v88
    %v762 = vunpack.c.l.b16 %v89
    %v763 = vunpack.c.h.b16 %v89
    %v764 = vunpack.c.l.b16 %v90
    %v765 = vunpack.c.h.b16 %v90
    %v766 = vunpack.c.l.b16 %v91
    %v767 = vunpack.c.h.b16 %v91
    %v768 = vunpack.c.l.b16 %v92
    %v769 = vunpack.c.h.b16 %v92
    %v770 = vunpack.c.l.b16 %v93
    %v771 = vunpack.c.h.b16 %v93
    %v772 = vunpack.c.l.b16 %v94
    %v773 = vunpack.c.h.b16 %v94
    %v774 = vunpack.c.l.b16 %v95
    %v775 = vunpack.c.h.b16 %v95
    %v776 = vunpack.c.l.b16 %v96
    %v777 = vunpack.c.h.b16 %v96
    %v778 = vunpack.c.l.b16 %v97
    %v779 = vunpack.c.h.b16 %v97
    %v780 = vunpack.c.l.b16 %v98
    %v781 = vunpack.c.h.b16 %v98
    %v782 = vunpack.c.l.b16 %v99
    %v783 = vunpack.c.h.b16 %v99
    %v784 = vunpack.c.l.b16 %v100
    %v785 = vunpack.c.h.b16 %v100
    %v786 = vunpack.c.l.b16 %v101
    %v787 = vunpack.c.h.b16 %v101
    %v788 = vunpack.c.l.b16 %v102
    %v789 = vunpack.c.h.b16 %v102
    %v790 = vunpack.c.l.b16 %v103
    %v791 = vunpack.c.h.b16 %v103
    %v792 = vunpack.c.l.b16 %v104
    %v793 = vunpack.c.h.b16 %v104
    %v794 = vunpack.c.l.b16 %v105
    %v795 = vunpack.c.h.b16 %v105
    %v796 = vunpack.c.l.b16 %v106
    %v797 = vunpack.c.h.b16 %v106
    %v798 = vpack.c.b16 %v750, %v734
    %v799 = vpack.c.b16 %v751, %v735
    %v800 = vpack.c.b16 %v752, %v736
    %v801 = vpack.c.b16 %v753, %v737
    %v802 = vpack.c.b16 %v754, %v738
    %v803 = vpack.c.b16 %v755, %v739
    %v804 = vpack.c.b16 %v756, %v740
    %v805 = vpack.c.b16 %v757, %v741
    %v806 = vpack.c.b16 %v758, %v742
    %v807 = vpack.c.b16 %v759, %v743
    %v808 = vpack.c.b16 %v760, %v744
    %v809 = vpack.c.b16 %v761, %v745
    %v810 = vpack.c.b16 %v762, %v746
    %v811 = vpack.c.b16 %v763, %v747
    %v812 = vpack.c.b16 %v764, %v748
    %v813 = vpack.c.b16 %v765, %v749
    %v814 = vpack.c.b16 %v782, %v766
    %v815 = vpack.c.b16 %v783, %v767
    %v816 = vpack.c.b16 %v784, %v768
    %v817 = vpack.c.b16 %v785, %v769
    %v818 = vpack.c.b16 %v786, %v770
    %v819 = vpack.c.b16 %v787, %v771
    %v820 = vpack.c.b16 %v788, %v772
    %v821 = vpack.c.b16 %v789, %v773
    %v822 = vpack.c.b16 %v790, %v774
    %v823 = vpack.c.b16 %v791, %v775
    %v824 = vpack.c.b16 %v792, %v776
    %v825 = vpack.c.b16 %v793, %v777
    %v826 = vpack.c.b16 %v794, %v778
    %v827 = vpack.c.b16 %v795, %v779
    %v828 = vpack.c.b16 %v796, %v780
    %v829 = vpack.c.b16 %v797, %v781
    %v863 = vsel %vm377, %v649, 0
    %865 = vmatpush.bf16.msra.mxu0 0
    %866 = vmatpush.bf16.msra.mxu0 0
    %867 = vmatpush.bf16.msra.mxu0 0
    %868 = vmatpush.bf16.msra.mxu0 0
    %869 = vmatpush.bf16.msra.mxu0 0
    %870 = vmatpush.bf16.msra.mxu0 0
    %871 = vmatpush.bf16.msra.mxu0 %v814
    %872 = vmatpush.bf16.msra.mxu0 %v798
    %873 = vmatmul.bf16.gmra.mxu0 %v863
    %v874 = vpop.f32.mrf.mxu0
    %v875 = vadd.f32 %v686, %v874
    %v876 = vpop.f32.mrf.mxu0
    %v877 = vadd.f32 %v686, %v876
    %878 = vdwg.mxu0
    %879 = vmatpush.bf16.msra.mxu0 0
    %880 = vmatpush.bf16.msra.mxu0 0
    %881 = vmatpush.bf16.msra.mxu0 0
    %882 = vmatpush.bf16.msra.mxu0 0
    %883 = vmatpush.bf16.msra.mxu0 0
    %884 = vmatpush.bf16.msra.mxu0 0
    %885 = vmatpush.bf16.msra.mxu0 %v815
    %886 = vmatpush.bf16.msra.mxu0 %v799
    %887 = vmatmul.bf16.gmra.mxu0 %v863
    %v888 = vpop.f32.mrf.mxu0
    %v889 = vadd.f32 %v687, %v888
    %v890 = vpop.f32.mrf.mxu0
    %v891 = vadd.f32 %v687, %v890
    %892 = vdwg.mxu0
    %893 = vmatpush.bf16.msra.mxu0 0
    %894 = vmatpush.bf16.msra.mxu0 0
    %895 = vmatpush.bf16.msra.mxu0 0
    %896 = vmatpush.bf16.msra.mxu0 0
    %897 = vmatpush.bf16.msra.mxu0 0
    %898 = vmatpush.bf16.msra.mxu0 0
    %899 = vmatpush.bf16.msra.mxu0 %v816
    %900 = vmatpush.bf16.msra.mxu0 %v800
    %901 = vmatmul.bf16.gmra.mxu0 %v863
    %v902 = vpop.f32.mrf.mxu0
    %v903 = vadd.f32 %v688, %v902
    %v904 = vpop.f32.mrf.mxu0
    %v905 = vadd.f32 %v688, %v904
    %906 = vdwg.mxu0
    %907 = vmatpush.bf16.msra.mxu0 0
    %908 = vmatpush.bf16.msra.mxu0 0
    %909 = vmatpush.bf16.msra.mxu0 0
    %910 = vmatpush.bf16.msra.mxu0 0
    %911 = vmatpush.bf16.msra.mxu0 0
    %912 = vmatpush.bf16.msra.mxu0 0
    %913 = vmatpush.bf16.msra.mxu0 %v817
    %914 = vmatpush.bf16.msra.mxu0 %v801
    %915 = vmatmul.bf16.gmra.mxu0 %v863
    %v916 = vpop.f32.mrf.mxu0
    %v917 = vadd.f32 %v689, %v916
    %v918 = vpop.f32.mrf.mxu0
    %v919 = vadd.f32 %v689, %v918
    %920 = vdwg.mxu0
    %921 = vmatpush.bf16.msra.mxu0 0
    %922 = vmatpush.bf16.msra.mxu0 0
    %923 = vmatpush.bf16.msra.mxu0 0
    %924 = vmatpush.bf16.msra.mxu0 0
    %925 = vmatpush.bf16.msra.mxu0 0
    %926 = vmatpush.bf16.msra.mxu0 0
    %927 = vmatpush.bf16.msra.mxu0 %v818
    %928 = vmatpush.bf16.msra.mxu0 %v802
    %929 = vmatmul.bf16.gmra.mxu0 %v863
    %v930 = vpop.f32.mrf.mxu0
    %v931 = vadd.f32 %v690, %v930
    %v932 = vpop.f32.mrf.mxu0
    %v933 = vadd.f32 %v690, %v932
    %934 = vdwg.mxu0
    %935 = vmatpush.bf16.msra.mxu0 0
    %936 = vmatpush.bf16.msra.mxu0 0
    %937 = vmatpush.bf16.msra.mxu0 0
    %938 = vmatpush.bf16.msra.mxu0 0
    %939 = vmatpush.bf16.msra.mxu0 0
    %940 = vmatpush.bf16.msra.mxu0 0
    %941 = vmatpush.bf16.msra.mxu0 %v819
    %942 = vmatpush.bf16.msra.mxu0 %v803
    %943 = vmatmul.bf16.gmra.mxu0 %v863
    %v944 = vpop.f32.mrf.mxu0
    %v945 = vadd.f32 %v691, %v944
    %v946 = vpop.f32.mrf.mxu0
    %v947 = vadd.f32 %v691, %v946
    %948 = vdwg.mxu0
    %949 = vmatpush.bf16.msra.mxu0 0
    %950 = vmatpush.bf16.msra.mxu0 0
    %951 = vmatpush.bf16.msra.mxu0 0
    %952 = vmatpush.bf16.msra.mxu0 0
    %953 = vmatpush.bf16.msra.mxu0 0
    %954 = vmatpush.bf16.msra.mxu0 0
    %955 = vmatpush.bf16.msra.mxu0 %v820
    %956 = vmatpush.bf16.msra.mxu0 %v804
    %957 = vmatmul.bf16.gmra.mxu0 %v863
    %v958 = vpop.f32.mrf.mxu0
    %v959 = vadd.f32 %v692, %v958
    %v960 = vpop.f32.mrf.mxu0
    %v961 = vadd.f32 %v692, %v960
    %962 = vdwg.mxu0
    %963 = vmatpush.bf16.msra.mxu0 0
    %964 = vmatpush.bf16.msra.mxu0 0
    %965 = vmatpush.bf16.msra.mxu0 0
    %966 = vmatpush.bf16.msra.mxu0 0
    %967 = vmatpush.bf16.msra.mxu0 0
    %968 = vmatpush.bf16.msra.mxu0 0
    %969 = vmatpush.bf16.msra.mxu0 %v821
    %970 = vmatpush.bf16.msra.mxu0 %v805
    %971 = vmatmul.bf16.gmra.mxu0 %v863
    %v972 = vpop.f32.mrf.mxu0
    %v973 = vadd.f32 %v693, %v972
    %v974 = vpop.f32.mrf.mxu0
    %v975 = vadd.f32 %v693, %v974
    %976 = vdwg.mxu0
    %977 = vmatpush.bf16.msra.mxu0 0
    %978 = vmatpush.bf16.msra.mxu0 0
    %979 = vmatpush.bf16.msra.mxu0 0
    %980 = vmatpush.bf16.msra.mxu0 0
    %981 = vmatpush.bf16.msra.mxu0 0
    %982 = vmatpush.bf16.msra.mxu0 0
    %983 = vmatpush.bf16.msra.mxu0 %v822
    %984 = vmatpush.bf16.msra.mxu0 %v806
    %985 = vmatmul.bf16.gmra.mxu0 %v863
    %v986 = vpop.f32.mrf.mxu0
    %v987 = vadd.f32 %v694, %v986
    %v988 = vpop.f32.mrf.mxu0
    %v989 = vadd.f32 %v694, %v988
    %990 = vdwg.mxu0
    %991 = vmatpush.bf16.msra.mxu0 0
    %992 = vmatpush.bf16.msra.mxu0 0
    %993 = vmatpush.bf16.msra.mxu0 0
    %994 = vmatpush.bf16.msra.mxu0 0
    %995 = vmatpush.bf16.msra.mxu0 0
    %996 = vmatpush.bf16.msra.mxu0 0
    %997 = vmatpush.bf16.msra.mxu0 %v823
    %998 = vmatpush.bf16.msra.mxu0 %v807
    %999 = vmatmul.bf16.gmra.mxu0 %v863
    %v1000 = vpop.f32.mrf.mxu0
    %v1001 = vadd.f32 %v695, %v1000
    %v1002 = vpop.f32.mrf.mxu0
    %v1003 = vadd.f32 %v695, %v1002
    %1004 = vdwg.mxu0
    %1005 = vmatpush.bf16.msra.mxu0 0
    %1006 = vmatpush.bf16.msra.mxu0 0
    %1007 = vmatpush.bf16.msra.mxu0 0
    %1008 = vmatpush.bf16.msra.mxu0 0
    %1009 = vmatpush.bf16.msra.mxu0 0
    %1010 = vmatpush.bf16.msra.mxu0 0
    %1011 = vmatpush.bf16.msra.mxu0 %v824
    %1012 = vmatpush.bf16.msra.mxu0 %v808
    %1013 = vmatmul.bf16.gmra.mxu0 %v863
    %v1014 = vpop.f32.mrf.mxu0
    %v1015 = vadd.f32 %v696, %v1014
    %v1016 = vpop.f32.mrf.mxu0
    %v1017 = vadd.f32 %v696, %v1016
    %1018 = vdwg.mxu0
    %1019 = vmatpush.bf16.msra.mxu0 0
    %1020 = vmatpush.bf16.msra.mxu0 0
    %1021 = vmatpush.bf16.msra.mxu0 0
    %1022 = vmatpush.bf16.msra.mxu0 0
    %1023 = vmatpush.bf16.msra.mxu0 0
    %1024 = vmatpush.bf16.msra.mxu0 0
    %1025 = vmatpush.bf16.msra.mxu0 %v825
    %1026 = vmatpush.bf16.msra.mxu0 %v809
    %1027 = vmatmul.bf16.gmra.mxu0 %v863
    %v1028 = vpop.f32.mrf.mxu0
    %v1029 = vadd.f32 %v697, %v1028
    %v1030 = vpop.f32.mrf.mxu0
    %v1031 = vadd.f32 %v697, %v1030
    %1032 = vdwg.mxu0
    %1033 = vmatpush.bf16.msra.mxu0 0
    %1034 = vmatpush.bf16.msra.mxu0 0
    %1035 = vmatpush.bf16.msra.mxu0 0
    %1036 = vmatpush.bf16.msra.mxu0 0
    %1037 = vmatpush.bf16.msra.mxu0 0
    %1038 = vmatpush.bf16.msra.mxu0 0
    %1039 = vmatpush.bf16.msra.mxu0 %v826
    %1040 = vmatpush.bf16.msra.mxu0 %v810
    %1041 = vmatmul.bf16.gmra.mxu0 %v863
    %v1042 = vpop.f32.mrf.mxu0
    %v1043 = vadd.f32 %v698, %v1042
    %v1044 = vpop.f32.mrf.mxu0
    %v1045 = vadd.f32 %v698, %v1044
    %1046 = vdwg.mxu0
    %1047 = vmatpush.bf16.msra.mxu0 0
    %1048 = vmatpush.bf16.msra.mxu0 0
    %1049 = vmatpush.bf16.msra.mxu0 0
    %1050 = vmatpush.bf16.msra.mxu0 0
    %1051 = vmatpush.bf16.msra.mxu0 0
    %1052 = vmatpush.bf16.msra.mxu0 0
    %1053 = vmatpush.bf16.msra.mxu0 %v827
    %1054 = vmatpush.bf16.msra.mxu0 %v811
    %1055 = vmatmul.bf16.gmra.mxu0 %v863
    %v1056 = vpop.f32.mrf.mxu0
    %v1057 = vadd.f32 %v699, %v1056
    %v1058 = vpop.f32.mrf.mxu0
    %v1059 = vadd.f32 %v699, %v1058
    %1060 = vdwg.mxu0
    %1061 = vmatpush.bf16.msra.mxu0 0
    %1062 = vmatpush.bf16.msra.mxu0 0
    %1063 = vmatpush.bf16.msra.mxu0 0
    %1064 = vmatpush.bf16.msra.mxu0 0
    %1065 = vmatpush.bf16.msra.mxu0 0
    %1066 = vmatpush.bf16.msra.mxu0 0
    %1067 = vmatpush.bf16.msra.mxu0 %v828
    %1068 = vmatpush.bf16.msra.mxu0 %v812
    %1069 = vmatmul.bf16.gmra.mxu0 %v863
    %v1070 = vpop.f32.mrf.mxu0
    %v1071 = vadd.f32 %v700, %v1070
    %v1072 = vpop.f32.mrf.mxu0
    %v1073 = vadd.f32 %v700, %v1072
    %1074 = vdwg.mxu0
    %1075 = vmatpush.bf16.msra.mxu0 0
    %1076 = vmatpush.bf16.msra.mxu0 0
    %1077 = vmatpush.bf16.msra.mxu0 0
    %1078 = vmatpush.bf16.msra.mxu0 0
    %1079 = vmatpush.bf16.msra.mxu0 0
    %1080 = vmatpush.bf16.msra.mxu0 0
    %1081 = vmatpush.bf16.msra.mxu0 %v829
    %1082 = vmatpush.bf16.msra.mxu0 %v813
    %1083 = vmatmul.bf16.gmra.mxu0 %v863
    %v1084 = vpop.f32.mrf.mxu0
    %v1085 = vadd.f32 %v701, %v1084
    %v1086 = vpop.f32.mrf.mxu0
    %v1087 = vadd.f32 %v701, %v1086
    %1088 = vdwg.mxu0
    %v1089 = vmax.f32 %v875, 0.0
    %v1090 = vmax.f32 %v889, 0.0
    %v1091 = vmax.f32 %v903, 0.0
    %v1092 = vmax.f32 %v917, 0.0
    %v1093 = vmax.f32 %v931, 0.0
    %v1094 = vmax.f32 %v945, 0.0
    %v1095 = vmax.f32 %v959, 0.0
    %v1096 = vmax.f32 %v973, 0.0
    %v1097 = vmax.f32 %v987, 0.0
    %v1098 = vmax.f32 %v1001, 0.0
    %v1099 = vmax.f32 %v1015, 0.0
    %v1100 = vmax.f32 %v1029, 0.0
    %v1101 = vmax.f32 %v1043, 0.0
    %v1102 = vmax.f32 %v1057, 0.0
    %v1103 = vmax.f32 %v1071, 0.0
    %v1104 = vmax.f32 %v1085, 0.0
    %v1105 = vmax.f32 %v877, 0.0
    %v1106 = vmax.f32 %v891, 0.0
    %v1107 = vmax.f32 %v905, 0.0
    %v1108 = vmax.f32 %v919, 0.0
    %v1109 = vmax.f32 %v933, 0.0
    %v1110 = vmax.f32 %v947, 0.0
    %v1111 = vmax.f32 %v961, 0.0
    %v1112 = vmax.f32 %v975, 0.0
    %v1113 = vmax.f32 %v989, 0.0
    %v1114 = vmax.f32 %v1003, 0.0
    %v1115 = vmax.f32 %v1017, 0.0
    %v1116 = vmax.f32 %v1031, 0.0
    %v1117 = vmax.f32 %v1045, 0.0
    %v1118 = vmax.f32 %v1059, 0.0
    %v1119 = vmax.f32 %v1073, 0.0
    %v1120 = vmax.f32 %v1087, 0.0
    %v1121 = vpack.c.bf16 %v1105, %v1089
    %v1122 = vpack.c.bf16 %v1106, %v1090
    %v1123 = vpack.c.bf16 %v1107, %v1091
    %v1124 = vpack.c.bf16 %v1108, %v1092
    %v1125 = vpack.c.bf16 %v1109, %v1093
    %v1126 = vpack.c.bf16 %v1110, %v1094
    %v1127 = vpack.c.bf16 %v1111, %v1095
    %v1128 = vpack.c.bf16 %v1112, %v1096
    %v1129 = vpack.c.bf16 %v1113, %v1097
    %v1130 = vpack.c.bf16 %v1114, %v1098
    %v1131 = vpack.c.bf16 %v1115, %v1099
    %v1132 = vpack.c.bf16 %v1116, %v1100
    %v1133 = vpack.c.bf16 %v1117, %v1101
    %v1134 = vpack.c.bf16 %v1118, %v1102
    %v1135 = vpack.c.bf16 %v1119, %v1103
    %v1136 = vpack.c.bf16 %v1120, %v1104
    %v1137 = vperm.slane %v49, 3
    %v1394 = vunpack.c.l.b16 %v107
    %v1395 = vunpack.c.l.b16 %v108
    %v1396 = vunpack.c.l.b16 %v109
    %v1397 = vunpack.c.l.b16 %v110
    %v1398 = vunpack.c.l.b16 %v111
    %v1399 = vunpack.c.l.b16 %v112
    %v1400 = vunpack.c.l.b16 %v113
    %v1401 = vunpack.c.l.b16 %v114
    %v1402 = vunpack.c.l.b16 %v115
    %v1403 = vunpack.c.l.b16 %v116
    %v1404 = vunpack.c.l.b16 %v117
    %v1405 = vunpack.c.l.b16 %v118
    %v1406 = vunpack.c.l.b16 %v119
    %v1407 = vunpack.c.l.b16 %v120
    %v1408 = vunpack.c.l.b16 %v121
    %v1409 = vunpack.c.l.b16 %v122
    %v1410 = vunpack.c.l.b16 %v123
    %v1411 = vunpack.c.l.b16 %v124
    %v1412 = vunpack.c.l.b16 %v125
    %v1413 = vunpack.c.l.b16 %v126
    %v1414 = vunpack.c.l.b16 %v127
    %v1415 = vunpack.c.l.b16 %v128
    %v1416 = vunpack.c.l.b16 %v129
    %v1417 = vunpack.c.l.b16 %v130
    %v1418 = vunpack.c.l.b16 %v131
    %v1419 = vunpack.c.l.b16 %v132
    %v1420 = vunpack.c.l.b16 %v133
    %v1421 = vunpack.c.l.b16 %v134
    %v1422 = vunpack.c.l.b16 %v135
    %v1423 = vunpack.c.l.b16 %v136
    %v1424 = vunpack.c.l.b16 %v137
    %v1425 = vunpack.c.l.b16 %v138
    %v1426 = vunpack.c.l.b16 %v139
    %v1427 = vunpack.c.l.b16 %v140
    %v1428 = vunpack.c.l.b16 %v141
    %v1429 = vunpack.c.l.b16 %v142
    %v1430 = vunpack.c.l.b16 %v143
    %v1431 = vunpack.c.l.b16 %v144
    %v1432 = vunpack.c.l.b16 %v145
    %v1433 = vunpack.c.l.b16 %v146
    %v1434 = vunpack.c.l.b16 %v147
    %v1435 = vunpack.c.l.b16 %v148
    %v1436 = vunpack.c.l.b16 %v149
    %v1437 = vunpack.c.l.b16 %v150
    %v1438 = vunpack.c.l.b16 %v151
    %v1439 = vunpack.c.l.b16 %v152
    %v1440 = vunpack.c.l.b16 %v153
    %v1441 = vunpack.c.l.b16 %v154
    %v1442 = vunpack.c.l.b16 %v155
    %v1443 = vunpack.c.l.b16 %v156
    %v1444 = vunpack.c.l.b16 %v157
    %v1445 = vunpack.c.l.b16 %v158
    %v1446 = vunpack.c.l.b16 %v159
    %v1447 = vunpack.c.l.b16 %v160
    %v1448 = vunpack.c.l.b16 %v161
    %v1449 = vunpack.c.l.b16 %v162
    %v1450 = vunpack.c.l.b16 %v163
    %v1451 = vunpack.c.l.b16 %v164
    %v1452 = vunpack.c.l.b16 %v165
    %v1453 = vunpack.c.l.b16 %v166
    %v1454 = vunpack.c.l.b16 %v167
    %v1455 = vunpack.c.l.b16 %v168
    %v1456 = vunpack.c.l.b16 %v169
    %v1457 = vunpack.c.l.b16 %v170
    %v1458 = vunpack.c.l.b16 %v171
    %v1459 = vunpack.c.l.b16 %v172
    %v1460 = vunpack.c.l.b16 %v173
    %v1461 = vunpack.c.l.b16 %v174
    %v1462 = vunpack.c.l.b16 %v175
    %v1463 = vunpack.c.l.b16 %v176
    %v1464 = vunpack.c.l.b16 %v177
    %v1465 = vunpack.c.l.b16 %v178
    %v1466 = vunpack.c.l.b16 %v179
    %v1467 = vunpack.c.l.b16 %v180
    %v1468 = vunpack.c.l.b16 %v181
    %v1469 = vunpack.c.l.b16 %v182
    %v1470 = vunpack.c.l.b16 %v183
    %v1471 = vunpack.c.l.b16 %v184
    %v1472 = vunpack.c.l.b16 %v185
    %v1473 = vunpack.c.l.b16 %v186
    %v1474 = vunpack.c.l.b16 %v187
    %v1475 = vunpack.c.l.b16 %v188
    %v1476 = vunpack.c.l.b16 %v189
    %v1477 = vunpack.c.l.b16 %v190
    %v1478 = vunpack.c.l.b16 %v191
    %v1479 = vunpack.c.l.b16 %v192
    %v1480 = vunpack.c.l.b16 %v193
    %v1481 = vunpack.c.l.b16 %v194
    %v1482 = vunpack.c.l.b16 %v195
    %v1483 = vunpack.c.l.b16 %v196
    %v1484 = vunpack.c.l.b16 %v197
    %v1485 = vunpack.c.l.b16 %v198
    %v1486 = vunpack.c.l.b16 %v199
    %v1487 = vunpack.c.l.b16 %v200
    %v1488 = vunpack.c.l.b16 %v201
    %v1489 = vunpack.c.l.b16 %v202
    %v1490 = vunpack.c.l.b16 %v203
    %v1491 = vunpack.c.l.b16 %v204
    %v1492 = vunpack.c.l.b16 %v205
    %v1493 = vunpack.c.l.b16 %v206
    %v1494 = vunpack.c.l.b16 %v207
    %v1495 = vunpack.c.l.b16 %v208
    %v1496 = vunpack.c.l.b16 %v209
    %v1497 = vunpack.c.l.b16 %v210
    %v1498 = vunpack.c.l.b16 %v211
    %v1499 = vunpack.c.l.b16 %v212
    %v1500 = vunpack.c.l.b16 %v213
    %v1501 = vunpack.c.l.b16 %v214
    %v1502 = vunpack.c.l.b16 %v215
    %v1503 = vunpack.c.l.b16 %v216
    %v1504 = vunpack.c.l.b16 %v217
    %v1505 = vunpack.c.l.b16 %v218
    %v1506 = vunpack.c.l.b16 %v219
    %v1507 = vunpack.c.l.b16 %v220
    %v1508 = vunpack.c.l.b16 %v221
    %v1509 = vunpack.c.l.b16 %v222
    %v1510 = vunpack.c.l.b16 %v223
    %v1511 = vunpack.c.l.b16 %v224
    %v1512 = vunpack.c.l.b16 %v225
    %v1513 = vunpack.c.l.b16 %v226
    %v1514 = vunpack.c.l.b16 %v227
    %v1515 = vunpack.c.l.b16 %v228
    %v1516 = vunpack.c.l.b16 %v229
    %v1517 = vunpack.c.l.b16 %v230
    %v1518 = vunpack.c.l.b16 %v231
    %v1519 = vunpack.c.l.b16 %v232
    %v1520 = vunpack.c.l.b16 %v233
    %v1521 = vunpack.c.l.b16 %v234
    %v1522 = vunpack.c.l.b16 %v235
    %v1523 = vunpack.c.l.b16 %v236
    %v1524 = vunpack.c.l.b16 %v237
    %v1525 = vunpack.c.l.b16 %v238
    %v1526 = vunpack.c.l.b16 %v239
    %v1527 = vunpack.c.l.b16 %v240
    %v1528 = vunpack.c.l.b16 %v241
    %v1529 = vunpack.c.l.b16 %v242
    %v1530 = vunpack.c.l.b16 %v243
    %v1531 = vunpack.c.l.b16 %v244
    %v1532 = vunpack.c.l.b16 %v245
    %v1533 = vunpack.c.l.b16 %v246
    %v1534 = vunpack.c.l.b16 %v247
    %v1535 = vunpack.c.l.b16 %v248
    %v1536 = vunpack.c.l.b16 %v249
    %v1537 = vunpack.c.l.b16 %v250
    %v1538 = vunpack.c.l.b16 %v251
    %v1539 = vunpack.c.l.b16 %v252
    %v1540 = vunpack.c.l.b16 %v253
    %v1541 = vunpack.c.l.b16 %v254
    %v1542 = vunpack.c.l.b16 %v255
    %v1543 = vunpack.c.l.b16 %v256
    %v1544 = vunpack.c.l.b16 %v257
    %v1545 = vunpack.c.l.b16 %v258
    %v1546 = vunpack.c.l.b16 %v259
    %v1547 = vunpack.c.l.b16 %v260
    %v1548 = vunpack.c.l.b16 %v261
    %v1549 = vunpack.c.l.b16 %v262
    %v1550 = vunpack.c.l.b16 %v263
    %v1551 = vunpack.c.l.b16 %v264
    %v1552 = vunpack.c.l.b16 %v265
    %v1553 = vunpack.c.l.b16 %v266
    %v1554 = vunpack.c.l.b16 %v267
    %v1555 = vunpack.c.l.b16 %v268
    %v1556 = vunpack.c.l.b16 %v269
    %v1557 = vunpack.c.l.b16 %v270
    %v1558 = vunpack.c.l.b16 %v271
    %v1559 = vunpack.c.l.b16 %v272
    %v1560 = vunpack.c.l.b16 %v273
    %v1561 = vunpack.c.l.b16 %v274
    %v1562 = vunpack.c.l.b16 %v275
    %v1563 = vunpack.c.l.b16 %v276
    %v1564 = vunpack.c.l.b16 %v277
    %v1565 = vunpack.c.l.b16 %v278
    %v1566 = vunpack.c.l.b16 %v279
    %v1567 = vunpack.c.l.b16 %v280
    %v1568 = vunpack.c.l.b16 %v281
    %v1569 = vunpack.c.l.b16 %v282
    %v1570 = vunpack.c.l.b16 %v283
    %v1571 = vunpack.c.l.b16 %v284
    %v1572 = vunpack.c.l.b16 %v285
    %v1573 = vunpack.c.l.b16 %v286
    %v1574 = vunpack.c.l.b16 %v287
    %v1575 = vunpack.c.l.b16 %v288
    %v1576 = vunpack.c.l.b16 %v289
    %v1577 = vunpack.c.l.b16 %v290
    %v1578 = vunpack.c.l.b16 %v291
    %v1579 = vunpack.c.l.b16 %v292
    %v1580 = vunpack.c.l.b16 %v293
    %v1581 = vunpack.c.l.b16 %v294
    %v1582 = vunpack.c.l.b16 %v295
    %v1583 = vunpack.c.l.b16 %v296
    %v1584 = vunpack.c.l.b16 %v297
    %v1585 = vunpack.c.l.b16 %v298
    %v1586 = vunpack.c.l.b16 %v299
    %v1587 = vunpack.c.l.b16 %v300
    %v1588 = vunpack.c.l.b16 %v301
    %v1589 = vunpack.c.l.b16 %v302
    %v1590 = vunpack.c.l.b16 %v303
    %v1591 = vunpack.c.l.b16 %v304
    %v1592 = vunpack.c.l.b16 %v305
    %v1593 = vunpack.c.l.b16 %v306
    %v1594 = vunpack.c.l.b16 %v307
    %v1595 = vunpack.c.l.b16 %v308
    %v1596 = vunpack.c.l.b16 %v309
    %v1597 = vunpack.c.l.b16 %v310
    %v1598 = vunpack.c.l.b16 %v311
    %v1599 = vunpack.c.l.b16 %v312
    %v1600 = vunpack.c.l.b16 %v313
    %v1601 = vunpack.c.l.b16 %v314
    %v1602 = vunpack.c.l.b16 %v315
    %v1603 = vunpack.c.l.b16 %v316
    %v1604 = vunpack.c.l.b16 %v317
    %v1605 = vunpack.c.l.b16 %v318
    %v1606 = vunpack.c.l.b16 %v319
    %v1607 = vunpack.c.l.b16 %v320
    %v1608 = vunpack.c.l.b16 %v321
    %v1609 = vunpack.c.l.b16 %v322
    %v1610 = vunpack.c.l.b16 %v323
    %v1611 = vunpack.c.l.b16 %v324
    %v1612 = vunpack.c.l.b16 %v325
    %v1613 = vunpack.c.l.b16 %v326
    %v1614 = vunpack.c.l.b16 %v327
    %v1615 = vunpack.c.l.b16 %v328
    %v1616 = vunpack.c.l.b16 %v329
    %v1617 = vunpack.c.l.b16 %v330
    %v1618 = vunpack.c.l.b16 %v331
    %v1619 = vunpack.c.l.b16 %v332
    %v1620 = vunpack.c.l.b16 %v333
    %v1621 = vunpack.c.l.b16 %v334
    %v1622 = vunpack.c.l.b16 %v335
    %v1623 = vunpack.c.l.b16 %v336
    %v1624 = vunpack.c.l.b16 %v337
    %v1625 = vunpack.c.l.b16 %v338
    %v1626 = vunpack.c.l.b16 %v339
    %v1627 = vunpack.c.l.b16 %v340
    %v1628 = vunpack.c.l.b16 %v341
    %v1629 = vunpack.c.l.b16 %v342
    %v1630 = vunpack.c.l.b16 %v343
    %v1631 = vunpack.c.l.b16 %v344
    %v1632 = vunpack.c.l.b16 %v345
    %v1633 = vunpack.c.l.b16 %v346
    %v1634 = vunpack.c.l.b16 %v347
    %v1635 = vunpack.c.l.b16 %v348
    %v1636 = vunpack.c.l.b16 %v349
    %v1637 = vunpack.c.l.b16 %v350
    %v1638 = vunpack.c.l.b16 %v351
    %v1639 = vunpack.c.l.b16 %v352
    %v1640 = vunpack.c.l.b16 %v353
    %v1641 = vunpack.c.l.b16 %v354
    %v1642 = vunpack.c.l.b16 %v355
    %v1643 = vunpack.c.l.b16 %v356
    %v1644 = vunpack.c.l.b16 %v357
    %v1645 = vunpack.c.l.b16 %v358
    %v1646 = vunpack.c.l.b16 %v359
    %v1647 = vunpack.c.l.b16 %v360
    %v1648 = vunpack.c.l.b16 %v361
    %v1649 = vunpack.c.l.b16 %v362
    %v1650 = vpack.c.b16 %v1395, %v1394
    %v1651 = vpack.c.b16 %v1397, %v1396
    %v1652 = vpack.c.b16 %v1399, %v1398
    %v1653 = vpack.c.b16 %v1401, %v1400
    %v1654 = vpack.c.b16 %v1403, %v1402
    %v1655 = vpack.c.b16 %v1405, %v1404
    %v1656 = vpack.c.b16 %v1407, %v1406
    %v1657 = vpack.c.b16 %v1409, %v1408
    %v1658 = vpack.c.b16 %v1411, %v1410
    %v1659 = vpack.c.b16 %v1413, %v1412
    %v1660 = vpack.c.b16 %v1415, %v1414
    %v1661 = vpack.c.b16 %v1417, %v1416
    %v1662 = vpack.c.b16 %v1419, %v1418
    %v1663 = vpack.c.b16 %v1421, %v1420
    %v1664 = vpack.c.b16 %v1423, %v1422
    %v1665 = vpack.c.b16 %v1425, %v1424
    %v1666 = vpack.c.b16 %v1427, %v1426
    %v1667 = vpack.c.b16 %v1429, %v1428
    %v1668 = vpack.c.b16 %v1431, %v1430
    %v1669 = vpack.c.b16 %v1433, %v1432
    %v1670 = vpack.c.b16 %v1435, %v1434
    %v1671 = vpack.c.b16 %v1437, %v1436
    %v1672 = vpack.c.b16 %v1439, %v1438
    %v1673 = vpack.c.b16 %v1441, %v1440
    %v1674 = vpack.c.b16 %v1443, %v1442
    %v1675 = vpack.c.b16 %v1445, %v1444
    %v1676 = vpack.c.b16 %v1447, %v1446
    %v1677 = vpack.c.b16 %v1449, %v1448
    %v1678 = vpack.c.b16 %v1451, %v1450
    %v1679 = vpack.c.b16 %v1453, %v1452
    %v1680 = vpack.c.b16 %v1455, %v1454
    %v1681 = vpack.c.b16 %v1457, %v1456
    %v1682 = vpack.c.b16 %v1459, %v1458
    %v1683 = vpack.c.b16 %v1461, %v1460
    %v1684 = vpack.c.b16 %v1463, %v1462
    %v1685 = vpack.c.b16 %v1465, %v1464
    %v1686 = vpack.c.b16 %v1467, %v1466
    %v1687 = vpack.c.b16 %v1469, %v1468
    %v1688 = vpack.c.b16 %v1471, %v1470
    %v1689 = vpack.c.b16 %v1473, %v1472
    %v1690 = vpack.c.b16 %v1475, %v1474
    %v1691 = vpack.c.b16 %v1477, %v1476
    %v1692 = vpack.c.b16 %v1479, %v1478
    %v1693 = vpack.c.b16 %v1481, %v1480
    %v1694 = vpack.c.b16 %v1483, %v1482
    %v1695 = vpack.c.b16 %v1485, %v1484
    %v1696 = vpack.c.b16 %v1487, %v1486
    %v1697 = vpack.c.b16 %v1489, %v1488
    %v1698 = vpack.c.b16 %v1491, %v1490
    %v1699 = vpack.c.b16 %v1493, %v1492
    %v1700 = vpack.c.b16 %v1495, %v1494
    %v1701 = vpack.c.b16 %v1497, %v1496
    %v1702 = vpack.c.b16 %v1499, %v1498
    %v1703 = vpack.c.b16 %v1501, %v1500
    %v1704 = vpack.c.b16 %v1503, %v1502
    %v1705 = vpack.c.b16 %v1505, %v1504
    %v1706 = vpack.c.b16 %v1507, %v1506
    %v1707 = vpack.c.b16 %v1509, %v1508
    %v1708 = vpack.c.b16 %v1511, %v1510
    %v1709 = vpack.c.b16 %v1513, %v1512
    %v1710 = vpack.c.b16 %v1515, %v1514
    %v1711 = vpack.c.b16 %v1517, %v1516
    %v1712 = vpack.c.b16 %v1519, %v1518
    %v1713 = vpack.c.b16 %v1521, %v1520
    %v1714 = vpack.c.b16 %v1523, %v1522
    %v1715 = vpack.c.b16 %v1525, %v1524
    %v1716 = vpack.c.b16 %v1527, %v1526
    %v1717 = vpack.c.b16 %v1529, %v1528
    %v1718 = vpack.c.b16 %v1531, %v1530
    %v1719 = vpack.c.b16 %v1533, %v1532
    %v1720 = vpack.c.b16 %v1535, %v1534
    %v1721 = vpack.c.b16 %v1537, %v1536
    %v1722 = vpack.c.b16 %v1539, %v1538
    %v1723 = vpack.c.b16 %v1541, %v1540
    %v1724 = vpack.c.b16 %v1543, %v1542
    %v1725 = vpack.c.b16 %v1545, %v1544
    %v1726 = vpack.c.b16 %v1547, %v1546
    %v1727 = vpack.c.b16 %v1549, %v1548
    %v1728 = vpack.c.b16 %v1551, %v1550
    %v1729 = vpack.c.b16 %v1553, %v1552
    %v1730 = vpack.c.b16 %v1555, %v1554
    %v1731 = vpack.c.b16 %v1557, %v1556
    %v1732 = vpack.c.b16 %v1559, %v1558
    %v1733 = vpack.c.b16 %v1561, %v1560
    %v1734 = vpack.c.b16 %v1563, %v1562
    %v1735 = vpack.c.b16 %v1565, %v1564
    %v1736 = vpack.c.b16 %v1567, %v1566
    %v1737 = vpack.c.b16 %v1569, %v1568
    %v1738 = vpack.c.b16 %v1571, %v1570
    %v1739 = vpack.c.b16 %v1573, %v1572
    %v1740 = vpack.c.b16 %v1575, %v1574
    %v1741 = vpack.c.b16 %v1577, %v1576
    %v1742 = vpack.c.b16 %v1579, %v1578
    %v1743 = vpack.c.b16 %v1581, %v1580
    %v1744 = vpack.c.b16 %v1583, %v1582
    %v1745 = vpack.c.b16 %v1585, %v1584
    %v1746 = vpack.c.b16 %v1587, %v1586
    %v1747 = vpack.c.b16 %v1589, %v1588
    %v1748 = vpack.c.b16 %v1591, %v1590
    %v1749 = vpack.c.b16 %v1593, %v1592
    %v1750 = vpack.c.b16 %v1595, %v1594
    %v1751 = vpack.c.b16 %v1597, %v1596
    %v1752 = vpack.c.b16 %v1599, %v1598
    %v1753 = vpack.c.b16 %v1601, %v1600
    %v1754 = vpack.c.b16 %v1603, %v1602
    %v1755 = vpack.c.b16 %v1605, %v1604
    %v1756 = vpack.c.b16 %v1607, %v1606
    %v1757 = vpack.c.b16 %v1609, %v1608
    %v1758 = vpack.c.b16 %v1611, %v1610
    %v1759 = vpack.c.b16 %v1613, %v1612
    %v1760 = vpack.c.b16 %v1615, %v1614
    %v1761 = vpack.c.b16 %v1617, %v1616
    %v1762 = vpack.c.b16 %v1619, %v1618
    %v1763 = vpack.c.b16 %v1621, %v1620
    %v1764 = vpack.c.b16 %v1623, %v1622
    %v1765 = vpack.c.b16 %v1625, %v1624
    %v1766 = vpack.c.b16 %v1627, %v1626
    %v1767 = vpack.c.b16 %v1629, %v1628
    %v1768 = vpack.c.b16 %v1631, %v1630
    %v1769 = vpack.c.b16 %v1633, %v1632
    %v1770 = vpack.c.b16 %v1635, %v1634
    %v1771 = vpack.c.b16 %v1637, %v1636
    %v1772 = vpack.c.b16 %v1639, %v1638
    %v1773 = vpack.c.b16 %v1641, %v1640
    %v1774 = vpack.c.b16 %v1643, %v1642
    %v1775 = vpack.c.b16 %v1645, %v1644
    %v1776 = vpack.c.b16 %v1647, %v1646
    %v1777 = vpack.c.b16 %v1649, %v1648
    %1906 = vmatpush.bf16.msra.mxu0 %v1657
    %1907 = vmatpush.bf16.msra.mxu0 %v1656
    %1908 = vmatpush.bf16.msra.mxu0 %v1655
    %1909 = vmatpush.bf16.msra.mxu0 %v1654
    %1910 = vmatpush.bf16.msra.mxu0 %v1653
    %1911 = vmatpush.bf16.msra.mxu0 %v1652
    %1912 = vmatpush.bf16.msra.mxu0 %v1651
    %1913 = vmatpush.bf16.msra.mxu0 %v1650
    %1914 = vmatmul.bf16.gmra.mxu0 %v1121
    %v1915 = vpop.f32.mrf.mxu0
    %v1916 = vadd.f32 %v1137, %v1915
    %v1917 = vpop.f32.mrf.mxu0
    %v1918 = vadd.f32 %v1137, %v1917
    %1919 = vdwg.mxu0
    %1920 = vmatpush.bf16.msra.mxu0 %v1665
    %1921 = vmatpush.bf16.msra.mxu0 %v1664
    %1922 = vmatpush.bf16.msra.mxu0 %v1663
    %1923 = vmatpush.bf16.msra.mxu0 %v1662
    %1924 = vmatpush.bf16.msra.mxu0 %v1661
    %1925 = vmatpush.bf16.msra.mxu0 %v1660
    %1926 = vmatpush.bf16.msra.mxu0 %v1659
    %1927 = vmatpush.bf16.msra.mxu0 %v1658
    %1928 = vmatmul.bf16.gmra.mxu0 %v1122
    %v1929 = vpop.f32.mrf.mxu0
    %v1930 = vadd.f32 %v1916, %v1929
    %v1931 = vpop.f32.mrf.mxu0
    %v1932 = vadd.f32 %v1918, %v1931
    %1933 = vdwg.mxu0
    %1934 = vmatpush.bf16.msra.mxu0 %v1673
    %1935 = vmatpush.bf16.msra.mxu0 %v1672
    %1936 = vmatpush.bf16.msra.mxu0 %v1671
    %1937 = vmatpush.bf16.msra.mxu0 %v1670
    %1938 = vmatpush.bf16.msra.mxu0 %v1669
    %1939 = vmatpush.bf16.msra.mxu0 %v1668
    %1940 = vmatpush.bf16.msra.mxu0 %v1667
    %1941 = vmatpush.bf16.msra.mxu0 %v1666
    %1942 = vmatmul.bf16.gmra.mxu0 %v1123
    %v1943 = vpop.f32.mrf.mxu0
    %v1944 = vadd.f32 %v1930, %v1943
    %v1945 = vpop.f32.mrf.mxu0
    %v1946 = vadd.f32 %v1932, %v1945
    %1947 = vdwg.mxu0
    %1948 = vmatpush.bf16.msra.mxu0 %v1681
    %1949 = vmatpush.bf16.msra.mxu0 %v1680
    %1950 = vmatpush.bf16.msra.mxu0 %v1679
    %1951 = vmatpush.bf16.msra.mxu0 %v1678
    %1952 = vmatpush.bf16.msra.mxu0 %v1677
    %1953 = vmatpush.bf16.msra.mxu0 %v1676
    %1954 = vmatpush.bf16.msra.mxu0 %v1675
    %1955 = vmatpush.bf16.msra.mxu0 %v1674
    %1956 = vmatmul.bf16.gmra.mxu0 %v1124
    %v1957 = vpop.f32.mrf.mxu0
    %v1958 = vadd.f32 %v1944, %v1957
    %v1959 = vpop.f32.mrf.mxu0
    %v1960 = vadd.f32 %v1946, %v1959
    %1961 = vdwg.mxu0
    %1962 = vmatpush.bf16.msra.mxu0 %v1689
    %1963 = vmatpush.bf16.msra.mxu0 %v1688
    %1964 = vmatpush.bf16.msra.mxu0 %v1687
    %1965 = vmatpush.bf16.msra.mxu0 %v1686
    %1966 = vmatpush.bf16.msra.mxu0 %v1685
    %1967 = vmatpush.bf16.msra.mxu0 %v1684
    %1968 = vmatpush.bf16.msra.mxu0 %v1683
    %1969 = vmatpush.bf16.msra.mxu0 %v1682
    %1970 = vmatmul.bf16.gmra.mxu0 %v1125
    %v1971 = vpop.f32.mrf.mxu0
    %v1972 = vadd.f32 %v1958, %v1971
    %v1973 = vpop.f32.mrf.mxu0
    %v1974 = vadd.f32 %v1960, %v1973
    %1975 = vdwg.mxu0
    %1976 = vmatpush.bf16.msra.mxu0 %v1697
    %1977 = vmatpush.bf16.msra.mxu0 %v1696
    %1978 = vmatpush.bf16.msra.mxu0 %v1695
    %1979 = vmatpush.bf16.msra.mxu0 %v1694
    %1980 = vmatpush.bf16.msra.mxu0 %v1693
    %1981 = vmatpush.bf16.msra.mxu0 %v1692
    %1982 = vmatpush.bf16.msra.mxu0 %v1691
    %1983 = vmatpush.bf16.msra.mxu0 %v1690
    %1984 = vmatmul.bf16.gmra.mxu0 %v1126
    %v1985 = vpop.f32.mrf.mxu0
    %v1986 = vadd.f32 %v1972, %v1985
    %v1987 = vpop.f32.mrf.mxu0
    %v1988 = vadd.f32 %v1974, %v1987
    %1989 = vdwg.mxu0
    %1990 = vmatpush.bf16.msra.mxu0 %v1705
    %1991 = vmatpush.bf16.msra.mxu0 %v1704
    %1992 = vmatpush.bf16.msra.mxu0 %v1703
    %1993 = vmatpush.bf16.msra.mxu0 %v1702
    %1994 = vmatpush.bf16.msra.mxu0 %v1701
    %1995 = vmatpush.bf16.msra.mxu0 %v1700
    %1996 = vmatpush.bf16.msra.mxu0 %v1699
    %1997 = vmatpush.bf16.msra.mxu0 %v1698
    %1998 = vmatmul.bf16.gmra.mxu0 %v1127
    %v1999 = vpop.f32.mrf.mxu0
    %v2000 = vadd.f32 %v1986, %v1999
    %v2001 = vpop.f32.mrf.mxu0
    %v2002 = vadd.f32 %v1988, %v2001
    %2003 = vdwg.mxu0
    %2004 = vmatpush.bf16.msra.mxu0 %v1713
    %2005 = vmatpush.bf16.msra.mxu0 %v1712
    %2006 = vmatpush.bf16.msra.mxu0 %v1711
    %2007 = vmatpush.bf16.msra.mxu0 %v1710
    %2008 = vmatpush.bf16.msra.mxu0 %v1709
    %2009 = vmatpush.bf16.msra.mxu0 %v1708
    %2010 = vmatpush.bf16.msra.mxu0 %v1707
    %2011 = vmatpush.bf16.msra.mxu0 %v1706
    %2012 = vmatmul.bf16.gmra.mxu0 %v1128
    %v2013 = vpop.f32.mrf.mxu0
    %v2014 = vadd.f32 %v2000, %v2013
    %v2015 = vpop.f32.mrf.mxu0
    %v2016 = vadd.f32 %v2002, %v2015
    %2017 = vdwg.mxu0
    %2018 = vmatpush.bf16.msra.mxu0 %v1721
    %2019 = vmatpush.bf16.msra.mxu0 %v1720
    %2020 = vmatpush.bf16.msra.mxu0 %v1719
    %2021 = vmatpush.bf16.msra.mxu0 %v1718
    %2022 = vmatpush.bf16.msra.mxu0 %v1717
    %2023 = vmatpush.bf16.msra.mxu0 %v1716
    %2024 = vmatpush.bf16.msra.mxu0 %v1715
    %2025 = vmatpush.bf16.msra.mxu0 %v1714
    %2026 = vmatmul.bf16.gmra.mxu0 %v1129
    %v2027 = vpop.f32.mrf.mxu0
    %v2028 = vadd.f32 %v2014, %v2027
    %v2029 = vpop.f32.mrf.mxu0
    %v2030 = vadd.f32 %v2016, %v2029
    %2031 = vdwg.mxu0
    %2032 = vmatpush.bf16.msra.mxu0 %v1729
    %2033 = vmatpush.bf16.msra.mxu0 %v1728
    %2034 = vmatpush.bf16.msra.mxu0 %v1727
    %2035 = vmatpush.bf16.msra.mxu0 %v1726
    %2036 = vmatpush.bf16.msra.mxu0 %v1725
    %2037 = vmatpush.bf16.msra.mxu0 %v1724
    %2038 = vmatpush.bf16.msra.mxu0 %v1723
    %2039 = vmatpush.bf16.msra.mxu0 %v1722
    %2040 = vmatmul.bf16.gmra.mxu0 %v1130
    %v2041 = vpop.f32.mrf.mxu0
    %v2042 = vadd.f32 %v2028, %v2041
    %v2043 = vpop.f32.mrf.mxu0
    %v2044 = vadd.f32 %v2030, %v2043
    %2045 = vdwg.mxu0
    %2046 = vmatpush.bf16.msra.mxu0 %v1737
    %2047 = vmatpush.bf16.msra.mxu0 %v1736
    %2048 = vmatpush.bf16.msra.mxu0 %v1735
    %2049 = vmatpush.bf16.msra.mxu0 %v1734
    %2050 = vmatpush.bf16.msra.mxu0 %v1733
    %2051 = vmatpush.bf16.msra.mxu0 %v1732
    %2052 = vmatpush.bf16.msra.mxu0 %v1731
    %2053 = vmatpush.bf16.msra.mxu0 %v1730
    %2054 = vmatmul.bf16.gmra.mxu0 %v1131
    %v2055 = vpop.f32.mrf.mxu0
    %v2056 = vadd.f32 %v2042, %v2055
    %v2057 = vpop.f32.mrf.mxu0
    %v2058 = vadd.f32 %v2044, %v2057
    %2059 = vdwg.mxu0
    %2060 = vmatpush.bf16.msra.mxu0 %v1745
    %2061 = vmatpush.bf16.msra.mxu0 %v1744
    %2062 = vmatpush.bf16.msra.mxu0 %v1743
    %2063 = vmatpush.bf16.msra.mxu0 %v1742
    %2064 = vmatpush.bf16.msra.mxu0 %v1741
    %2065 = vmatpush.bf16.msra.mxu0 %v1740
    %2066 = vmatpush.bf16.msra.mxu0 %v1739
    %2067 = vmatpush.bf16.msra.mxu0 %v1738
    %2068 = vmatmul.bf16.gmra.mxu0 %v1132
    %v2069 = vpop.f32.mrf.mxu0
    %v2070 = vadd.f32 %v2056, %v2069
    %v2071 = vpop.f32.mrf.mxu0
    %v2072 = vadd.f32 %v2058, %v2071
    %2073 = vdwg.mxu0
    %2074 = vmatpush.bf16.msra.mxu0 %v1753
    %2075 = vmatpush.bf16.msra.mxu0 %v1752
    %2076 = vmatpush.bf16.msra.mxu0 %v1751
    %2077 = vmatpush.bf16.msra.mxu0 %v1750
    %2078 = vmatpush.bf16.msra.mxu0 %v1749
    %2079 = vmatpush.bf16.msra.mxu0 %v1748
    %2080 = vmatpush.bf16.msra.mxu0 %v1747
    %2081 = vmatpush.bf16.msra.mxu0 %v1746
    %2082 = vmatmul.bf16.gmra.mxu0 %v1133
    %v2083 = vpop.f32.mrf.mxu0
    %v2084 = vadd.f32 %v2070, %v2083
    %v2085 = vpop.f32.mrf.mxu0
    %v2086 = vadd.f32 %v2072, %v2085
    %2087 = vdwg.mxu0
    %2088 = vmatpush.bf16.msra.mxu0 %v1761
    %2089 = vmatpush.bf16.msra.mxu0 %v1760
    %2090 = vmatpush.bf16.msra.mxu0 %v1759
    %2091 = vmatpush.bf16.msra.mxu0 %v1758
    %2092 = vmatpush.bf16.msra.mxu0 %v1757
    %2093 = vmatpush.bf16.msra.mxu0 %v1756
    %2094 = vmatpush.bf16.msra.mxu0 %v1755
    %2095 = vmatpush.bf16.msra.mxu0 %v1754
    %2096 = vmatmul.bf16.gmra.mxu0 %v1134
    %v2097 = vpop.f32.mrf.mxu0
    %v2098 = vadd.f32 %v2084, %v2097
    %v2099 = vpop.f32.mrf.mxu0
    %v2100 = vadd.f32 %v2086, %v2099
    %2101 = vdwg.mxu0
    %2102 = vmatpush.bf16.msra.mxu0 %v1769
    %2103 = vmatpush.bf16.msra.mxu0 %v1768
    %2104 = vmatpush.bf16.msra.mxu0 %v1767
    %2105 = vmatpush.bf16.msra.mxu0 %v1766
    %2106 = vmatpush.bf16.msra.mxu0 %v1765
    %2107 = vmatpush.bf16.msra.mxu0 %v1764
    %2108 = vmatpush.bf16.msra.mxu0 %v1763
    %2109 = vmatpush.bf16.msra.mxu0 %v1762
    %2110 = vmatmul.bf16.gmra.mxu0 %v1135
    %v2111 = vpop.f32.mrf.mxu0
    %v2112 = vadd.f32 %v2098, %v2111
    %v2113 = vpop.f32.mrf.mxu0
    %v2114 = vadd.f32 %v2100, %v2113
    %2115 = vdwg.mxu0
    %2116 = vmatpush.bf16.msra.mxu0 %v1777
    %2117 = vmatpush.bf16.msra.mxu0 %v1776
    %2118 = vmatpush.bf16.msra.mxu0 %v1775
    %2119 = vmatpush.bf16.msra.mxu0 %v1774
    %2120 = vmatpush.bf16.msra.mxu0 %v1773
    %2121 = vmatpush.bf16.msra.mxu0 %v1772
    %2122 = vmatpush.bf16.msra.mxu0 %v1771
    %2123 = vmatpush.bf16.msra.mxu0 %v1770
    %2124 = vmatmul.bf16.gmra.mxu0 %v1136
    %v2125 = vpop.f32.mrf.mxu0
    %v2126 = vadd.f32 %v2112, %v2125
    %v2127 = vpop.f32.mrf.mxu0
    %v2128 = vadd.f32 %v2114, %v2127
    %2129 = vdwg.mxu0
    %v2130 = vadd.f32 %v647, %v2126
    %v2131 = vadd.f32 %v648, %v2128
    %v2132 = vsel %vm377, %v2130, 0.0
    %2133 = vadd.xlane.f32.xlu0 %v2132
    %v2134 = vpop.xlane.xlu0 %2133
    %v2135 = vsel %vm377, %v2131, 0.0
    %2136 = vadd.xlane.f32.xlu0 %v2135
    %v2137 = vpop.xlane.xlu0 %2136
    %v2138 = vmul.f32 %v2134, %v604
    %v2139 = vmul.f32 %v2137, %v604
    %v2140 = vsub.f32 %v2130, %v2138
    %v2141 = vsub.f32 %v2131, %v2139
    %v2142 = vmul.f32 %v2140, %v2140
    %v2143 = vmul.f32 %v2141, %v2141
    %v2144 = vsel %vm377, %v2142, 0.0
    %2145 = vadd.xlane.f32.xlu0 %v2144
    %v2146 = vpop.xlane.xlu0 %2145
    %v2147 = vsel %vm377, %v2143, 0.0
    %2148 = vadd.xlane.f32.xlu0 %v2147
    %v2149 = vpop.xlane.xlu0 %2148
    %v2150 = vmul.f32 %v2146, %v604
    %v2151 = vmul.f32 %v2149, %v604
    %v2152 = vadd.f32 %v2150, 1e-05
    %v2153 = vadd.f32 %v2151, 1e-05
    %v2154 = vrsqrt.pop %v2152
    %v2155 = vmul.f32 %v2154, %v2152
    %v2156 = vmul.f32 %v2155, %v2154
    %v2157 = vmul.f32 0.5, %v2156
    %v2158 = vsub.f32 1.5, %v2157
    %v2159 = vmul.f32 %v2154, %v2158
    %vm2160 = vweird.f32 %v2152
    %vm2161 = vweird.f32 %v2154
    %vm2162 = vmor %vm2160, %vm2161
    %v2163 = vsel %vm2162, %v2154, %v2159
    %v2164 = vrsqrt.pop %v2153
    %v2165 = vmul.f32 %v2164, %v2153
    %v2166 = vmul.f32 %v2165, %v2164
    %v2167 = vmul.f32 0.5, %v2166
    %v2168 = vsub.f32 1.5, %v2167
    %v2169 = vmul.f32 %v2164, %v2168
    %vm2170 = vweird.f32 %v2153
    %vm2171 = vweird.f32 %v2164
    %vm2172 = vmor %vm2170, %vm2171
    %v2173 = vsel %vm2172, %v2164, %v2169
    %v2174 = vmul.f32 %v2140, %v2163
    %v2175 = vmul.f32 %v2141, %v2173
    %v2176 = vperm.slane %v49, 4
    %v2177 = vmul.f32 %v2174, %v2176
    %v2178 = vmul.f32 %v2175, %v2176
    %v2179 = vperm.slane %v49, 5
    %v2180 = vadd.f32 %v2177, %v2179
    %v2181 = vadd.f32 %v2178, %v2179
    %s2182 = scalar_lea.vmem %s1, 48
    %v2183 = vld [vmem:[%s2182] sm:$0xf]
    %v2184 = vld [vmem:[%s2182 + $0x4] sm:$0xf]
    %v2185 = vld [vmem:[%s2182 + $0x8] sm:$0xf]
    %v2186 = vld [vmem:[%s2182 + $0xc] sm:$0xf]
    %s2187 = scalar_lea.vmem %s1, 64
    %v2188 = vld [vmem:[%s2187] sm:$0xf]
    %v2189 = vld [vmem:[%s2187 + $0x4] sm:$0xf]
    %v2190 = vld [vmem:[%s2187 + $0x8] sm:$0xf]
    %v2191 = vld [vmem:[%s2187 + $0xc] sm:$0xf]
    %s2192 = scalar_lea.vmem %s1, 80
    %v2193 = vld [vmem:[%s2192] sm:$0xf]
    %v2194 = vld [vmem:[%s2192 + $0x4] sm:$0xf]
    %v2195 = vld [vmem:[%s2192 + $0x8] sm:$0xf]
    %v2196 = vld [vmem:[%s2192 + $0xc] sm:$0xf]
    %s2197 = scalar_lea.vmem %s2, 16
    %v2198 = vld [vmem:[%s2197] sm:$0xf]
    %v2199 = vld [vmem:[%s2197 + $0x4] sm:$0xf]
    %v2200 = vld [vmem:[%s2197 + $0x8] sm:$0xf]
    %v2201 = vld [vmem:[%s2197 + $0xc] sm:$0xf]
    %s2202 = scalar_lea.vmem %s3, 256
    %v2203 = vld [vmem:[%s2202] sm:$0xff]
    %v2204 = vld [vmem:[%s2202 + $0x8] sm:$0xff]
    %v2205 = vld [vmem:[%s2202 + $0x10] sm:$0xff]
    %v2206 = vld [vmem:[%s2202 + $0x18] sm:$0xff]
    %v2207 = vld [vmem:[%s2202 + $0x20] sm:$0xff]
    %v2208 = vld [vmem:[%s2202 + $0x28] sm:$0xff]
    %v2209 = vld [vmem:[%s2202 + $0x30] sm:$0xff]
    %v2210 = vld [vmem:[%s2202 + $0x38] sm:$0xff]
    %v2211 = vld [vmem:[%s2202 + $0x40] sm:$0xff]
    %v2212 = vld [vmem:[%s2202 + $0x48] sm:$0xff]
    %v2213 = vld [vmem:[%s2202 + $0x50] sm:$0xff]
    %v2214 = vld [vmem:[%s2202 + $0x58] sm:$0xff]
    %v2215 = vld [vmem:[%s2202 + $0x60] sm:$0xff]
    %v2216 = vld [vmem:[%s2202 + $0x68] sm:$0xff]
    %v2217 = vld [vmem:[%s2202 + $0x70] sm:$0xff]
    %v2218 = vld [vmem:[%s2202 + $0x78] sm:$0xff]
    %v2219 = vld [vmem:[%s2202 + $0x80] sm:$0xff]
    %v2220 = vld [vmem:[%s2202 + $0x88] sm:$0xff]
    %v2221 = vld [vmem:[%s2202 + $0x90] sm:$0xff]
    %v2222 = vld [vmem:[%s2202 + $0x98] sm:$0xff]
    %v2223 = vld [vmem:[%s2202 + $0xa0] sm:$0xff]
    %v2224 = vld [vmem:[%s2202 + $0xa8] sm:$0xff]
    %v2225 = vld [vmem:[%s2202 + $0xb0] sm:$0xff]
    %v2226 = vld [vmem:[%s2202 + $0xb8] sm:$0xff]
    %v2227 = vld [vmem:[%s2202 + $0xc0] sm:$0xff]
    %v2228 = vld [vmem:[%s2202 + $0xc8] sm:$0xff]
    %v2229 = vld [vmem:[%s2202 + $0xd0] sm:$0xff]
    %v2230 = vld [vmem:[%s2202 + $0xd8] sm:$0xff]
    %v2231 = vld [vmem:[%s2202 + $0xe0] sm:$0xff]
    %v2232 = vld [vmem:[%s2202 + $0xe8] sm:$0xff]
    %v2233 = vld [vmem:[%s2202 + $0xf0] sm:$0xff]
    %v2234 = vld [vmem:[%s2202 + $0xf8] sm:$0xff]
    %s2235 = scalar_lea.vmem %s4, 1024
    %v2236 = vld [vmem:[%s2235] sm:$0xf]
    %v2237 = vld [vmem:[%s2235 + $0x4] sm:$0xf]
    %v2238 = vld [vmem:[%s2235 + $0x8] sm:$0xf]
    %v2239 = vld [vmem:[%s2235 + $0xc] sm:$0xf]
    %v2240 = vld [vmem:[%s2235 + $0x10] sm:$0xf]
    %v2241 = vld [vmem:[%s2235 + $0x14] sm:$0xf]
    %v2242 = vld [vmem:[%s2235 + $0x18] sm:$0xf]
    %v2243 = vld [vmem:[%s2235 + $0x1c] sm:$0xf]
    %v2244 = vld [vmem:[%s2235 + $0x20] sm:$0xf]
    %v2245 = vld [vmem:[%s2235 + $0x24] sm:$0xf]
    %v2246 = vld [vmem:[%s2235 + $0x28] sm:$0xf]
    %v2247 = vld [vmem:[%s2235 + $0x2c] sm:$0xf]
    %v2248 = vld [vmem:[%s2235 + $0x30] sm:$0xf]
    %v2249 = vld [vmem:[%s2235 + $0x34] sm:$0xf]
    %v2250 = vld [vmem:[%s2235 + $0x38] sm:$0xf]
    %v2251 = vld [vmem:[%s2235 + $0x3c] sm:$0xf]
    %v2252 = vld [vmem:[%s2235 + $0x40] sm:$0xf]
    %v2253 = vld [vmem:[%s2235 + $0x44] sm:$0xf]
    %v2254 = vld [vmem:[%s2235 + $0x48] sm:$0xf]
    %v2255 = vld [vmem:[%s2235 + $0x4c] sm:$0xf]
    %v2256 = vld [vmem:[%s2235 + $0x50] sm:$0xf]
    %v2257 = vld [vmem:[%s2235 + $0x54] sm:$0xf]
    %v2258 = vld [vmem:[%s2235 + $0x58] sm:$0xf]
    %v2259 = vld [vmem:[%s2235 + $0x5c] sm:$0xf]
    %v2260 = vld [vmem:[%s2235 + $0x60] sm:$0xf]
    %v2261 = vld [vmem:[%s2235 + $0x64] sm:$0xf]
    %v2262 = vld [vmem:[%s2235 + $0x68] sm:$0xf]
    %v2263 = vld [vmem:[%s2235 + $0x6c] sm:$0xf]
    %v2264 = vld [vmem:[%s2235 + $0x70] sm:$0xf]
    %v2265 = vld [vmem:[%s2235 + $0x74] sm:$0xf]
    %v2266 = vld [vmem:[%s2235 + $0x78] sm:$0xf]
    %v2267 = vld [vmem:[%s2235 + $0x7c] sm:$0xf]
    %v2268 = vld [vmem:[%s2235 + $0x80] sm:$0xf]
    %v2269 = vld [vmem:[%s2235 + $0x84] sm:$0xf]
    %v2270 = vld [vmem:[%s2235 + $0x88] sm:$0xf]
    %v2271 = vld [vmem:[%s2235 + $0x8c] sm:$0xf]
    %v2272 = vld [vmem:[%s2235 + $0x90] sm:$0xf]
    %v2273 = vld [vmem:[%s2235 + $0x94] sm:$0xf]
    %v2274 = vld [vmem:[%s2235 + $0x98] sm:$0xf]
    %v2275 = vld [vmem:[%s2235 + $0x9c] sm:$0xf]
    %v2276 = vld [vmem:[%s2235 + $0xa0] sm:$0xf]
    %v2277 = vld [vmem:[%s2235 + $0xa4] sm:$0xf]
    %v2278 = vld [vmem:[%s2235 + $0xa8] sm:$0xf]
    %v2279 = vld [vmem:[%s2235 + $0xac] sm:$0xf]
    %v2280 = vld [vmem:[%s2235 + $0xb0] sm:$0xf]
    %v2281 = vld [vmem:[%s2235 + $0xb4] sm:$0xf]
    %v2282 = vld [vmem:[%s2235 + $0xb8] sm:$0xf]
    %v2283 = vld [vmem:[%s2235 + $0xbc] sm:$0xf]
    %v2284 = vld [vmem:[%s2235 + $0xc0] sm:$0xf]
    %v2285 = vld [vmem:[%s2235 + $0xc4] sm:$0xf]
    %v2286 = vld [vmem:[%s2235 + $0xc8] sm:$0xf]
    %v2287 = vld [vmem:[%s2235 + $0xcc] sm:$0xf]
    %v2288 = vld [vmem:[%s2235 + $0xd0] sm:$0xf]
    %v2289 = vld [vmem:[%s2235 + $0xd4] sm:$0xf]
    %v2290 = vld [vmem:[%s2235 + $0xd8] sm:$0xf]
    %v2291 = vld [vmem:[%s2235 + $0xdc] sm:$0xf]
    %v2292 = vld [vmem:[%s2235 + $0xe0] sm:$0xf]
    %v2293 = vld [vmem:[%s2235 + $0xe4] sm:$0xf]
    %v2294 = vld [vmem:[%s2235 + $0xe8] sm:$0xf]
    %v2295 = vld [vmem:[%s2235 + $0xec] sm:$0xf]
    %v2296 = vld [vmem:[%s2235 + $0xf0] sm:$0xf]
    %v2297 = vld [vmem:[%s2235 + $0xf4] sm:$0xf]
    %v2298 = vld [vmem:[%s2235 + $0xf8] sm:$0xf]
    %v2299 = vld [vmem:[%s2235 + $0xfc] sm:$0xf]
    %v2300 = vld [vmem:[%s2235 + $0x100] sm:$0xf]
    %v2301 = vld [vmem:[%s2235 + $0x104] sm:$0xf]
    %v2302 = vld [vmem:[%s2235 + $0x108] sm:$0xf]
    %v2303 = vld [vmem:[%s2235 + $0x10c] sm:$0xf]
    %v2304 = vld [vmem:[%s2235 + $0x110] sm:$0xf]
    %v2305 = vld [vmem:[%s2235 + $0x114] sm:$0xf]
    %v2306 = vld [vmem:[%s2235 + $0x118] sm:$0xf]
    %v2307 = vld [vmem:[%s2235 + $0x11c] sm:$0xf]
    %v2308 = vld [vmem:[%s2235 + $0x120] sm:$0xf]
    %v2309 = vld [vmem:[%s2235 + $0x124] sm:$0xf]
    %v2310 = vld [vmem:[%s2235 + $0x128] sm:$0xf]
    %v2311 = vld [vmem:[%s2235 + $0x12c] sm:$0xf]
    %v2312 = vld [vmem:[%s2235 + $0x130] sm:$0xf]
    %v2313 = vld [vmem:[%s2235 + $0x134] sm:$0xf]
    %v2314 = vld [vmem:[%s2235 + $0x138] sm:$0xf]
    %v2315 = vld [vmem:[%s2235 + $0x13c] sm:$0xf]
    %v2316 = vld [vmem:[%s2235 + $0x140] sm:$0xf]
    %v2317 = vld [vmem:[%s2235 + $0x144] sm:$0xf]
    %v2318 = vld [vmem:[%s2235 + $0x148] sm:$0xf]
    %v2319 = vld [vmem:[%s2235 + $0x14c] sm:$0xf]
    %v2320 = vld [vmem:[%s2235 + $0x150] sm:$0xf]
    %v2321 = vld [vmem:[%s2235 + $0x154] sm:$0xf]
    %v2322 = vld [vmem:[%s2235 + $0x158] sm:$0xf]
    %v2323 = vld [vmem:[%s2235 + $0x15c] sm:$0xf]
    %v2324 = vld [vmem:[%s2235 + $0x160] sm:$0xf]
    %v2325 = vld [vmem:[%s2235 + $0x164] sm:$0xf]
    %v2326 = vld [vmem:[%s2235 + $0x168] sm:$0xf]
    %v2327 = vld [vmem:[%s2235 + $0x16c] sm:$0xf]
    %v2328 = vld [vmem:[%s2235 + $0x170] sm:$0xf]
    %v2329 = vld [vmem:[%s2235 + $0x174] sm:$0xf]
    %v2330 = vld [vmem:[%s2235 + $0x178] sm:$0xf]
    %v2331 = vld [vmem:[%s2235 + $0x17c] sm:$0xf]
    %v2332 = vld [vmem:[%s2235 + $0x180] sm:$0xf]
    %v2333 = vld [vmem:[%s2235 + $0x184] sm:$0xf]
    %v2334 = vld [vmem:[%s2235 + $0x188] sm:$0xf]
    %v2335 = vld [vmem:[%s2235 + $0x18c] sm:$0xf]
    %v2336 = vld [vmem:[%s2235 + $0x190] sm:$0xf]
    %v2337 = vld [vmem:[%s2235 + $0x194] sm:$0xf]
    %v2338 = vld [vmem:[%s2235 + $0x198] sm:$0xf]
    %v2339 = vld [vmem:[%s2235 + $0x19c] sm:$0xf]
    %v2340 = vld [vmem:[%s2235 + $0x1a0] sm:$0xf]
    %v2341 = vld [vmem:[%s2235 + $0x1a4] sm:$0xf]
    %v2342 = vld [vmem:[%s2235 + $0x1a8] sm:$0xf]
    %v2343 = vld [vmem:[%s2235 + $0x1ac] sm:$0xf]
    %v2344 = vld [vmem:[%s2235 + $0x1b0] sm:$0xf]
    %v2345 = vld [vmem:[%s2235 + $0x1b4] sm:$0xf]
    %v2346 = vld [vmem:[%s2235 + $0x1b8] sm:$0xf]
    %v2347 = vld [vmem:[%s2235 + $0x1bc] sm:$0xf]
    %v2348 = vld [vmem:[%s2235 + $0x1c0] sm:$0xf]
    %v2349 = vld [vmem:[%s2235 + $0x1c4] sm:$0xf]
    %v2350 = vld [vmem:[%s2235 + $0x1c8] sm:$0xf]
    %v2351 = vld [vmem:[%s2235 + $0x1cc] sm:$0xf]
    %v2352 = vld [vmem:[%s2235 + $0x1d0] sm:$0xf]
    %v2353 = vld [vmem:[%s2235 + $0x1d4] sm:$0xf]
    %v2354 = vld [vmem:[%s2235 + $0x1d8] sm:$0xf]
    %v2355 = vld [vmem:[%s2235 + $0x1dc] sm:$0xf]
    %v2356 = vld [vmem:[%s2235 + $0x1e0] sm:$0xf]
    %v2357 = vld [vmem:[%s2235 + $0x1e4] sm:$0xf]
    %v2358 = vld [vmem:[%s2235 + $0x1e8] sm:$0xf]
    %v2359 = vld [vmem:[%s2235 + $0x1ec] sm:$0xf]
    %v2360 = vld [vmem:[%s2235 + $0x1f0] sm:$0xf]
    %v2361 = vld [vmem:[%s2235 + $0x1f4] sm:$0xf]
    %v2362 = vld [vmem:[%s2235 + $0x1f8] sm:$0xf]
    %v2363 = vld [vmem:[%s2235 + $0x1fc] sm:$0xf]
    %v2364 = vld [vmem:[%s2235 + $0x200] sm:$0xf]
    %v2365 = vld [vmem:[%s2235 + $0x204] sm:$0xf]
    %v2366 = vld [vmem:[%s2235 + $0x208] sm:$0xf]
    %v2367 = vld [vmem:[%s2235 + $0x20c] sm:$0xf]
    %v2368 = vld [vmem:[%s2235 + $0x210] sm:$0xf]
    %v2369 = vld [vmem:[%s2235 + $0x214] sm:$0xf]
    %v2370 = vld [vmem:[%s2235 + $0x218] sm:$0xf]
    %v2371 = vld [vmem:[%s2235 + $0x21c] sm:$0xf]
    %v2372 = vld [vmem:[%s2235 + $0x220] sm:$0xf]
    %v2373 = vld [vmem:[%s2235 + $0x224] sm:$0xf]
    %v2374 = vld [vmem:[%s2235 + $0x228] sm:$0xf]
    %v2375 = vld [vmem:[%s2235 + $0x22c] sm:$0xf]
    %v2376 = vld [vmem:[%s2235 + $0x230] sm:$0xf]
    %v2377 = vld [vmem:[%s2235 + $0x234] sm:$0xf]
    %v2378 = vld [vmem:[%s2235 + $0x238] sm:$0xf]
    %v2379 = vld [vmem:[%s2235 + $0x23c] sm:$0xf]
    %v2380 = vld [vmem:[%s2235 + $0x240] sm:$0xf]
    %v2381 = vld [vmem:[%s2235 + $0x244] sm:$0xf]
    %v2382 = vld [vmem:[%s2235 + $0x248] sm:$0xf]
    %v2383 = vld [vmem:[%s2235 + $0x24c] sm:$0xf]
    %v2384 = vld [vmem:[%s2235 + $0x250] sm:$0xf]
    %v2385 = vld [vmem:[%s2235 + $0x254] sm:$0xf]
    %v2386 = vld [vmem:[%s2235 + $0x258] sm:$0xf]
    %v2387 = vld [vmem:[%s2235 + $0x25c] sm:$0xf]
    %v2388 = vld [vmem:[%s2235 + $0x260] sm:$0xf]
    %v2389 = vld [vmem:[%s2235 + $0x264] sm:$0xf]
    %v2390 = vld [vmem:[%s2235 + $0x268] sm:$0xf]
    %v2391 = vld [vmem:[%s2235 + $0x26c] sm:$0xf]
    %v2392 = vld [vmem:[%s2235 + $0x270] sm:$0xf]
    %v2393 = vld [vmem:[%s2235 + $0x274] sm:$0xf]
    %v2394 = vld [vmem:[%s2235 + $0x278] sm:$0xf]
    %v2395 = vld [vmem:[%s2235 + $0x27c] sm:$0xf]
    %v2396 = vld [vmem:[%s2235 + $0x280] sm:$0xf]
    %v2397 = vld [vmem:[%s2235 + $0x284] sm:$0xf]
    %v2398 = vld [vmem:[%s2235 + $0x288] sm:$0xf]
    %v2399 = vld [vmem:[%s2235 + $0x28c] sm:$0xf]
    %v2400 = vld [vmem:[%s2235 + $0x290] sm:$0xf]
    %v2401 = vld [vmem:[%s2235 + $0x294] sm:$0xf]
    %v2402 = vld [vmem:[%s2235 + $0x298] sm:$0xf]
    %v2403 = vld [vmem:[%s2235 + $0x29c] sm:$0xf]
    %v2404 = vld [vmem:[%s2235 + $0x2a0] sm:$0xf]
    %v2405 = vld [vmem:[%s2235 + $0x2a4] sm:$0xf]
    %v2406 = vld [vmem:[%s2235 + $0x2a8] sm:$0xf]
    %v2407 = vld [vmem:[%s2235 + $0x2ac] sm:$0xf]
    %v2408 = vld [vmem:[%s2235 + $0x2b0] sm:$0xf]
    %v2409 = vld [vmem:[%s2235 + $0x2b4] sm:$0xf]
    %v2410 = vld [vmem:[%s2235 + $0x2b8] sm:$0xf]
    %v2411 = vld [vmem:[%s2235 + $0x2bc] sm:$0xf]
    %v2412 = vld [vmem:[%s2235 + $0x2c0] sm:$0xf]
    %v2413 = vld [vmem:[%s2235 + $0x2c4] sm:$0xf]
    %v2414 = vld [vmem:[%s2235 + $0x2c8] sm:$0xf]
    %v2415 = vld [vmem:[%s2235 + $0x2cc] sm:$0xf]
    %v2416 = vld [vmem:[%s2235 + $0x2d0] sm:$0xf]
    %v2417 = vld [vmem:[%s2235 + $0x2d4] sm:$0xf]
    %v2418 = vld [vmem:[%s2235 + $0x2d8] sm:$0xf]
    %v2419 = vld [vmem:[%s2235 + $0x2dc] sm:$0xf]
    %v2420 = vld [vmem:[%s2235 + $0x2e0] sm:$0xf]
    %v2421 = vld [vmem:[%s2235 + $0x2e4] sm:$0xf]
    %v2422 = vld [vmem:[%s2235 + $0x2e8] sm:$0xf]
    %v2423 = vld [vmem:[%s2235 + $0x2ec] sm:$0xf]
    %v2424 = vld [vmem:[%s2235 + $0x2f0] sm:$0xf]
    %v2425 = vld [vmem:[%s2235 + $0x2f4] sm:$0xf]
    %v2426 = vld [vmem:[%s2235 + $0x2f8] sm:$0xf]
    %v2427 = vld [vmem:[%s2235 + $0x2fc] sm:$0xf]
    %v2428 = vld [vmem:[%s2235 + $0x300] sm:$0xf]
    %v2429 = vld [vmem:[%s2235 + $0x304] sm:$0xf]
    %v2430 = vld [vmem:[%s2235 + $0x308] sm:$0xf]
    %v2431 = vld [vmem:[%s2235 + $0x30c] sm:$0xf]
    %v2432 = vld [vmem:[%s2235 + $0x310] sm:$0xf]
    %v2433 = vld [vmem:[%s2235 + $0x314] sm:$0xf]
    %v2434 = vld [vmem:[%s2235 + $0x318] sm:$0xf]
    %v2435 = vld [vmem:[%s2235 + $0x31c] sm:$0xf]
    %v2436 = vld [vmem:[%s2235 + $0x320] sm:$0xf]
    %v2437 = vld [vmem:[%s2235 + $0x324] sm:$0xf]
    %v2438 = vld [vmem:[%s2235 + $0x328] sm:$0xf]
    %v2439 = vld [vmem:[%s2235 + $0x32c] sm:$0xf]
    %v2440 = vld [vmem:[%s2235 + $0x330] sm:$0xf]
    %v2441 = vld [vmem:[%s2235 + $0x334] sm:$0xf]
    %v2442 = vld [vmem:[%s2235 + $0x338] sm:$0xf]
    %v2443 = vld [vmem:[%s2235 + $0x33c] sm:$0xf]
    %v2444 = vld [vmem:[%s2235 + $0x340] sm:$0xf]
    %v2445 = vld [vmem:[%s2235 + $0x344] sm:$0xf]
    %v2446 = vld [vmem:[%s2235 + $0x348] sm:$0xf]
    %v2447 = vld [vmem:[%s2235 + $0x34c] sm:$0xf]
    %v2448 = vld [vmem:[%s2235 + $0x350] sm:$0xf]
    %v2449 = vld [vmem:[%s2235 + $0x354] sm:$0xf]
    %v2450 = vld [vmem:[%s2235 + $0x358] sm:$0xf]
    %v2451 = vld [vmem:[%s2235 + $0x35c] sm:$0xf]
    %v2452 = vld [vmem:[%s2235 + $0x360] sm:$0xf]
    %v2453 = vld [vmem:[%s2235 + $0x364] sm:$0xf]
    %v2454 = vld [vmem:[%s2235 + $0x368] sm:$0xf]
    %v2455 = vld [vmem:[%s2235 + $0x36c] sm:$0xf]
    %v2456 = vld [vmem:[%s2235 + $0x370] sm:$0xf]
    %v2457 = vld [vmem:[%s2235 + $0x374] sm:$0xf]
    %v2458 = vld [vmem:[%s2235 + $0x378] sm:$0xf]
    %v2459 = vld [vmem:[%s2235 + $0x37c] sm:$0xf]
    %v2460 = vld [vmem:[%s2235 + $0x380] sm:$0xf]
    %v2461 = vld [vmem:[%s2235 + $0x384] sm:$0xf]
    %v2462 = vld [vmem:[%s2235 + $0x388] sm:$0xf]
    %v2463 = vld [vmem:[%s2235 + $0x38c] sm:$0xf]
    %v2464 = vld [vmem:[%s2235 + $0x390] sm:$0xf]
    %v2465 = vld [vmem:[%s2235 + $0x394] sm:$0xf]
    %v2466 = vld [vmem:[%s2235 + $0x398] sm:$0xf]
    %v2467 = vld [vmem:[%s2235 + $0x39c] sm:$0xf]
    %v2468 = vld [vmem:[%s2235 + $0x3a0] sm:$0xf]
    %v2469 = vld [vmem:[%s2235 + $0x3a4] sm:$0xf]
    %v2470 = vld [vmem:[%s2235 + $0x3a8] sm:$0xf]
    %v2471 = vld [vmem:[%s2235 + $0x3ac] sm:$0xf]
    %v2472 = vld [vmem:[%s2235 + $0x3b0] sm:$0xf]
    %v2473 = vld [vmem:[%s2235 + $0x3b4] sm:$0xf]
    %v2474 = vld [vmem:[%s2235 + $0x3b8] sm:$0xf]
    %v2475 = vld [vmem:[%s2235 + $0x3bc] sm:$0xf]
    %v2476 = vld [vmem:[%s2235 + $0x3c0] sm:$0xf]
    %v2477 = vld [vmem:[%s2235 + $0x3c4] sm:$0xf]
    %v2478 = vld [vmem:[%s2235 + $0x3c8] sm:$0xf]
    %v2479 = vld [vmem:[%s2235 + $0x3cc] sm:$0xf]
    %v2480 = vld [vmem:[%s2235 + $0x3d0] sm:$0xf]
    %v2481 = vld [vmem:[%s2235 + $0x3d4] sm:$0xf]
    %v2482 = vld [vmem:[%s2235 + $0x3d8] sm:$0xf]
    %v2483 = vld [vmem:[%s2235 + $0x3dc] sm:$0xf]
    %v2484 = vld [vmem:[%s2235 + $0x3e0] sm:$0xf]
    %v2485 = vld [vmem:[%s2235 + $0x3e4] sm:$0xf]
    %v2486 = vld [vmem:[%s2235 + $0x3e8] sm:$0xf]
    %v2487 = vld [vmem:[%s2235 + $0x3ec] sm:$0xf]
    %v2488 = vld [vmem:[%s2235 + $0x3f0] sm:$0xf]
    %v2489 = vld [vmem:[%s2235 + $0x3f4] sm:$0xf]
    %v2490 = vld [vmem:[%s2235 + $0x3f8] sm:$0xf]
    %v2491 = vld [vmem:[%s2235 + $0x3fc] sm:$0xf]
    %v2492 = vpack.c.bf16 %v2181, %v2180
    %v2493 = vperm.slane %v52, 0
    %v2498 = vunpack.c.l.b16 %v2183
    %v2499 = vunpack.c.l.b16 %v2184
    %v2500 = vunpack.c.l.b16 %v2185
    %v2501 = vunpack.c.l.b16 %v2186
    %v2502 = vpack.c.b16 %v2499, %v2498
    %v2503 = vpack.c.b16 %v2501, %v2500
    %v2507 = vsel %vm377, %v2492, 0
    %2509 = vmatpush.bf16.msra.mxu0 0
    %2510 = vmatpush.bf16.msra.mxu0 0
    %2511 = vmatpush.bf16.msra.mxu0 0
    %2512 = vmatpush.bf16.msra.mxu0 0
    %2513 = vmatpush.bf16.msra.mxu0 0
    %2514 = vmatpush.bf16.msra.mxu0 0
    %2515 = vmatpush.bf16.msra.mxu0 %v2503
    %2516 = vmatpush.bf16.msra.mxu0 %v2502
    %2517 = vmatmul.bf16.gmra.mxu0 %v2507
    %v2518 = vpop.f32.mrf.mxu0
    %v2519 = vadd.f32 %v2493, %v2518
    %v2520 = vpop.f32.mrf.mxu0
    %v2521 = vadd.f32 %v2493, %v2520
    %2522 = vdwg.mxu0
    %v2523 = vperm.slane %v52, 1
    %v2528 = vunpack.c.l.b16 %v2188
    %v2529 = vunpack.c.l.b16 %v2189
    %v2530 = vunpack.c.l.b16 %v2190
    %v2531 = vunpack.c.l.b16 %v2191
    %v2532 = vpack.c.b16 %v2529, %v2528
    %v2533 = vpack.c.b16 %v2531, %v2530
    %2536 = vmatpush.bf16.msra.mxu0 0
    %2537 = vmatpush.bf16.msra.mxu0 0
    %2538 = vmatpush.bf16.msra.mxu0 0
    %2539 = vmatpush.bf16.msra.mxu0 0
    %2540 = vmatpush.bf16.msra.mxu0 0
    %2541 = vmatpush.bf16.msra.mxu0 0
    %2542 = vmatpush.bf16.msra.mxu0 %v2533
    %2543 = vmatpush.bf16.msra.mxu0 %v2532
    %2544 = vmatmul.bf16.gmra.mxu0 %v2507
    %v2545 = vpop.f32.mrf.mxu0
    %v2546 = vadd.f32 %v2523, %v2545
    %v2547 = vpop.f32.mrf.mxu0
    %v2548 = vadd.f32 %v2523, %v2547
    %2549 = vdwg.mxu0
    %v2550 = vperm.slane %v52, 2
    %v2555 = vunpack.c.l.b16 %v2193
    %v2556 = vunpack.c.l.b16 %v2194
    %v2557 = vunpack.c.l.b16 %v2195
    %v2558 = vunpack.c.l.b16 %v2196
    %v2559 = vpack.c.b16 %v2556, %v2555
    %v2560 = vpack.c.b16 %v2558, %v2557
    %2563 = vmatpush.bf16.msra.mxu0 0
    %2564 = vmatpush.bf16.msra.mxu0 0
    %2565 = vmatpush.bf16.msra.mxu0 0
    %2566 = vmatpush.bf16.msra.mxu0 0
    %2567 = vmatpush.bf16.msra.mxu0 0
    %2568 = vmatpush.bf16.msra.mxu0 0
    %2569 = vmatpush.bf16.msra.mxu0 %v2560
    %2570 = vmatpush.bf16.msra.mxu0 %v2559
    %2571 = vmatmul.bf16.gmra.mxu0 %v2507
    %v2572 = vpop.f32.mrf.mxu0
    %v2573 = vadd.f32 %v2550, %v2572
    %v2574 = vpop.f32.mrf.mxu0
    %v2575 = vadd.f32 %v2550, %v2574
    %2576 = vdwg.mxu0
    %v2577 = vpack.c.bf16 %v2519, %v2519
    %v2578 = vpack.c.bf16 %v2521, %v2521
    %v2579 = vpack.c.bf16 %v2546, %v2546
    %v2580 = vpack.c.bf16 %v2548, %v2548
    %v2582 = vsel %vm377, %v2577, 0
    %v2585 = vsel %vm377, %v2579, 0
    %2587 = vmatpush.bf16.xpose.msra.mxu0 0
    %2588 = vmatpush.bf16.xpose.msra.mxu0 0
    %2589 = vmatpush.bf16.xpose.msra.mxu0 0
    %2590 = vmatpush.bf16.xpose.msra.mxu0 0
    %2591 = vmatpush.bf16.xpose.msra.mxu0 0
    %2592 = vmatpush.bf16.xpose.msra.mxu0 0
    %2593 = vmatpush.bf16.xpose.msra.mxu0 0
    %2594 = vmatpush.bf16.xpose.msra.mxu0 %v2585
    %2595 = vmatmul.bf16.gmra.mxu0 %v2582
    %v2596 = vpop.f32.mrf.mxu0
    %v2597 = vadd.f32 0.0, %v2596
    %v2598 = vpop.f32.mrf.mxu0
    %2599 = vdwg.mxu0
    %v2601 = vsel %vm377, %v2578, 0
    %v2604 = vsel %vm377, %v2580, 0
    %2606 = vmatpush.bf16.xpose.msra.mxu0 0
    %2607 = vmatpush.bf16.xpose.msra.mxu0 0
    %2608 = vmatpush.bf16.xpose.msra.mxu0 0
    %2609 = vmatpush.bf16.xpose.msra.mxu0 0
    %2610 = vmatpush.bf16.xpose.msra.mxu0 0
    %2611 = vmatpush.bf16.xpose.msra.mxu0 0
    %2612 = vmatpush.bf16.xpose.msra.mxu0 0
    %2613 = vmatpush.bf16.xpose.msra.mxu0 %v2604
    %2614 = vmatmul.bf16.gmra.mxu0 %v2601
    %v2615 = vpop.f32.mrf.mxu0
    %v2616 = vadd.f32 0.0, %v2615
    %v2617 = vpop.f32.mrf.mxu0
    %2618 = vdwg.mxu0
    %v2619 = vmul.f32 %v2597, 0.17677669
    %v2620 = vmul.f32 %v2616, 0.17677669
    %v2621 = vsel %vm493, %v2619, -inf
    %2622 = vmax.xlane.f32.xlu0 %v2621
    %v2623 = vpop.xlane.xlu0 %2622
    %v2624 = vsel %vm493, %v2620, -inf
    %2625 = vmax.xlane.f32.xlu0 %v2624
    %v2626 = vpop.xlane.xlu0 %2625
    %v2627 = vsub.f32 %v2619, %v2623
    %v2628 = vsub.f32 %v2620, %v2626
    %v2629 = vmul.f32 %v2627, 1.442695
    %v2630 = vpow.pop %v2629
    %v2631 = vmul.f32 %v2628, 1.442695
    %v2632 = vpow.pop %v2631
    %v2633 = vsel %vm493, %v2630, 0.0
    %2634 = vadd.xlane.f32.xlu0 %v2633
    %v2635 = vpop.xlane.xlu0 %2634
    %v2636 = vsel %vm493, %v2632, 0.0
    %2637 = vadd.xlane.f32.xlu0 %v2636
    %v2638 = vpop.xlane.xlu0 %2637
    %v2639 = vrcp.pop %v2635
    %v2640 = vrcp.pop %v2638
    %v2641 = vmul.f32 %v2630, %v2639
    %v2642 = vmul.f32 %v2632, %v2640
    %v2643 = vpack.c.bf16 %v2641, %v2641
    %v2644 = vpack.c.bf16 %v2642, %v2642
    %v2645 = vpack.c.bf16 %v2573, %v2573
    %v2646 = vpack.c.bf16 %v2575, %v2575
    %v2648 = vsel %vm493, %v2643, 0
    %v2651 = vsel %vm523, %v2645, 0
    %2653 = vmatpush.bf16.msra.mxu0 0
    %2654 = vmatpush.bf16.msra.mxu0 0
    %2655 = vmatpush.bf16.msra.mxu0 0
    %2656 = vmatpush.bf16.msra.mxu0 0
    %2657 = vmatpush.bf16.msra.mxu0 0
    %2658 = vmatpush.bf16.msra.mxu0 0
    %2659 = vmatpush.bf16.msra.mxu0 0
    %2660 = vmatpush.bf16.msra.mxu0 %v2651
    %2661 = vmatmul.bf16.gmra.mxu0 %v2648
    %v2662 = vpop.f32.mrf.mxu0
    %v2663 = vadd.f32 0.0, %v2662
    %v2664 = vpop.f32.mrf.mxu0
    %2665 = vdwg.mxu0
    %v2667 = vsel %vm493, %v2644, 0
    %v2670 = vsel %vm523, %v2646, 0
    %2672 = vmatpush.bf16.msra.mxu0 0
    %2673 = vmatpush.bf16.msra.mxu0 0
    %2674 = vmatpush.bf16.msra.mxu0 0
    %2675 = vmatpush.bf16.msra.mxu0 0
    %2676 = vmatpush.bf16.msra.mxu0 0
    %2677 = vmatpush.bf16.msra.mxu0 0
    %2678 = vmatpush.bf16.msra.mxu0 0
    %2679 = vmatpush.bf16.msra.mxu0 %v2670
    %2680 = vmatmul.bf16.gmra.mxu0 %v2667
    %v2681 = vpop.f32.mrf.mxu0
    %v2682 = vadd.f32 0.0, %v2681
    %v2683 = vpop.f32.mrf.mxu0
    %2684 = vdwg.mxu0
    %v2685 = vpack.c.bf16 %v2682, %v2663
    %v2686 = vperm.slane %v49, 6
    %v2691 = vunpack.c.l.b16 %v2198
    %v2692 = vunpack.c.l.b16 %v2199
    %v2693 = vunpack.c.l.b16 %v2200
    %v2694 = vunpack.c.l.b16 %v2201
    %v2695 = vpack.c.b16 %v2692, %v2691
    %v2696 = vpack.c.b16 %v2694, %v2693
    %v2700 = vsel %vm377, %v2685, 0
    %2702 = vmatpush.bf16.msra.mxu0 0
    %2703 = vmatpush.bf16.msra.mxu0 0
    %2704 = vmatpush.bf16.msra.mxu0 0
    %2705 = vmatpush.bf16.msra.mxu0 0
    %2706 = vmatpush.bf16.msra.mxu0 0
    %2707 = vmatpush.bf16.msra.mxu0 0
    %2708 = vmatpush.bf16.msra.mxu0 %v2696
    %2709 = vmatpush.bf16.msra.mxu0 %v2695
    %2710 = vmatmul.bf16.gmra.mxu0 %v2700
    %v2711 = vpop.f32.mrf.mxu0
    %v2712 = vadd.f32 %v2686, %v2711
    %v2713 = vpop.f32.mrf.mxu0
    %v2714 = vadd.f32 %v2686, %v2713
    %2715 = vdwg.mxu0
    %v2716 = vadd.f32 %v2180, %v2712
    %v2717 = vadd.f32 %v2181, %v2714
    %v2718 = vsel %vm377, %v2716, 0.0
    %2719 = vadd.xlane.f32.xlu0 %v2718
    %v2720 = vpop.xlane.xlu0 %2719
    %v2721 = vsel %vm377, %v2717, 0.0
    %2722 = vadd.xlane.f32.xlu0 %v2721
    %v2723 = vpop.xlane.xlu0 %2722
    %v2724 = vmul.f32 %v2720, %v604
    %v2725 = vmul.f32 %v2723, %v604
    %v2726 = vsub.f32 %v2716, %v2724
    %v2727 = vsub.f32 %v2717, %v2725
    %v2728 = vmul.f32 %v2726, %v2726
    %v2729 = vmul.f32 %v2727, %v2727
    %v2730 = vsel %vm377, %v2728, 0.0
    %2731 = vadd.xlane.f32.xlu0 %v2730
    %v2732 = vpop.xlane.xlu0 %2731
    %v2733 = vsel %vm377, %v2729, 0.0
    %2734 = vadd.xlane.f32.xlu0 %v2733
    %v2735 = vpop.xlane.xlu0 %2734
    %v2736 = vmul.f32 %v2732, %v604
    %v2737 = vmul.f32 %v2735, %v604
    %v2738 = vadd.f32 %v2736, 1e-05
    %v2739 = vadd.f32 %v2737, 1e-05
    %v2740 = vrsqrt.pop %v2738
    %v2741 = vmul.f32 %v2740, %v2738
    %v2742 = vmul.f32 %v2741, %v2740
    %v2743 = vmul.f32 0.5, %v2742
    %v2744 = vsub.f32 1.5, %v2743
    %v2745 = vmul.f32 %v2740, %v2744
    %vm2746 = vweird.f32 %v2738
    %vm2747 = vweird.f32 %v2740
    %vm2748 = vmor %vm2746, %vm2747
    %v2749 = vsel %vm2748, %v2740, %v2745
    %v2750 = vrsqrt.pop %v2739
    %v2751 = vmul.f32 %v2750, %v2739
    %v2752 = vmul.f32 %v2751, %v2750
    %v2753 = vmul.f32 0.5, %v2752
    %v2754 = vsub.f32 1.5, %v2753
    %v2755 = vmul.f32 %v2750, %v2754
    %vm2756 = vweird.f32 %v2739
    %vm2757 = vweird.f32 %v2750
    %vm2758 = vmor %vm2756, %vm2757
    %v2759 = vsel %vm2758, %v2750, %v2755
    %v2760 = vmul.f32 %v2726, %v2749
    %v2761 = vmul.f32 %v2727, %v2759
    %v2762 = vperm.slane %v49, 7
    %v2763 = vmul.f32 %v2760, %v2762
    %v2764 = vmul.f32 %v2761, %v2762
    %v2765 = vperm.slane %v50, 0
    %v2766 = vadd.f32 %v2763, %v2765
    %v2767 = vadd.f32 %v2764, %v2765
    %v2768 = vpack.c.bf16 %v2767, %v2766
    %v2769 = vperm.slane %v53, 1
    %v2770 = vperm.slane %v53, 3
    %v2771 = vperm.slane %v53, 5
    %v2772 = vperm.slane %v53, 7
    %v2773 = vperm.slane %v54, 1
    %v2774 = vperm.slane %v54, 3
    %v2775 = vperm.slane %v54, 5
    %v2776 = vperm.slane %v54, 7
    %v2777 = vperm.slane %v55, 1
    %v2778 = vperm.slane %v55, 3
    %v2779 = vperm.slane %v55, 5
    %v2780 = vperm.slane %v55, 7
    %v2781 = vperm.slane %v56, 1
    %v2782 = vperm.slane %v56, 3
    %v2783 = vperm.slane %v56, 5
    %v2784 = vperm.slane %v56, 7
    %v2801 = vperm.slane %v2769, 1
    %v2802 = vperm.slane %v2770, 1
    %v2803 = vperm.slane %v2771, 1
    %v2804 = vperm.slane %v2772, 1
    %v2805 = vperm.slane %v2773, 1
    %v2806 = vperm.slane %v2774, 1
    %v2807 = vperm.slane %v2775, 1
    %v2808 = vperm.slane %v2776, 1
    %v2809 = vperm.slane %v2777, 1
    %v2810 = vperm.slane %v2778, 1
    %v2811 = vperm.slane %v2779, 1
    %v2812 = vperm.slane %v2780, 1
    %v2813 = vperm.slane %v2781, 1
    %v2814 = vperm.slane %v2782, 1
    %v2815 = vperm.slane %v2783, 1
    %v2816 = vperm.slane %v2784, 1
    %v2849 = vunpack.c.l.b16 %v2203
    %v2850 = vunpack.c.h.b16 %v2203
    %v2851 = vunpack.c.l.b16 %v2204
    %v2852 = vunpack.c.h.b16 %v2204
    %v2853 = vunpack.c.l.b16 %v2205
    %v2854 = vunpack.c.h.b16 %v2205
    %v2855 = vunpack.c.l.b16 %v2206
    %v2856 = vunpack.c.h.b16 %v2206
    %v2857 = vunpack.c.l.b16 %v2207
    %v2858 = vunpack.c.h.b16 %v2207
    %v2859 = vunpack.c.l.b16 %v2208
    %v2860 = vunpack.c.h.b16 %v2208
    %v2861 = vunpack.c.l.b16 %v2209
    %v2862 = vunpack.c.h.b16 %v2209
    %v2863 = vunpack.c.l.b16 %v2210
    %v2864 = vunpack.c.h.b16 %v2210
    %v2865 = vunpack.c.l.b16 %v2211
    %v2866 = vunpack.c.h.b16 %v2211
    %v2867 = vunpack.c.l.b16 %v2212
    %v2868 = vunpack.c.h.b16 %v2212
    %v2869 = vunpack.c.l.b16 %v2213
    %v2870 = vunpack.c.h.b16 %v2213
    %v2871 = vunpack.c.l.b16 %v2214
    %v2872 = vunpack.c.h.b16 %v2214
    %v2873 = vunpack.c.l.b16 %v2215
    %v2874 = vunpack.c.h.b16 %v2215
    %v2875 = vunpack.c.l.b16 %v2216
    %v2876 = vunpack.c.h.b16 %v2216
    %v2877 = vunpack.c.l.b16 %v2217
    %v2878 = vunpack.c.h.b16 %v2217
    %v2879 = vunpack.c.l.b16 %v2218
    %v2880 = vunpack.c.h.b16 %v2218
    %v2881 = vunpack.c.l.b16 %v2219
    %v2882 = vunpack.c.h.b16 %v2219
    %v2883 = vunpack.c.l.b16 %v2220
    %v2884 = vunpack.c.h.b16 %v2220
    %v2885 = vunpack.c.l.b16 %v2221
    %v2886 = vunpack.c.h.b16 %v2221
    %v2887 = vunpack.c.l.b16 %v2222
    %v2888 = vunpack.c.h.b16 %v2222
    %v2889 = vunpack.c.l.b16 %v2223
    %v2890 = vunpack.c.h.b16 %v2223
    %v2891 = vunpack.c.l.b16 %v2224
    %v2892 = vunpack.c.h.b16 %v2224
    %v2893 = vunpack.c.l.b16 %v2225
    %v2894 = vunpack.c.h.b16 %v2225
    %v2895 = vunpack.c.l.b16 %v2226
    %v2896 = vunpack.c.h.b16 %v2226
    %v2897 = vunpack.c.l.b16 %v2227
    %v2898 = vunpack.c.h.b16 %v2227
    %v2899 = vunpack.c.l.b16 %v2228
    %v2900 = vunpack.c.h.b16 %v2228
    %v2901 = vunpack.c.l.b16 %v2229
    %v2902 = vunpack.c.h.b16 %v2229
    %v2903 = vunpack.c.l.b16 %v2230
    %v2904 = vunpack.c.h.b16 %v2230
    %v2905 = vunpack.c.l.b16 %v2231
    %v2906 = vunpack.c.h.b16 %v2231
    %v2907 = vunpack.c.l.b16 %v2232
    %v2908 = vunpack.c.h.b16 %v2232
    %v2909 = vunpack.c.l.b16 %v2233
    %v2910 = vunpack.c.h.b16 %v2233
    %v2911 = vunpack.c.l.b16 %v2234
    %v2912 = vunpack.c.h.b16 %v2234
    %v2913 = vpack.c.b16 %v2865, %v2849
    %v2914 = vpack.c.b16 %v2866, %v2850
    %v2915 = vpack.c.b16 %v2867, %v2851
    %v2916 = vpack.c.b16 %v2868, %v2852
    %v2917 = vpack.c.b16 %v2869, %v2853
    %v2918 = vpack.c.b16 %v2870, %v2854
    %v2919 = vpack.c.b16 %v2871, %v2855
    %v2920 = vpack.c.b16 %v2872, %v2856
    %v2921 = vpack.c.b16 %v2873, %v2857
    %v2922 = vpack.c.b16 %v2874, %v2858
    %v2923 = vpack.c.b16 %v2875, %v2859
    %v2924 = vpack.c.b16 %v2876, %v2860
    %v2925 = vpack.c.b16 %v2877, %v2861
    %v2926 = vpack.c.b16 %v2878, %v2862
    %v2927 = vpack.c.b16 %v2879, %v2863
    %v2928 = vpack.c.b16 %v2880, %v2864
    %v2929 = vpack.c.b16 %v2897, %v2881
    %v2930 = vpack.c.b16 %v2898, %v2882
    %v2931 = vpack.c.b16 %v2899, %v2883
    %v2932 = vpack.c.b16 %v2900, %v2884
    %v2933 = vpack.c.b16 %v2901, %v2885
    %v2934 = vpack.c.b16 %v2902, %v2886
    %v2935 = vpack.c.b16 %v2903, %v2887
    %v2936 = vpack.c.b16 %v2904, %v2888
    %v2937 = vpack.c.b16 %v2905, %v2889
    %v2938 = vpack.c.b16 %v2906, %v2890
    %v2939 = vpack.c.b16 %v2907, %v2891
    %v2940 = vpack.c.b16 %v2908, %v2892
    %v2941 = vpack.c.b16 %v2909, %v2893
    %v2942 = vpack.c.b16 %v2910, %v2894
    %v2943 = vpack.c.b16 %v2911, %v2895
    %v2944 = vpack.c.b16 %v2912, %v2896
    %v2978 = vsel %vm377, %v2768, 0
    %2980 = vmatpush.bf16.msra.mxu0 0
    %2981 = vmatpush.bf16.msra.mxu0 0
    %2982 = vmatpush.bf16.msra.mxu0 0
    %2983 = vmatpush.bf16.msra.mxu0 0
    %2984 = vmatpush.bf16.msra.mxu0 0
    %2985 = vmatpush.bf16.msra.mxu0 0
    %2986 = vmatpush.bf16.msra.mxu0 %v2929
    %2987 = vmatpush.bf16.msra.mxu0 %v2913
    %2988 = vmatmul.bf16.gmra.mxu0 %v2978
    %v2989 = vpop.f32.mrf.mxu0
    %v2990 = vadd.f32 %v2801, %v2989
    %v2991 = vpop.f32.mrf.mxu0
    %v2992 = vadd.f32 %v2801, %v2991
    %2993 = vdwg.mxu0
    %2994 = vmatpush.bf16.msra.mxu0 0
    %2995 = vmatpush.bf16.msra.mxu0 0
    %2996 = vmatpush.bf16.msra.mxu0 0
    %2997 = vmatpush.bf16.msra.mxu0 0
    %2998 = vmatpush.bf16.msra.mxu0 0
    %2999 = vmatpush.bf16.msra.mxu0 0
    %3000 = vmatpush.bf16.msra.mxu0 %v2930
    %3001 = vmatpush.bf16.msra.mxu0 %v2914
    %3002 = vmatmul.bf16.gmra.mxu0 %v2978
    %v3003 = vpop.f32.mrf.mxu0
    %v3004 = vadd.f32 %v2802, %v3003
    %v3005 = vpop.f32.mrf.mxu0
    %v3006 = vadd.f32 %v2802, %v3005
    %3007 = vdwg.mxu0
    %3008 = vmatpush.bf16.msra.mxu0 0
    %3009 = vmatpush.bf16.msra.mxu0 0
    %3010 = vmatpush.bf16.msra.mxu0 0
    %3011 = vmatpush.bf16.msra.mxu0 0
    %3012 = vmatpush.bf16.msra.mxu0 0
    %3013 = vmatpush.bf16.msra.mxu0 0
    %3014 = vmatpush.bf16.msra.mxu0 %v2931
    %3015 = vmatpush.bf16.msra.mxu0 %v2915
    %3016 = vmatmul.bf16.gmra.mxu0 %v2978
    %v3017 = vpop.f32.mrf.mxu0
    %v3018 = vadd.f32 %v2803, %v3017
    %v3019 = vpop.f32.mrf.mxu0
    %v3020 = vadd.f32 %v2803, %v3019
    %3021 = vdwg.mxu0
    %3022 = vmatpush.bf16.msra.mxu0 0
    %3023 = vmatpush.bf16.msra.mxu0 0
    %3024 = vmatpush.bf16.msra.mxu0 0
    %3025 = vmatpush.bf16.msra.mxu0 0
    %3026 = vmatpush.bf16.msra.mxu0 0
    %3027 = vmatpush.bf16.msra.mxu0 0
    %3028 = vmatpush.bf16.msra.mxu0 %v2932
    %3029 = vmatpush.bf16.msra.mxu0 %v2916
    %3030 = vmatmul.bf16.gmra.mxu0 %v2978
    %v3031 = vpop.f32.mrf.mxu0
    %v3032 = vadd.f32 %v2804, %v3031
    %v3033 = vpop.f32.mrf.mxu0
    %v3034 = vadd.f32 %v2804, %v3033
    %3035 = vdwg.mxu0
    %3036 = vmatpush.bf16.msra.mxu0 0
    %3037 = vmatpush.bf16.msra.mxu0 0
    %3038 = vmatpush.bf16.msra.mxu0 0
    %3039 = vmatpush.bf16.msra.mxu0 0
    %3040 = vmatpush.bf16.msra.mxu0 0
    %3041 = vmatpush.bf16.msra.mxu0 0
    %3042 = vmatpush.bf16.msra.mxu0 %v2933
    %3043 = vmatpush.bf16.msra.mxu0 %v2917
    %3044 = vmatmul.bf16.gmra.mxu0 %v2978
    %v3045 = vpop.f32.mrf.mxu0
    %v3046 = vadd.f32 %v2805, %v3045
    %v3047 = vpop.f32.mrf.mxu0
    %v3048 = vadd.f32 %v2805, %v3047
    %3049 = vdwg.mxu0
    %3050 = vmatpush.bf16.msra.mxu0 0
    %3051 = vmatpush.bf16.msra.mxu0 0
    %3052 = vmatpush.bf16.msra.mxu0 0
    %3053 = vmatpush.bf16.msra.mxu0 0
    %3054 = vmatpush.bf16.msra.mxu0 0
    %3055 = vmatpush.bf16.msra.mxu0 0
    %3056 = vmatpush.bf16.msra.mxu0 %v2934
    %3057 = vmatpush.bf16.msra.mxu0 %v2918
    %3058 = vmatmul.bf16.gmra.mxu0 %v2978
    %v3059 = vpop.f32.mrf.mxu0
    %v3060 = vadd.f32 %v2806, %v3059
    %v3061 = vpop.f32.mrf.mxu0
    %v3062 = vadd.f32 %v2806, %v3061
    %3063 = vdwg.mxu0
    %3064 = vmatpush.bf16.msra.mxu0 0
    %3065 = vmatpush.bf16.msra.mxu0 0
    %3066 = vmatpush.bf16.msra.mxu0 0
    %3067 = vmatpush.bf16.msra.mxu0 0
    %3068 = vmatpush.bf16.msra.mxu0 0
    %3069 = vmatpush.bf16.msra.mxu0 0
    %3070 = vmatpush.bf16.msra.mxu0 %v2935
    %3071 = vmatpush.bf16.msra.mxu0 %v2919
    %3072 = vmatmul.bf16.gmra.mxu0 %v2978
    %v3073 = vpop.f32.mrf.mxu0
    %v3074 = vadd.f32 %v2807, %v3073
    %v3075 = vpop.f32.mrf.mxu0
    %v3076 = vadd.f32 %v2807, %v3075
    %3077 = vdwg.mxu0
    %3078 = vmatpush.bf16.msra.mxu0 0
    %3079 = vmatpush.bf16.msra.mxu0 0
    %3080 = vmatpush.bf16.msra.mxu0 0
    %3081 = vmatpush.bf16.msra.mxu0 0
    %3082 = vmatpush.bf16.msra.mxu0 0
    %3083 = vmatpush.bf16.msra.mxu0 0
    %3084 = vmatpush.bf16.msra.mxu0 %v2936
    %3085 = vmatpush.bf16.msra.mxu0 %v2920
    %3086 = vmatmul.bf16.gmra.mxu0 %v2978
    %v3087 = vpop.f32.mrf.mxu0
    %v3088 = vadd.f32 %v2808, %v3087
    %v3089 = vpop.f32.mrf.mxu0
    %v3090 = vadd.f32 %v2808, %v3089
    %3091 = vdwg.mxu0
    %3092 = vmatpush.bf16.msra.mxu0 0
    %3093 = vmatpush.bf16.msra.mxu0 0
    %3094 = vmatpush.bf16.msra.mxu0 0
    %3095 = vmatpush.bf16.msra.mxu0 0
    %3096 = vmatpush.bf16.msra.mxu0 0
    %3097 = vmatpush.bf16.msra.mxu0 0
    %3098 = vmatpush.bf16.msra.mxu0 %v2937
    %3099 = vmatpush.bf16.msra.mxu0 %v2921
    %3100 = vmatmul.bf16.gmra.mxu0 %v2978
    %v3101 = vpop.f32.mrf.mxu0
    %v3102 = vadd.f32 %v2809, %v3101
    %v3103 = vpop.f32.mrf.mxu0
    %v3104 = vadd.f32 %v2809, %v3103
    %3105 = vdwg.mxu0
    %3106 = vmatpush.bf16.msra.mxu0 0
    %3107 = vmatpush.bf16.msra.mxu0 0
    %3108 = vmatpush.bf16.msra.mxu0 0
    %3109 = vmatpush.bf16.msra.mxu0 0
    %3110 = vmatpush.bf16.msra.mxu0 0
    %3111 = vmatpush.bf16.msra.mxu0 0
    %3112 = vmatpush.bf16.msra.mxu0 %v2938
    %3113 = vmatpush.bf16.msra.mxu0 %v2922
    %3114 = vmatmul.bf16.gmra.mxu0 %v2978
    %v3115 = vpop.f32.mrf.mxu0
    %v3116 = vadd.f32 %v2810, %v3115
    %v3117 = vpop.f32.mrf.mxu0
    %v3118 = vadd.f32 %v2810, %v3117
    %3119 = vdwg.mxu0
    %3120 = vmatpush.bf16.msra.mxu0 0
    %3121 = vmatpush.bf16.msra.mxu0 0
    %3122 = vmatpush.bf16.msra.mxu0 0
    %3123 = vmatpush.bf16.msra.mxu0 0
    %3124 = vmatpush.bf16.msra.mxu0 0
    %3125 = vmatpush.bf16.msra.mxu0 0
    %3126 = vmatpush.bf16.msra.mxu0 %v2939
    %3127 = vmatpush.bf16.msra.mxu0 %v2923
    %3128 = vmatmul.bf16.gmra.mxu0 %v2978
    %v3129 = vpop.f32.mrf.mxu0
    %v3130 = vadd.f32 %v2811, %v3129
    %v3131 = vpop.f32.mrf.mxu0
    %v3132 = vadd.f32 %v2811, %v3131
    %3133 = vdwg.mxu0
    %3134 = vmatpush.bf16.msra.mxu0 0
    %3135 = vmatpush.bf16.msra.mxu0 0
    %3136 = vmatpush.bf16.msra.mxu0 0
    %3137 = vmatpush.bf16.msra.mxu0 0
    %3138 = vmatpush.bf16.msra.mxu0 0
    %3139 = vmatpush.bf16.msra.mxu0 0
    %3140 = vmatpush.bf16.msra.mxu0 %v2940
    %3141 = vmatpush.bf16.msra.mxu0 %v2924
    %3142 = vmatmul.bf16.gmra.mxu0 %v2978
    %v3143 = vpop.f32.mrf.mxu0
    %v3144 = vadd.f32 %v2812, %v3143
    %v3145 = vpop.f32.mrf.mxu0
    %v3146 = vadd.f32 %v2812, %v3145
    %3147 = vdwg.mxu0
    %3148 = vmatpush.bf16.msra.mxu0 0
    %3149 = vmatpush.bf16.msra.mxu0 0
    %3150 = vmatpush.bf16.msra.mxu0 0
    %3151 = vmatpush.bf16.msra.mxu0 0
    %3152 = vmatpush.bf16.msra.mxu0 0
    %3153 = vmatpush.bf16.msra.mxu0 0
    %3154 = vmatpush.bf16.msra.mxu0 %v2941
    %3155 = vmatpush.bf16.msra.mxu0 %v2925
    %3156 = vmatmul.bf16.gmra.mxu0 %v2978
    %v3157 = vpop.f32.mrf.mxu0
    %v3158 = vadd.f32 %v2813, %v3157
    %v3159 = vpop.f32.mrf.mxu0
    %v3160 = vadd.f32 %v2813, %v3159
    %3161 = vdwg.mxu0
    %3162 = vmatpush.bf16.msra.mxu0 0
    %3163 = vmatpush.bf16.msra.mxu0 0
    %3164 = vmatpush.bf16.msra.mxu0 0
    %3165 = vmatpush.bf16.msra.mxu0 0
    %3166 = vmatpush.bf16.msra.mxu0 0
    %3167 = vmatpush.bf16.msra.mxu0 0
    %3168 = vmatpush.bf16.msra.mxu0 %v2942
    %3169 = vmatpush.bf16.msra.mxu0 %v2926
    %3170 = vmatmul.bf16.gmra.mxu0 %v2978
    %v3171 = vpop.f32.mrf.mxu0
    %v3172 = vadd.f32 %v2814, %v3171
    %v3173 = vpop.f32.mrf.mxu0
    %v3174 = vadd.f32 %v2814, %v3173
    %3175 = vdwg.mxu0
    %3176 = vmatpush.bf16.msra.mxu0 0
    %3177 = vmatpush.bf16.msra.mxu0 0
    %3178 = vmatpush.bf16.msra.mxu0 0
    %3179 = vmatpush.bf16.msra.mxu0 0
    %3180 = vmatpush.bf16.msra.mxu0 0
    %3181 = vmatpush.bf16.msra.mxu0 0
    %3182 = vmatpush.bf16.msra.mxu0 %v2943
    %3183 = vmatpush.bf16.msra.mxu0 %v2927
    %3184 = vmatmul.bf16.gmra.mxu0 %v2978
    %v3185 = vpop.f32.mrf.mxu0
    %v3186 = vadd.f32 %v2815, %v3185
    %v3187 = vpop.f32.mrf.mxu0
    %v3188 = vadd.f32 %v2815, %v3187
    %3189 = vdwg.mxu0
    %3190 = vmatpush.bf16.msra.mxu0 0
    %3191 = vmatpush.bf16.msra.mxu0 0
    %3192 = vmatpush.bf16.msra.mxu0 0
    %3193 = vmatpush.bf16.msra.mxu0 0
    %3194 = vmatpush.bf16.msra.mxu0 0
    %3195 = vmatpush.bf16.msra.mxu0 0
    %3196 = vmatpush.bf16.msra.mxu0 %v2944
    %3197 = vmatpush.bf16.msra.mxu0 %v2928
    %3198 = vmatmul.bf16.gmra.mxu0 %v2978
    %v3199 = vpop.f32.mrf.mxu0
    %v3200 = vadd.f32 %v2816, %v3199
    %v3201 = vpop.f32.mrf.mxu0
    %v3202 = vadd.f32 %v2816, %v3201
    %3203 = vdwg.mxu0
    %v3204 = vmax.f32 %v2990, 0.0
    %v3205 = vmax.f32 %v3004, 0.0
    %v3206 = vmax.f32 %v3018, 0.0
    %v3207 = vmax.f32 %v3032, 0.0
    %v3208 = vmax.f32 %v3046, 0.0
    %v3209 = vmax.f32 %v3060, 0.0
    %v3210 = vmax.f32 %v3074, 0.0
    %v3211 = vmax.f32 %v3088, 0.0
    %v3212 = vmax.f32 %v3102, 0.0
    %v3213 = vmax.f32 %v3116, 0.0
    %v3214 = vmax.f32 %v3130, 0.0
    %v3215 = vmax.f32 %v3144, 0.0
    %v3216 = vmax.f32 %v3158, 0.0
    %v3217 = vmax.f32 %v3172, 0.0
    %v3218 = vmax.f32 %v3186, 0.0
    %v3219 = vmax.f32 %v3200, 0.0
    %v3220 = vmax.f32 %v2992, 0.0
    %v3221 = vmax.f32 %v3006, 0.0
    %v3222 = vmax.f32 %v3020, 0.0
    %v3223 = vmax.f32 %v3034, 0.0
    %v3224 = vmax.f32 %v3048, 0.0
    %v3225 = vmax.f32 %v3062, 0.0
    %v3226 = vmax.f32 %v3076, 0.0
    %v3227 = vmax.f32 %v3090, 0.0
    %v3228 = vmax.f32 %v3104, 0.0
    %v3229 = vmax.f32 %v3118, 0.0
    %v3230 = vmax.f32 %v3132, 0.0
    %v3231 = vmax.f32 %v3146, 0.0
    %v3232 = vmax.f32 %v3160, 0.0
    %v3233 = vmax.f32 %v3174, 0.0
    %v3234 = vmax.f32 %v3188, 0.0
    %v3235 = vmax.f32 %v3202, 0.0
    %v3236 = vpack.c.bf16 %v3220, %v3204
    %v3237 = vpack.c.bf16 %v3221, %v3205
    %v3238 = vpack.c.bf16 %v3222, %v3206
    %v3239 = vpack.c.bf16 %v3223, %v3207
    %v3240 = vpack.c.bf16 %v3224, %v3208
    %v3241 = vpack.c.bf16 %v3225, %v3209
    %v3242 = vpack.c.bf16 %v3226, %v3210
    %v3243 = vpack.c.bf16 %v3227, %v3211
    %v3244 = vpack.c.bf16 %v3228, %v3212
    %v3245 = vpack.c.bf16 %v3229, %v3213
    %v3246 = vpack.c.bf16 %v3230, %v3214
    %v3247 = vpack.c.bf16 %v3231, %v3215
    %v3248 = vpack.c.bf16 %v3232, %v3216
    %v3249 = vpack.c.bf16 %v3233, %v3217
    %v3250 = vpack.c.bf16 %v3234, %v3218
    %v3251 = vpack.c.bf16 %v3235, %v3219
    %v3252 = vperm.slane %v50, 1
    %v3509 = vunpack.c.l.b16 %v2236
    %v3510 = vunpack.c.l.b16 %v2237
    %v3511 = vunpack.c.l.b16 %v2238
    %v3512 = vunpack.c.l.b16 %v2239
    %v3513 = vunpack.c.l.b16 %v2240
    %v3514 = vunpack.c.l.b16 %v2241
    %v3515 = vunpack.c.l.b16 %v2242
    %v3516 = vunpack.c.l.b16 %v2243
    %v3517 = vunpack.c.l.b16 %v2244
    %v3518 = vunpack.c.l.b16 %v2245
    %v3519 = vunpack.c.l.b16 %v2246
    %v3520 = vunpack.c.l.b16 %v2247
    %v3521 = vunpack.c.l.b16 %v2248
    %v3522 = vunpack.c.l.b16 %v2249
    %v3523 = vunpack.c.l.b16 %v2250
    %v3524 = vunpack.c.l.b16 %v2251
    %v3525 = vunpack.c.l.b16 %v2252
    %v3526 = vunpack.c.l.b16 %v2253
    %v3527 = vunpack.c.l.b16 %v2254
    %v3528 = vunpack.c.l.b16 %v2255
    %v3529 = vunpack.c.l.b16 %v2256
    %v3530 = vunpack.c.l.b16 %v2257
    %v3531 = vunpack.c.l.b16 %v2258
    %v3532 = vunpack.c.l.b16 %v2259
    %v3533 = vunpack.c.l.b16 %v2260
    %v3534 = vunpack.c.l.b16 %v2261
    %v3535 = vunpack.c.l.b16 %v2262
    %v3536 = vunpack.c.l.b16 %v2263
    %v3537 = vunpack.c.l.b16 %v2264
    %v3538 = vunpack.c.l.b16 %v2265
    %v3539 = vunpack.c.l.b16 %v2266
    %v3540 = vunpack.c.l.b16 %v2267
    %v3541 = vunpack.c.l.b16 %v2268
    %v3542 = vunpack.c.l.b16 %v2269
    %v3543 = vunpack.c.l.b16 %v2270
    %v3544 = vunpack.c.l.b16 %v2271
    %v3545 = vunpack.c.l.b16 %v2272
    %v3546 = vunpack.c.l.b16 %v2273
    %v3547 = vunpack.c.l.b16 %v2274
    %v3548 = vunpack.c.l.b16 %v2275
    %v3549 = vunpack.c.l.b16 %v2276
    %v3550 = vunpack.c.l.b16 %v2277
    %v3551 = vunpack.c.l.b16 %v2278
    %v3552 = vunpack.c.l.b16 %v2279
    %v3553 = vunpack.c.l.b16 %v2280
    %v3554 = vunpack.c.l.b16 %v2281
    %v3555 = vunpack.c.l.b16 %v2282
    %v3556 = vunpack.c.l.b16 %v2283
    %v3557 = vunpack.c.l.b16 %v2284
    %v3558 = vunpack.c.l.b16 %v2285
    %v3559 = vunpack.c.l.b16 %v2286
    %v3560 = vunpack.c.l.b16 %v2287
    %v3561 = vunpack.c.l.b16 %v2288
    %v3562 = vunpack.c.l.b16 %v2289
    %v3563 = vunpack.c.l.b16 %v2290
    %v3564 = vunpack.c.l.b16 %v2291
    %v3565 = vunpack.c.l.b16 %v2292
    %v3566 = vunpack.c.l.b16 %v2293
    %v3567 = vunpack.c.l.b16 %v2294
    %v3568 = vunpack.c.l.b16 %v2295
    %v3569 = vunpack.c.l.b16 %v2296
    %v3570 = vunpack.c.l.b16 %v2297
    %v3571 = vunpack.c.l.b16 %v2298
    %v3572 = vunpack.c.l.b16 %v2299
    %v3573 = vunpack.c.l.b16 %v2300
    %v3574 = vunpack.c.l.b16 %v2301
    %v3575 = vunpack.c.l.b16 %v2302
    %v3576 = vunpack.c.l.b16 %v2303
    %v3577 = vunpack.c.l.b16 %v2304
    %v3578 = vunpack.c.l.b16 %v2305
    %v3579 = vunpack.c.l.b16 %v2306
    %v3580 = vunpack.c.l.b16 %v2307
    %v3581 = vunpack.c.l.b16 %v2308
    %v3582 = vunpack.c.l.b16 %v2309
    %v3583 = vunpack.c.l.b16 %v2310
    %v3584 = vunpack.c.l.b16 %v2311
    %v3585 = vunpack.c.l.b16 %v2312
    %v3586 = vunpack.c.l.b16 %v2313
    %v3587 = vunpack.c.l.b16 %v2314
    %v3588 = vunpack.c.l.b16 %v2315
    %v3589 = vunpack.c.l.b16 %v2316
    %v3590 = vunpack.c.l.b16 %v2317
    %v3591 = vunpack.c.l.b16 %v2318
    %v3592 = vunpack.c.l.b16 %v2319
    %v3593 = vunpack.c.l.b16 %v2320
    %v3594 = vunpack.c.l.b16 %v2321
    %v3595 = vunpack.c.l.b16 %v2322
    %v3596 = vunpack.c.l.b16 %v2323
    %v3597 = vunpack.c.l.b16 %v2324
    %v3598 = vunpack.c.l.b16 %v2325
    %v3599 = vunpack.c.l.b16 %v2326
    %v3600 = vunpack.c.l.b16 %v2327
    %v3601 = vunpack.c.l.b16 %v2328
    %v3602 = vunpack.c.l.b16 %v2329
    %v3603 = vunpack.c.l.b16 %v2330
    %v3604 = vunpack.c.l.b16 %v2331
    %v3605 = vunpack.c.l.b16 %v2332
    %v3606 = vunpack.c.l.b16 %v2333
    %v3607 = vunpack.c.l.b16 %v2334
    %v3608 = vunpack.c.l.b16 %v2335
    %v3609 = vunpack.c.l.b16 %v2336
    %v3610 = vunpack.c.l.b16 %v2337
    %v3611 = vunpack.c.l.b16 %v2338
    %v3612 = vunpack.c.l.b16 %v2339
    %v3613 = vunpack.c.l.b16 %v2340
    %v3614 = vunpack.c.l.b16 %v2341
    %v3615 = vunpack.c.l.b16 %v2342
    %v3616 = vunpack.c.l.b16 %v2343
    %v3617 = vunpack.c.l.b16 %v2344
    %v3618 = vunpack.c.l.b16 %v2345
    %v3619 = vunpack.c.l.b16 %v2346
    %v3620 = vunpack.c.l.b16 %v2347
    %v3621 = vunpack.c.l.b16 %v2348
    %v3622 = vunpack.c.l.b16 %v2349
    %v3623 = vunpack.c.l.b16 %v2350
    %v3624 = vunpack.c.l.b16 %v2351
    %v3625 = vunpack.c.l.b16 %v2352
    %v3626 = vunpack.c.l.b16 %v2353
    %v3627 = vunpack.c.l.b16 %v2354
    %v3628 = vunpack.c.l.b16 %v2355
    %v3629 = vunpack.c.l.b16 %v2356
    %v3630 = vunpack.c.l.b16 %v2357
    %v3631 = vunpack.c.l.b16 %v2358
    %v3632 = vunpack.c.l.b16 %v2359
    %v3633 = vunpack.c.l.b16 %v2360
    %v3634 = vunpack.c.l.b16 %v2361
    %v3635 = vunpack.c.l.b16 %v2362
    %v3636 = vunpack.c.l.b16 %v2363
    %v3637 = vunpack.c.l.b16 %v2364
    %v3638 = vunpack.c.l.b16 %v2365
    %v3639 = vunpack.c.l.b16 %v2366
    %v3640 = vunpack.c.l.b16 %v2367
    %v3641 = vunpack.c.l.b16 %v2368
    %v3642 = vunpack.c.l.b16 %v2369
    %v3643 = vunpack.c.l.b16 %v2370
    %v3644 = vunpack.c.l.b16 %v2371
    %v3645 = vunpack.c.l.b16 %v2372
    %v3646 = vunpack.c.l.b16 %v2373
    %v3647 = vunpack.c.l.b16 %v2374
    %v3648 = vunpack.c.l.b16 %v2375
    %v3649 = vunpack.c.l.b16 %v2376
    %v3650 = vunpack.c.l.b16 %v2377
    %v3651 = vunpack.c.l.b16 %v2378
    %v3652 = vunpack.c.l.b16 %v2379
    %v3653 = vunpack.c.l.b16 %v2380
    %v3654 = vunpack.c.l.b16 %v2381
    %v3655 = vunpack.c.l.b16 %v2382
    %v3656 = vunpack.c.l.b16 %v2383
    %v3657 = vunpack.c.l.b16 %v2384
    %v3658 = vunpack.c.l.b16 %v2385
    %v3659 = vunpack.c.l.b16 %v2386
    %v3660 = vunpack.c.l.b16 %v2387
    %v3661 = vunpack.c.l.b16 %v2388
    %v3662 = vunpack.c.l.b16 %v2389
    %v3663 = vunpack.c.l.b16 %v2390
    %v3664 = vunpack.c.l.b16 %v2391
    %v3665 = vunpack.c.l.b16 %v2392
    %v3666 = vunpack.c.l.b16 %v2393
    %v3667 = vunpack.c.l.b16 %v2394
    %v3668 = vunpack.c.l.b16 %v2395
    %v3669 = vunpack.c.l.b16 %v2396
    %v3670 = vunpack.c.l.b16 %v2397
    %v3671 = vunpack.c.l.b16 %v2398
    %v3672 = vunpack.c.l.b16 %v2399
    %v3673 = vunpack.c.l.b16 %v2400
    %v3674 = vunpack.c.l.b16 %v2401
    %v3675 = vunpack.c.l.b16 %v2402
    %v3676 = vunpack.c.l.b16 %v2403
    %v3677 = vunpack.c.l.b16 %v2404
    %v3678 = vunpack.c.l.b16 %v2405
    %v3679 = vunpack.c.l.b16 %v2406
    %v3680 = vunpack.c.l.b16 %v2407
    %v3681 = vunpack.c.l.b16 %v2408
    %v3682 = vunpack.c.l.b16 %v2409
    %v3683 = vunpack.c.l.b16 %v2410
    %v3684 = vunpack.c.l.b16 %v2411
    %v3685 = vunpack.c.l.b16 %v2412
    %v3686 = vunpack.c.l.b16 %v2413
    %v3687 = vunpack.c.l.b16 %v2414
    %v3688 = vunpack.c.l.b16 %v2415
    %v3689 = vunpack.c.l.b16 %v2416
    %v3690 = vunpack.c.l.b16 %v2417
    %v3691 = vunpack.c.l.b16 %v2418
    %v3692 = vunpack.c.l.b16 %v2419
    %v3693 = vunpack.c.l.b16 %v2420
    %v3694 = vunpack.c.l.b16 %v2421
    %v3695 = vunpack.c.l.b16 %v2422
    %v3696 = vunpack.c.l.b16 %v2423
    %v3697 = vunpack.c.l.b16 %v2424
    %v3698 = vunpack.c.l.b16 %v2425
    %v3699 = vunpack.c.l.b16 %v2426
    %v3700 = vunpack.c.l.b16 %v2427
    %v3701 = vunpack.c.l.b16 %v2428
    %v3702 = vunpack.c.l.b16 %v2429
    %v3703 = vunpack.c.l.b16 %v2430
    %v3704 = vunpack.c.l.b16 %v2431
    %v3705 = vunpack.c.l.b16 %v2432
    %v3706 = vunpack.c.l.b16 %v2433
    %v3707 = vunpack.c.l.b16 %v2434
    %v3708 = vunpack.c.l.b16 %v2435
    %v3709 = vunpack.c.l.b16 %v2436
    %v3710 = vunpack.c.l.b16 %v2437
    %v3711 = vunpack.c.l.b16 %v2438
    %v3712 = vunpack.c.l.b16 %v2439
    %v3713 = vunpack.c.l.b16 %v2440
    %v3714 = vunpack.c.l.b16 %v2441
    %v3715 = vunpack.c.l.b16 %v2442
    %v3716 = vunpack.c.l.b16 %v2443
    %v3717 = vunpack.c.l.b16 %v2444
    %v3718 = vunpack.c.l.b16 %v2445
    %v3719 = vunpack.c.l.b16 %v2446
    %v3720 = vunpack.c.l.b16 %v2447
    %v3721 = vunpack.c.l.b16 %v2448
    %v3722 = vunpack.c.l.b16 %v2449
    %v3723 = vunpack.c.l.b16 %v2450
    %v3724 = vunpack.c.l.b16 %v2451
    %v3725 = vunpack.c.l.b16 %v2452
    %v3726 = vunpack.c.l.b16 %v2453
    %v3727 = vunpack.c.l.b16 %v2454
    %v3728 = vunpack.c.l.b16 %v2455
    %v3729 = vunpack.c.l.b16 %v2456
    %v3730 = vunpack.c.l.b16 %v2457
    %v3731 = vunpack.c.l.b16 %v2458
    %v3732 = vunpack.c.l.b16 %v2459
    %v3733 = vunpack.c.l.b16 %v2460
    %v3734 = vunpack.c.l.b16 %v2461
    %v3735 = vunpack.c.l.b16 %v2462
    %v3736 = vunpack.c.l.b16 %v2463
    %v3737 = vunpack.c.l.b16 %v2464
    %v3738 = vunpack.c.l.b16 %v2465
    %v3739 = vunpack.c.l.b16 %v2466
    %v3740 = vunpack.c.l.b16 %v2467
    %v3741 = vunpack.c.l.b16 %v2468
    %v3742 = vunpack.c.l.b16 %v2469
    %v3743 = vunpack.c.l.b16 %v2470
    %v3744 = vunpack.c.l.b16 %v2471
    %v3745 = vunpack.c.l.b16 %v2472
    %v3746 = vunpack.c.l.b16 %v2473
    %v3747 = vunpack.c.l.b16 %v2474
    %v3748 = vunpack.c.l.b16 %v2475
    %v3749 = vunpack.c.l.b16 %v2476
    %v3750 = vunpack.c.l.b16 %v2477
    %v3751 = vunpack.c.l.b16 %v2478
    %v3752 = vunpack.c.l.b16 %v2479
    %v3753 = vunpack.c.l.b16 %v2480
    %v3754 = vunpack.c.l.b16 %v2481
    %v3755 = vunpack.c.l.b16 %v2482
    %v3756 = vunpack.c.l.b16 %v2483
    %v3757 = vunpack.c.l.b16 %v2484
    %v3758 = vunpack.c.l.b16 %v2485
    %v3759 = vunpack.c.l.b16 %v2486
    %v3760 = vunpack.c.l.b16 %v2487
    %v3761 = vunpack.c.l.b16 %v2488
    %v3762 = vunpack.c.l.b16 %v2489
    %v3763 = vunpack.c.l.b16 %v2490
    %v3764 = vunpack.c.l.b16 %v2491
    %v3765 = vpack.c.b16 %v3510, %v3509
    %v3766 = vpack.c.b16 %v3512, %v3511
    %v3767 = vpack.c.b16 %v3514, %v3513
    %v3768 = vpack.c.b16 %v3516, %v3515
    %v3769 = vpack.c.b16 %v3518, %v3517
    %v3770 = vpack.c.b16 %v3520, %v3519
    %v3771 = vpack.c.b16 %v3522, %v3521
    %v3772 = vpack.c.b16 %v3524, %v3523
    %v3773 = vpack.c.b16 %v3526, %v3525
    %v3774 = vpack.c.b16 %v3528, %v3527
    %v3775 = vpack.c.b16 %v3530, %v3529
    %v3776 = vpack.c.b16 %v3532, %v3531
    %v3777 = vpack.c.b16 %v3534, %v3533
    %v3778 = vpack.c.b16 %v3536, %v3535
    %v3779 = vpack.c.b16 %v3538, %v3537
    %v3780 = vpack.c.b16 %v3540, %v3539
    %v3781 = vpack.c.b16 %v3542, %v3541
    %v3782 = vpack.c.b16 %v3544, %v3543
    %v3783 = vpack.c.b16 %v3546, %v3545
    %v3784 = vpack.c.b16 %v3548, %v3547
    %v3785 = vpack.c.b16 %v3550, %v3549
    %v3786 = vpack.c.b16 %v3552, %v3551
    %v3787 = vpack.c.b16 %v3554, %v3553
    %v3788 = vpack.c.b16 %v3556, %v3555
    %v3789 = vpack.c.b16 %v3558, %v3557
    %v3790 = vpack.c.b16 %v3560, %v3559
    %v3791 = vpack.c.b16 %v3562, %v3561
    %v3792 = vpack.c.b16 %v3564, %v3563
    %v3793 = vpack.c.b16 %v3566, %v3565
    %v3794 = vpack.c.b16 %v3568, %v3567
    %v3795 = vpack.c.b16 %v3570, %v3569
    %v3796 = vpack.c.b16 %v3572, %v3571
    %v3797 = vpack.c.b16 %v3574, %v3573
    %v3798 = vpack.c.b16 %v3576, %v3575
    %v3799 = vpack.c.b16 %v3578, %v3577
    %v3800 = vpack.c.b16 %v3580, %v3579
    %v3801 = vpack.c.b16 %v3582, %v3581
    %v3802 = vpack.c.b16 %v3584, %v3583
    %v3803 = vpack.c.b16 %v3586, %v3585
    %v3804 = vpack.c.b16 %v3588, %v3587
    %v3805 = vpack.c.b16 %v3590, %v3589
    %v3806 = vpack.c.b16 %v3592, %v3591
    %v3807 = vpack.c.b16 %v3594, %v3593
    %v3808 = vpack.c.b16 %v3596, %v3595
    %v3809 = vpack.c.b16 %v3598, %v3597
    %v3810 = vpack.c.b16 %v3600, %v3599
    %v3811 = vpack.c.b16 %v3602, %v3601
    %v3812 = vpack.c.b16 %v3604, %v3603
    %v3813 = vpack.c.b16 %v3606, %v3605
    %v3814 = vpack.c.b16 %v3608, %v3607
    %v3815 = vpack.c.b16 %v3610, %v3609
    %v3816 = vpack.c.b16 %v3612, %v3611
    %v3817 = vpack.c.b16 %v3614, %v3613
    %v3818 = vpack.c.b16 %v3616, %v3615
    %v3819 = vpack.c.b16 %v3618, %v3617
    %v3820 = vpack.c.b16 %v3620, %v3619
    %v3821 = vpack.c.b16 %v3622, %v3621
    %v3822 = vpack.c.b16 %v3624, %v3623
    %v3823 = vpack.c.b16 %v3626, %v3625
    %v3824 = vpack.c.b16 %v3628, %v3627
    %v3825 = vpack.c.b16 %v3630, %v3629
    %v3826 = vpack.c.b16 %v3632, %v3631
    %v3827 = vpack.c.b16 %v3634, %v3633
    %v3828 = vpack.c.b16 %v3636, %v3635
    %v3829 = vpack.c.b16 %v3638, %v3637
    %v3830 = vpack.c.b16 %v3640, %v3639
    %v3831 = vpack.c.b16 %v3642, %v3641
    %v3832 = vpack.c.b16 %v3644, %v3643
    %v3833 = vpack.c.b16 %v3646, %v3645
    %v3834 = vpack.c.b16 %v3648, %v3647
    %v3835 = vpack.c.b16 %v3650, %v3649
    %v3836 = vpack.c.b16 %v3652, %v3651
    %v3837 = vpack.c.b16 %v3654, %v3653
    %v3838 = vpack.c.b16 %v3656, %v3655
    %v3839 = vpack.c.b16 %v3658, %v3657
    %v3840 = vpack.c.b16 %v3660, %v3659
    %v3841 = vpack.c.b16 %v3662, %v3661
    %v3842 = vpack.c.b16 %v3664, %v3663
    %v3843 = vpack.c.b16 %v3666, %v3665
    %v3844 = vpack.c.b16 %v3668, %v3667
    %v3845 = vpack.c.b16 %v3670, %v3669
    %v3846 = vpack.c.b16 %v3672, %v3671
    %v3847 = vpack.c.b16 %v3674, %v3673
    %v3848 = vpack.c.b16 %v3676, %v3675
    %v3849 = vpack.c.b16 %v3678, %v3677
    %v3850 = vpack.c.b16 %v3680, %v3679
    %v3851 = vpack.c.b16 %v3682, %v3681
    %v3852 = vpack.c.b16 %v3684, %v3683
    %v3853 = vpack.c.b16 %v3686, %v3685
    %v3854 = vpack.c.b16 %v3688, %v3687
    %v3855 = vpack.c.b16 %v3690, %v3689
    %v3856 = vpack.c.b16 %v3692, %v3691
    %v3857 = vpack.c.b16 %v3694, %v3693
    %v3858 = vpack.c.b16 %v3696, %v3695
    %v3859 = vpack.c.b16 %v3698, %v3697
    %v3860 = vpack.c.b16 %v3700, %v3699
    %v3861 = vpack.c.b16 %v3702, %v3701
    %v3862 = vpack.c.b16 %v3704, %v3703
    %v3863 = vpack.c.b16 %v3706, %v3705
    %v3864 = vpack.c.b16 %v3708, %v3707
    %v3865 = vpack.c.b16 %v3710, %v3709
    %v3866 = vpack.c.b16 %v3712, %v3711
    %v3867 = vpack.c.b16 %v3714, %v3713
    %v3868 = vpack.c.b16 %v3716, %v3715
    %v3869 = vpack.c.b16 %v3718, %v3717
    %v3870 = vpack.c.b16 %v3720, %v3719
    %v3871 = vpack.c.b16 %v3722, %v3721
    %v3872 = vpack.c.b16 %v3724, %v3723
    %v3873 = vpack.c.b16 %v3726, %v3725
    %v3874 = vpack.c.b16 %v3728, %v3727
    %v3875 = vpack.c.b16 %v3730, %v3729
    %v3876 = vpack.c.b16 %v3732, %v3731
    %v3877 = vpack.c.b16 %v3734, %v3733
    %v3878 = vpack.c.b16 %v3736, %v3735
    %v3879 = vpack.c.b16 %v3738, %v3737
    %v3880 = vpack.c.b16 %v3740, %v3739
    %v3881 = vpack.c.b16 %v3742, %v3741
    %v3882 = vpack.c.b16 %v3744, %v3743
    %v3883 = vpack.c.b16 %v3746, %v3745
    %v3884 = vpack.c.b16 %v3748, %v3747
    %v3885 = vpack.c.b16 %v3750, %v3749
    %v3886 = vpack.c.b16 %v3752, %v3751
    %v3887 = vpack.c.b16 %v3754, %v3753
    %v3888 = vpack.c.b16 %v3756, %v3755
    %v3889 = vpack.c.b16 %v3758, %v3757
    %v3890 = vpack.c.b16 %v3760, %v3759
    %v3891 = vpack.c.b16 %v3762, %v3761
    %v3892 = vpack.c.b16 %v3764, %v3763
    %4021 = vmatpush.bf16.msra.mxu0 %v3772
    %4022 = vmatpush.bf16.msra.mxu0 %v3771
    %4023 = vmatpush.bf16.msra.mxu0 %v3770
    %4024 = vmatpush.bf16.msra.mxu0 %v3769
    %4025 = vmatpush.bf16.msra.mxu0 %v3768
    %4026 = vmatpush.bf16.msra.mxu0 %v3767
    %4027 = vmatpush.bf16.msra.mxu0 %v3766
    %4028 = vmatpush.bf16.msra.mxu0 %v3765
    %4029 = vmatmul.bf16.gmra.mxu0 %v3236
    %v4030 = vpop.f32.mrf.mxu0
    %v4031 = vadd.f32 %v3252, %v4030
    %v4032 = vpop.f32.mrf.mxu0
    %v4033 = vadd.f32 %v3252, %v4032
    %4034 = vdwg.mxu0
    %4035 = vmatpush.bf16.msra.mxu0 %v3780
    %4036 = vmatpush.bf16.msra.mxu0 %v3779
    %4037 = vmatpush.bf16.msra.mxu0 %v3778
    %4038 = vmatpush.bf16.msra.mxu0 %v3777
    %4039 = vmatpush.bf16.msra.mxu0 %v3776
    %4040 = vmatpush.bf16.msra.mxu0 %v3775
    %4041 = vmatpush.bf16.msra.mxu0 %v3774
    %4042 = vmatpush.bf16.msra.mxu0 %v3773
    %4043 = vmatmul.bf16.gmra.mxu0 %v3237
    %v4044 = vpop.f32.mrf.mxu0
    %v4045 = vadd.f32 %v4031, %v4044
    %v4046 = vpop.f32.mrf.mxu0
    %v4047 = vadd.f32 %v4033, %v4046
    %4048 = vdwg.mxu0
    %4049 = vmatpush.bf16.msra.mxu0 %v3788
    %4050 = vmatpush.bf16.msra.mxu0 %v3787
    %4051 = vmatpush.bf16.msra.mxu0 %v3786
    %4052 = vmatpush.bf16.msra.mxu0 %v3785
    %4053 = vmatpush.bf16.msra.mxu0 %v3784
    %4054 = vmatpush.bf16.msra.mxu0 %v3783
    %4055 = vmatpush.bf16.msra.mxu0 %v3782
    %4056 = vmatpush.bf16.msra.mxu0 %v3781
    %4057 = vmatmul.bf16.gmra.mxu0 %v3238
    %v4058 = vpop.f32.mrf.mxu0
    %v4059 = vadd.f32 %v4045, %v4058
    %v4060 = vpop.f32.mrf.mxu0
    %v4061 = vadd.f32 %v4047, %v4060
    %4062 = vdwg.mxu0
    %4063 = vmatpush.bf16.msra.mxu0 %v3796
    %4064 = vmatpush.bf16.msra.mxu0 %v3795
    %4065 = vmatpush.bf16.msra.mxu0 %v3794
    %4066 = vmatpush.bf16.msra.mxu0 %v3793
    %4067 = vmatpush.bf16.msra.mxu0 %v3792
    %4068 = vmatpush.bf16.msra.mxu0 %v3791
    %4069 = vmatpush.bf16.msra.mxu0 %v3790
    %4070 = vmatpush.bf16.msra.mxu0 %v3789
    %4071 = vmatmul.bf16.gmra.mxu0 %v3239
    %v4072 = vpop.f32.mrf.mxu0
    %v4073 = vadd.f32 %v4059, %v4072
    %v4074 = vpop.f32.mrf.mxu0
    %v4075 = vadd.f32 %v4061, %v4074
    %4076 = vdwg.mxu0
    %4077 = vmatpush.bf16.msra.mxu0 %v3804
    %4078 = vmatpush.bf16.msra.mxu0 %v3803
    %4079 = vmatpush.bf16.msra.mxu0 %v3802
    %4080 = vmatpush.bf16.msra.mxu0 %v3801
    %4081 = vmatpush.bf16.msra.mxu0 %v3800
    %4082 = vmatpush.bf16.msra.mxu0 %v3799
    %4083 = vmatpush.bf16.msra.mxu0 %v3798
    %4084 = vmatpush.bf16.msra.mxu0 %v3797
    %4085 = vmatmul.bf16.gmra.mxu0 %v3240
    %v4086 = vpop.f32.mrf.mxu0
    %v4087 = vadd.f32 %v4073, %v4086
    %v4088 = vpop.f32.mrf.mxu0
    %v4089 = vadd.f32 %v4075, %v4088
    %4090 = vdwg.mxu0
    %4091 = vmatpush.bf16.msra.mxu0 %v3812
    %4092 = vmatpush.bf16.msra.mxu0 %v3811
    %4093 = vmatpush.bf16.msra.mxu0 %v3810
    %4094 = vmatpush.bf16.msra.mxu0 %v3809
    %4095 = vmatpush.bf16.msra.mxu0 %v3808
    %4096 = vmatpush.bf16.msra.mxu0 %v3807
    %4097 = vmatpush.bf16.msra.mxu0 %v3806
    %4098 = vmatpush.bf16.msra.mxu0 %v3805
    %4099 = vmatmul.bf16.gmra.mxu0 %v3241
    %v4100 = vpop.f32.mrf.mxu0
    %v4101 = vadd.f32 %v4087, %v4100
    %v4102 = vpop.f32.mrf.mxu0
    %v4103 = vadd.f32 %v4089, %v4102
    %4104 = vdwg.mxu0
    %4105 = vmatpush.bf16.msra.mxu0 %v3820
    %4106 = vmatpush.bf16.msra.mxu0 %v3819
    %4107 = vmatpush.bf16.msra.mxu0 %v3818
    %4108 = vmatpush.bf16.msra.mxu0 %v3817
    %4109 = vmatpush.bf16.msra.mxu0 %v3816
    %4110 = vmatpush.bf16.msra.mxu0 %v3815
    %4111 = vmatpush.bf16.msra.mxu0 %v3814
    %4112 = vmatpush.bf16.msra.mxu0 %v3813
    %4113 = vmatmul.bf16.gmra.mxu0 %v3242
    %v4114 = vpop.f32.mrf.mxu0
    %v4115 = vadd.f32 %v4101, %v4114
    %v4116 = vpop.f32.mrf.mxu0
    %v4117 = vadd.f32 %v4103, %v4116
    %4118 = vdwg.mxu0
    %4119 = vmatpush.bf16.msra.mxu0 %v3828
    %4120 = vmatpush.bf16.msra.mxu0 %v3827
    %4121 = vmatpush.bf16.msra.mxu0 %v3826
    %4122 = vmatpush.bf16.msra.mxu0 %v3825
    %4123 = vmatpush.bf16.msra.mxu0 %v3824
    %4124 = vmatpush.bf16.msra.mxu0 %v3823
    %4125 = vmatpush.bf16.msra.mxu0 %v3822
    %4126 = vmatpush.bf16.msra.mxu0 %v3821
    %4127 = vmatmul.bf16.gmra.mxu0 %v3243
    %v4128 = vpop.f32.mrf.mxu0
    %v4129 = vadd.f32 %v4115, %v4128
    %v4130 = vpop.f32.mrf.mxu0
    %v4131 = vadd.f32 %v4117, %v4130
    %4132 = vdwg.mxu0
    %4133 = vmatpush.bf16.msra.mxu0 %v3836
    %4134 = vmatpush.bf16.msra.mxu0 %v3835
    %4135 = vmatpush.bf16.msra.mxu0 %v3834
    %4136 = vmatpush.bf16.msra.mxu0 %v3833
    %4137 = vmatpush.bf16.msra.mxu0 %v3832
    %4138 = vmatpush.bf16.msra.mxu0 %v3831
    %4139 = vmatpush.bf16.msra.mxu0 %v3830
    %4140 = vmatpush.bf16.msra.mxu0 %v3829
    %4141 = vmatmul.bf16.gmra.mxu0 %v3244
    %v4142 = vpop.f32.mrf.mxu0
    %v4143 = vadd.f32 %v4129, %v4142
    %v4144 = vpop.f32.mrf.mxu0
    %v4145 = vadd.f32 %v4131, %v4144
    %4146 = vdwg.mxu0
    %4147 = vmatpush.bf16.msra.mxu0 %v3844
    %4148 = vmatpush.bf16.msra.mxu0 %v3843
    %4149 = vmatpush.bf16.msra.mxu0 %v3842
    %4150 = vmatpush.bf16.msra.mxu0 %v3841
    %4151 = vmatpush.bf16.msra.mxu0 %v3840
    %4152 = vmatpush.bf16.msra.mxu0 %v3839
    %4153 = vmatpush.bf16.msra.mxu0 %v3838
    %4154 = vmatpush.bf16.msra.mxu0 %v3837
    %4155 = vmatmul.bf16.gmra.mxu0 %v3245
    %v4156 = vpop.f32.mrf.mxu0
    %v4157 = vadd.f32 %v4143, %v4156
    %v4158 = vpop.f32.mrf.mxu0
    %v4159 = vadd.f32 %v4145, %v4158
    %4160 = vdwg.mxu0
    %4161 = vmatpush.bf16.msra.mxu0 %v3852
    %4162 = vmatpush.bf16.msra.mxu0 %v3851
    %4163 = vmatpush.bf16.msra.mxu0 %v3850
    %4164 = vmatpush.bf16.msra.mxu0 %v3849
    %4165 = vmatpush.bf16.msra.mxu0 %v3848
    %4166 = vmatpush.bf16.msra.mxu0 %v3847
    %4167 = vmatpush.bf16.msra.mxu0 %v3846
    %4168 = vmatpush.bf16.msra.mxu0 %v3845
    %4169 = vmatmul.bf16.gmra.mxu0 %v3246
    %v4170 = vpop.f32.mrf.mxu0
    %v4171 = vadd.f32 %v4157, %v4170
    %v4172 = vpop.f32.mrf.mxu0
    %v4173 = vadd.f32 %v4159, %v4172
    %4174 = vdwg.mxu0
    %4175 = vmatpush.bf16.msra.mxu0 %v3860
    %4176 = vmatpush.bf16.msra.mxu0 %v3859
    %4177 = vmatpush.bf16.msra.mxu0 %v3858
    %4178 = vmatpush.bf16.msra.mxu0 %v3857
    %4179 = vmatpush.bf16.msra.mxu0 %v3856
    %4180 = vmatpush.bf16.msra.mxu0 %v3855
    %4181 = vmatpush.bf16.msra.mxu0 %v3854
    %4182 = vmatpush.bf16.msra.mxu0 %v3853
    %4183 = vmatmul.bf16.gmra.mxu0 %v3247
    %v4184 = vpop.f32.mrf.mxu0
    %v4185 = vadd.f32 %v4171, %v4184
    %v4186 = vpop.f32.mrf.mxu0
    %v4187 = vadd.f32 %v4173, %v4186
    %4188 = vdwg.mxu0
    %4189 = vmatpush.bf16.msra.mxu0 %v3868
    %4190 = vmatpush.bf16.msra.mxu0 %v3867
    %4191 = vmatpush.bf16.msra.mxu0 %v3866
    %4192 = vmatpush.bf16.msra.mxu0 %v3865
    %4193 = vmatpush.bf16.msra.mxu0 %v3864
    %4194 = vmatpush.bf16.msra.mxu0 %v3863
    %4195 = vmatpush.bf16.msra.mxu0 %v3862
    %4196 = vmatpush.bf16.msra.mxu0 %v3861
    %4197 = vmatmul.bf16.gmra.mxu0 %v3248
    %v4198 = vpop.f32.mrf.mxu0
    %v4199 = vadd.f32 %v4185, %v4198
    %v4200 = vpop.f32.mrf.mxu0
    %v4201 = vadd.f32 %v4187, %v4200
    %4202 = vdwg.mxu0
    %4203 = vmatpush.bf16.msra.mxu0 %v3876
    %4204 = vmatpush.bf16.msra.mxu0 %v3875
    %4205 = vmatpush.bf16.msra.mxu0 %v3874
    %4206 = vmatpush.bf16.msra.mxu0 %v3873
    %4207 = vmatpush.bf16.msra.mxu0 %v3872
    %4208 = vmatpush.bf16.msra.mxu0 %v3871
    %4209 = vmatpush.bf16.msra.mxu0 %v3870
    %4210 = vmatpush.bf16.msra.mxu0 %v3869
    %4211 = vmatmul.bf16.gmra.mxu0 %v3249
    %v4212 = vpop.f32.mrf.mxu0
    %v4213 = vadd.f32 %v4199, %v4212
    %v4214 = vpop.f32.mrf.mxu0
    %v4215 = vadd.f32 %v4201, %v4214
    %4216 = vdwg.mxu0
    %4217 = vmatpush.bf16.msra.mxu0 %v3884
    %4218 = vmatpush.bf16.msra.mxu0 %v3883
    %4219 = vmatpush.bf16.msra.mxu0 %v3882
    %4220 = vmatpush.bf16.msra.mxu0 %v3881
    %4221 = vmatpush.bf16.msra.mxu0 %v3880
    %4222 = vmatpush.bf16.msra.mxu0 %v3879
    %4223 = vmatpush.bf16.msra.mxu0 %v3878
    %4224 = vmatpush.bf16.msra.mxu0 %v3877
    %4225 = vmatmul.bf16.gmra.mxu0 %v3250
    %v4226 = vpop.f32.mrf.mxu0
    %v4227 = vadd.f32 %v4213, %v4226
    %v4228 = vpop.f32.mrf.mxu0
    %v4229 = vadd.f32 %v4215, %v4228
    %4230 = vdwg.mxu0
    %4231 = vmatpush.bf16.msra.mxu0 %v3892
    %4232 = vmatpush.bf16.msra.mxu0 %v3891
    %4233 = vmatpush.bf16.msra.mxu0 %v3890
    %4234 = vmatpush.bf16.msra.mxu0 %v3889
    %4235 = vmatpush.bf16.msra.mxu0 %v3888
    %4236 = vmatpush.bf16.msra.mxu0 %v3887
    %4237 = vmatpush.bf16.msra.mxu0 %v3886
    %4238 = vmatpush.bf16.msra.mxu0 %v3885
    %4239 = vmatmul.bf16.gmra.mxu0 %v3251
    %v4240 = vpop.f32.mrf.mxu0
    %v4241 = vadd.f32 %v4227, %v4240
    %v4242 = vpop.f32.mrf.mxu0
    %v4243 = vadd.f32 %v4229, %v4242
    %4244 = vdwg.mxu0
    %v4245 = vadd.f32 %v2766, %v4241
    %v4246 = vadd.f32 %v2767, %v4243
    %v4247 = vsel %vm377, %v4245, 0.0
    %4248 = vadd.xlane.f32.xlu0 %v4247
    %v4249 = vpop.xlane.xlu0 %4248
    %v4250 = vsel %vm377, %v4246, 0.0
    %4251 = vadd.xlane.f32.xlu0 %v4250
    %v4252 = vpop.xlane.xlu0 %4251
    %v4253 = vmul.f32 %v4249, %v604
    %v4254 = vmul.f32 %v4252, %v604
    %v4255 = vsub.f32 %v4245, %v4253
    %v4256 = vsub.f32 %v4246, %v4254
    %v4257 = vmul.f32 %v4255, %v4255
    %v4258 = vmul.f32 %v4256, %v4256
    %v4259 = vsel %vm377, %v4257, 0.0
    %4260 = vadd.xlane.f32.xlu0 %v4259
    %v4261 = vpop.xlane.xlu0 %4260
    %v4262 = vsel %vm377, %v4258, 0.0
    %4263 = vadd.xlane.f32.xlu0 %v4262
    %v4264 = vpop.xlane.xlu0 %4263
    %v4265 = vmul.f32 %v4261, %v604
    %v4266 = vmul.f32 %v4264, %v604
    %v4267 = vadd.f32 %v4265, 1e-05
    %v4268 = vadd.f32 %v4266, 1e-05
    %v4269 = vrsqrt.pop %v4267
    %v4270 = vmul.f32 %v4269, %v4267
    %v4271 = vmul.f32 %v4270, %v4269
    %v4272 = vmul.f32 0.5, %v4271
    %v4273 = vsub.f32 1.5, %v4272
    %v4274 = vmul.f32 %v4269, %v4273
    %vm4275 = vweird.f32 %v4267
    %vm4276 = vweird.f32 %v4269
    %vm4277 = vmor %vm4275, %vm4276
    %v4278 = vsel %vm4277, %v4269, %v4274
    %v4279 = vrsqrt.pop %v4268
    %v4280 = vmul.f32 %v4279, %v4268
    %v4281 = vmul.f32 %v4280, %v4279
    %v4282 = vmul.f32 0.5, %v4281
    %v4283 = vsub.f32 1.5, %v4282
    %v4284 = vmul.f32 %v4279, %v4283
    %vm4285 = vweird.f32 %v4268
    %vm4286 = vweird.f32 %v4279
    %vm4287 = vmor %vm4285, %vm4286
    %v4288 = vsel %vm4287, %v4279, %v4284
    %v4289 = vmul.f32 %v4255, %v4278
    %v4290 = vmul.f32 %v4256, %v4288
    %v4291 = vperm.slane %v50, 2
    %v4292 = vmul.f32 %v4289, %v4291
    %v4293 = vmul.f32 %v4290, %v4291
    %v4294 = vperm.slane %v50, 3
    %v4295 = vadd.f32 %v4292, %v4294
    %v4296 = vadd.f32 %v4293, %v4294
    %s4297 = sld [smem:[#allocation3]]
    %s4298 = sld [smem:[#allocation3 + $0x1]]
    %s4299 = sld [smem:[#allocation3 + $0x2]]
    %v4300 = vperm.slane %v50, 4
    %v4301 = vmul.f32 %v4295, %v4300
    %v4302 = vmul.f32 %v4296, %v4300
    %v4303 = vsel %vm377, %v4301, 0.0
    %4304 = vadd.xlane.f32.xlu0 %v4303
    %v4305 = vpop.xlane.xlu0 %4304
    %v4306 = vsel %vm377, %v4302, 0.0
    %4307 = vadd.xlane.f32.xlu0 %v4306
    %v4308 = vpop.xlane.xlu0 %4307
    %v4309 = vstv %s4297
    %v4310 = vadd.f32 %v4305, %v4309
    %v4311 = vadd.f32 %v4308, %v4309
    %v4312 = vstv %s4299
    %v4313 = vmul.f32 %v4312, %v4310
    %v4314 = vmul.f32 %v4312, %v4311
    %v4315 = vstv %s4298
    %v4316 = vsub.f32 %v4313, %v4315
    %v4317 = vsub.f32 %v4314, %v4315
    %v4318 = vxor.u32 %v4316, 2147483648
    %v4319 = vxor.u32 %v4317, 2147483648
    %v4320 = vmul.f32 %v4318, 1.442695
    %v4321 = vpow.pop %v4320
    %v4322 = vmul.f32 %v4319, 1.442695
    %v4323 = vpow.pop %v4322
    %v4324 = vadd.f32 %v4321, 1.0
    %v4325 = vadd.f32 %v4323, 1.0
    %v4326 = vrcp.pop %v4324
    %v4327 = vmul.f32 %v4324, %v4326
    %v4328 = vsub.f32 1.0, %v4327
    %v4329 = vmul.f32 %v4326, %v4328
    %v4330 = vadd.f32 %v4326, %v4329
    %vm4331 = vweird.f32 %v4324
    %vm4332 = vweird.f32 %v4326
    %vm4333 = vmor %vm4331, %vm4332
    %v4334 = vsel %vm4333, %v4326, %v4330
    %v4335 = vand.u32 2147483647, %v4324
    %vm4336 = vcmp.eq.f32.partialorder %v4335, 8.507059e+37
    %v4337 = vand.u32 %v4324, 2147483648
    %v4338 = vor.u32 1.1754944e-38, %v4337
    %v4339 = vsel %vm4336, %v4338, %v4334
    %v4340 = vmul.f32 1.0, %v4339
    %v4341 = vrcp.pop %v4325
    %v4342 = vmul.f32 %v4325, %v4341
    %v4343 = vsub.f32 1.0, %v4342
    %v4344 = vmul.f32 %v4341, %v4343
    %v4345 = vadd.f32 %v4341, %v4344
    %vm4346 = vweird.f32 %v4325
    %vm4347 = vweird.f32 %v4341
    %vm4348 = vmor %vm4346, %vm4347
    %v4349 = vsel %vm4348, %v4341, %v4345
    %v4350 = vand.u32 2147483647, %v4325
    %vm4351 = vcmp.eq.f32.partialorder %v4350, 8.507059e+37
    %v4352 = vand.u32 %v4325, 2147483648
    %v4353 = vor.u32 1.1754944e-38, %v4352
    %v4354 = vsel %vm4351, %v4353, %v4349
    %v4355 = vmul.f32 1.0, %v4354
    %v4358 = vlaneseq
    %v4359 = vand.u32 %v4358, 127
    %v4360 = vperm.slane %v4340, %v4359
    %v4361 = vperm.slane %v4355, %v4359
    %vm4362 = vcmask 1041409
    %v4363 = vsel %vm4362, %v4361, %v4360
    %vm4365 = vcmask 58368
    %4366 = vst.msk [vmem:[#allocation6] sm:$0x3] %vm4365, %v4363
    // Predicated region
    $region42: #{transformer_model_forward.1} parent=1 // pred_check
      _
    $region43: #{transformer_model_forward.1} parent=1 // pred_check_branch
      %4368 = sbr.rel (0) target = $region45
    $region44: #{transformer_model_forward.1} parent=1 // pred_region
      %4370 = vsyncadd [#allocation4], 0
      %s4372 = sshll.u32 [#allocation6], 4
      %s4373 = int_to_ptr.vmem [resolvable:$true] %s4372
      %s4374 = sshll.u32 %s9, 4
      %s4375 = int_to_ptr.hbm [resolvable:$true] %s4374
      %4377 = dma.vmem_to_hbm [thread:$0]  %s4373, 32, %s4375, [#allocation4]
    $region45: #{transformer_model_forward.1} parent=1 // pred_fallthru
      _
    // Predicated region
    $region46: #{transformer_model_forward.1} parent=1 // pred_check
      _
    $region47: #{transformer_model_forward.1} parent=1 // pred_check_branch
      %4379 = sbr.rel (0) target = $region49
    $region48: #{transformer_model_forward.1} parent=1 // pred_region
      %4381 = dma.done [#allocation4], 32
    $region49: #{transformer_model_forward.1} parent=1 // pred_fallthru
      _
    %4382 = vsyncpa [#allocation4], 1
    %4383 = vsyncpa [#allocation5], 1

</llo_original>
